<compile_context>
chip_gen: v7x
topology: tpu7x:2x2x1
jax: 0.10.0
libtpu: 0.0.40
codegen_flags: <defaults>
</compile_context>

<pallas_src>
import jax
import jax.numpy as jnp
from jax.experimental import pallas as pl
from jax.experimental.pallas import tpu as pltpu

EPS = 1e-5
MXU_PREC = jax.lax.Precision.HIGHEST   # keep f32 matmul numerics tight


# ----------------------------------------------------------------------------
# Fused Pallas kernel: all L TFCM blocks, `bb` batch elements per grid step.
# ----------------------------------------------------------------------------
def make_tfcm_kernel(L, C, F, T, dilas, bb):
    FT = F * T

    def kernel(x_ref, cpad_ref, pos_ref,
               w1_ref, b1_ref, a1_ref,
               wd_ref, bd_ref, ad_ref,
               w2_ref, b2_ref,
               out_ref, ncache_ref):
        # Hoisted lane-index masks (computed once, reused by every layer / elem).
        lane = jax.lax.broadcasted_iota(jnp.int32, (C, FT), 1)
        top_row = lane < T             # freq row 0 has no f-1 neighbour
        bot_row = lane >= FT - T       # freq row F-1 has no f+1 neighbour
        pos = pos_ref[...]             # position within each T-wide time row

        # Per-layer selectors: lanes whose (rolled) time tap must read the cache.
        sel_d = [pos >= T - d for d in dilas]           # tap kt=1 (shift dila)
        sel_p = [pos >= T - 2 * d for d in dilas]       # tap kt=0 (shift 2*dila)

        for bi in range(bb):
            x = x_ref[bi]                                # (C, F*T) lane-dense slab
            for idx in range(L):
                dila = dilas[idx]
                dpad = 2 * dila

                # ---- pconv1 (BN folded) + PReLU: CxC channel mix on the MXU --
                h = jnp.dot(w1_ref[idx], x,
                            preferred_element_type=jnp.float32,
                            precision=MXU_PREC)
                h = h + b1_ref[idx]                      # (C,1) bias column
                h = jnp.where(h >= 0.0, h, a1_ref[idx] * h)

                # ---- new cache: one dense (C, F*T) store per layer; the
                #      wrapper slices the last dpad frames of each time row.
                ncache_ref[bi, idx] = h

                # ---- depthwise (3,3), dilation (1, dila), streaming concat ---
                # Time taps built in registers: select between h and the
                # pre-shifted cache slab on a lane mask, then one XLU roll.
                cpad = cpad_ref[bi, idx]                 # (C, F*T) roll source
                t2 = h                                    # padded[t + 2*dila]
                t1 = pltpu.roll(jnp.where(sel_d[idx], cpad, h),
                                shift=dila, axis=1)       # padded[t + dila]
                t0 = pltpu.roll(jnp.where(sel_p[idx], cpad, h),
                                shift=dpad, axis=1)       # padded[t]

                # Per-channel depthwise weights as (C, 1) columns (hoisted).
                w00 = wd_ref[idx, 0]; w01 = wd_ref[idx, 1]; w02 = wd_ref[idx, 2]
                w10 = wd_ref[idx, 3]; w11 = wd_ref[idx, 4]; w12 = wd_ref[idx, 5]
                w20 = wd_ref[idx, 6]; w21 = wd_ref[idx, 7]; w22 = wd_ref[idx, 8]

                m0 = t0 * w00 + t1 * w01 + t2 * w02       # source row f-1
                m1 = t0 * w10 + t1 * w11 + t2 * w12       # source row f
                m2 = t0 * w20 + t1 * w21 + t2 * w22       # source row f+1

                # Frequency +/-1 taps: roll by one time-row (XLU) + edge mask.
                v0 = jnp.where(top_row, 0.0, pltpu.roll(m0, shift=T, axis=1))
                v2 = jnp.where(bot_row, 0.0, pltpu.roll(m2, shift=FT - T, axis=1))
                d = v0 + m1 + v2 + bd_ref[idx]
                d = jnp.where(d >= 0.0, d, ad_ref[idx] * d)

                # ---- pconv2 + residual: second CxC channel mix on the MXU ----
                y = jnp.dot(w2_ref[idx], d,
                            preferred_element_type=jnp.float32,
                            precision=MXU_PREC)
                x = y + b2_ref[idx] + x

            out_ref[bi] = x

    return kernel


def _pick_batch_block(B, per_elem_bytes, target_bytes=512 * 1024):
    """Batch elements per grid step: amortize per-step overhead while keeping
    >= 2 'parallel' steps (v7x megacore) and a comfortable VMEM footprint."""
    if B <= 1:
        return 1
    cap = max(1, min(B // 2, target_bytes // max(per_elem_bytes, 1)))
    for bb in range(min(cap, B), 0, -1):
        if B % bb == 0:
            return bb
    return 1


def tfcm_forward_pallas(inp, incaches, raw_layers):
    """inp: (B, C, F, T) NCHW; incaches: (B, C, F, 2^(L+1)-2) NCHW."""
    B, C, F, T = inp.shape
    L = len(raw_layers)
    FT = F * T
    dilas = [2 ** i for i in range(L)]
    cache_offs = [2 ** (i + 1) - 2 for i in range(L)]
    max_dpad = 2 * dilas[-1]
    # TODO(synk): support T < 2*max_dila (cache longer than the hop).
    assert T >= max_dpad, "lane-dense TFCM kernel requires T >= 2 * max dilation"

    folded = [fold_params(r) for r in raw_layers]
    stk = lambda k: jnp.stack([f[k] for f in folded], axis=0)
    w1, b1, a1 = stk('w1'), stk('b1'), stk('a1')          # (L,C,C) / (L,C,1)
    wd, bd, ad = stk('wd'), stk('bd'), stk('ad')          # (L,9,C,1) / (L,C,1)
    w2, b2 = stk('w2'), stk('b2')

    # Lane-dense activation layout (layout plumbing only).
    x_flat = inp.reshape(B, C, FT)

    # Per-layer cache, pre-laid-out as the roll source: cache row f is parked
    # at the tail of time-row (f-1) mod F so one in-kernel circular lane-roll
    # lands it exactly at the tap positions that need it.
    cpads = []
    for l in range(L):
        dpad = 2 * dilas[l]
        lo = cache_offs[l]
        c_l = incaches[:, :, :, lo:lo + dpad]              # (B, C, F, dpad)
        c_l = jnp.roll(c_l, shift=-1, axis=2)              # row f-1 <- row f
        c_l = jnp.pad(c_l, ((0, 0), (0, 0), (0, 0), (T - dpad, 0)))
        cpads.append(c_l.reshape(B, C, FT))
    cpad = jnp.stack(cpads, axis=1)                        # (B, L, C, F*T)

    # Lane position within each T-wide time row (precomputed: no vector int-mod
    # inside the kernel).
    pos = jnp.broadcast_to(
        (jnp.arange(FT, dtype=jnp.int32) % T)[None, :], (C, FT))

    per_elem_bytes = 4 * (2 * C * FT + 2 * L * C * FT)     # x/out + cache/ncache
    bb = _pick_batch_block(B, per_elem_bytes)
    grid = (B // bb,)

    act_spec = pl.BlockSpec((bb, C, FT), lambda b: (b, 0, 0))
    cch_spec = pl.BlockSpec((bb, L, C, FT), lambda b: (b, 0, 0, 0))

    def resident(arr):
        # Weights / constants: constant block index -> DMA'd once, stays in VMEM.
        nd = arr.ndim
        return pl.BlockSpec(arr.shape, lambda b: (0,) * nd)

    kernel = make_tfcm_kernel(L, C, F, T, dilas, bb)

    out_flat, ncache_raw = pl.pallas_call(
        kernel,
        out_shape=(jax.ShapeDtypeStruct((B, C, FT), jnp.float32),
                   jax.ShapeDtypeStruct((B, L, C, FT), jnp.float32)),
        grid=grid,
        in_specs=[act_spec, cch_spec, resident(pos),
                  resident(w1), resident(b1), resident(a1),
                  resident(wd), resident(bd), resident(ad),
                  resident(w2), resident(b2)],
        out_specs=(act_spec, cch_spec),
        compiler_params=pltpu.CompilerParams(
            dimension_semantics=("parallel",),
            vmem_limit_bytes=32 * 1024 * 1024),            # fits v7x's 64 MiB
    )(x_flat, cpad, pos, w1, b1, a1, wd, bd, ad, w2, b2)

    out = out_flat.reshape(B, C, F, T)
    h_all = ncache_raw.reshape(B, L, C, F, T)
    new_cache = jnp.concatenate(
        [h_all[:, l, :, :, T - 2 * dilas[l]:] for l in range(L)], axis=-1)
    return out, new_cache


# ----------------------------------------------------------------------------
# Parameter setup (deterministic) and BN folding
# ----------------------------------------------------------------------------
def init_layer_params(key, C):
    ks = jax.random.split(key, 12)
    n = lambda k, s, sc: sc * jax.random.normal(k, s, jnp.float32)
    return dict(
        w1=n(ks[0], (C, C), 0.2), b1=n(ks[1], (C,), 0.05),
        g1=1.0 + n(ks[2], (C,), 0.1), be1=n(ks[3], (C,), 0.05),
        m1=n(ks[4], (C,), 0.1), v1=1.0 + jnp.abs(n(ks[4], (C,), 0.1)),
        a1=0.25 * jnp.ones((C,), jnp.float32),
        wd=n(ks[5], (C, 3, 3), 0.2), bd=n(ks[6], (C,), 0.05),
        gd=1.0 + n(ks[7], (C,), 0.1), bed=n(ks[8], (C,), 0.05),
        md=n(ks[9], (C,), 0.1), vd=1.0 + jnp.abs(n(ks[9], (C,), 0.1)),
        ad=0.25 * jnp.ones((C,), jnp.float32),
        w2=n(ks[10], (C, C), 0.15), b2=n(ks[11], (C,), 0.05),
    )


def fold_params(r):
    """Fold eval-mode BN into conv weights; shape for lane-dense kernel use."""
    C = r['w1'].shape[0]
    s1 = r['g1'] / jnp.sqrt(r['v1'] + EPS)
    t1 = r['be1'] - s1 * r['m1']
    sd = r['gd'] / jnp.sqrt(r['vd'] + EPS)
    td = r['bed'] - sd * r['md']
    wd = r['wd'] * sd[:, None, None]                       # (C, 3, 3)
    wd = jnp.transpose(wd, (1, 2, 0)).reshape(9, C, 1)     # [kf*3+kt, c, 1]
    return dict(
        w1=r['w1'] * s1[:, None],                          # (C, C)
        b1=(r['b1'] * s1 + t1)[:, None],                   # (C, 1)
        a1=r['a1'][:, None],
        wd=wd,
        bd=(r['bd'] * sd + td)[:, None],
        ad=r['ad'][:, None],
        w2=r['w2'],                                        # (C, C)
        b2=r['b2'][:, None],
    )


# ----------------------------------------------------------------------------
# Pure-JAX NCHW reference (mirrors the PyTorch module, eval-mode BN)
# ----------------------------------------------------------------------------
def _ref_block(x, cache, r, dila):
    def bn(y, g, b, m, v):
        return ((y - m[None, :, None, None]) /
                jnp.sqrt(v + EPS)[None, :, None, None] *
                g[None, :, None, None] + b[None, :, None, None])

    def prelu(y, a):
        return jnp.where(y >= 0, y, a[None, :, None, None] * y)

    C = x.shape[1]
    y = jnp.einsum('oc,bcft->boft', r['w1'], x) + r['b1'][None, :, None, None]
    y = prelu(bn(y, r['g1'], r['be1'], r['m1'], r['v1']), r['a1'])
    full = jnp.concatenate([cache, y], axis=3)
    new_cache = full[:, :, :, -2 * dila:]
    padded = jnp.pad(full, ((0, 0), (0, 0), (1, 1), (0, 0)))
    d = jax.lax.conv_general_dilated(
        padded, r['wd'][:, None, :, :], window_strides=(1, 1), padding='VALID',
        rhs_dilation=(1, dila), feature_group_count=C,
        dimension_numbers=('NCHW', 'OIHW', 'NCHW'))
    d = prelu(bn(d + r['bd'][None, :, None, None],
                 r['gd'], r['bed'], r['md'], r['vd']), r['ad'])
    z = jnp.einsum('oc,bcft->boft', r['w2'], d) + r['b2'][None, :, None, None]
    return z + x, new_cache


def tfcm_forward_ref(inp, incaches, raw_layers):
    out = inp
    ncs = []
    for idx, r in enumerate(raw_layers):
        lo, hi = 2 ** (idx + 1) - 2, 2 ** (idx + 2) - 2
        out, nc = _ref_block(out, incaches[:, :, :, lo:hi], r, 2 ** idx)
        ncs.append(nc)
    return out, jnp.concatenate(ncs, axis=3)


if __name__ == "__main__":
    B, C, F, T = 2, 8, 8, 16          # small: batch=2, channels=8, freq=8, time=16
    L = 3                              # tfcm_layer (dilations 1, 2, 4)
    total_cache = 2 ** (L + 1) - 2     # 14

    key = jax.random.PRNGKey(0)
    kx, kc, kp = jax.random.split(key, 3)
    x = jax.random.normal(kx, (B, C, F, T), jnp.float32)
    incaches = jax.random.normal(kc, (B, C, F, total_cache), jnp.float32)
    layer_keys = jax.random.split(kp, L)
    raw_layers = [init_layer_params(layer_keys[i], C) for i in range(L)]

    out, new_cache = tfcm_forward_pallas(x, incaches, raw_layers)
    out = jax.block_until_ready(out)
    new_cache = jax.block_until_ready(new_cache)

    ref_out, ref_cache = tfcm_forward_ref(x, incaches, raw_layers)
    assert out.shape == (B, C, F, T)
    assert new_cache.shape == (B, C, F, total_cache)
    # Slightly loosened vs. exact-f32: the MXU f32 matmul path may reassociate.
    assert jnp.allclose(out, ref_out, atol=2e-3, rtol=2e-3)
    assert jnp.allclose(new_cache, ref_cache, atol=2e-3, rtol=2e-3)
    print("KERNEL_OK")
</pallas_src>

<mosaic_0001>
module attributes {stable_mosaic.version = 11 : i64} {
  func.func @kernel(%arg0: i32, %arg1: memref<1x8x128xf32, #tpu.memory_space<vmem>>, %arg2: memref<1x3x8x128xf32, #tpu.memory_space<vmem>>, %arg3: memref<8x128xi32, #tpu.memory_space<vmem>>, %arg4: memref<3x8x8xf32, #tpu.memory_space<vmem>>, %arg5: memref<3x8x1xf32, #tpu.memory_space<vmem>>, %arg6: memref<3x8x1xf32, #tpu.memory_space<vmem>>, %arg7: memref<3x9x8x1xf32, #tpu.memory_space<vmem>>, %arg8: memref<3x8x1xf32, #tpu.memory_space<vmem>>, %arg9: memref<3x8x1xf32, #tpu.memory_space<vmem>>, %arg10: memref<3x8x8xf32, #tpu.memory_space<vmem>>, %arg11: memref<3x8x1xf32, #tpu.memory_space<vmem>>, %arg12: memref<1x8x128xf32, #tpu.memory_space<vmem>>, %arg13: memref<1x3x8x128xf32, #tpu.memory_space<vmem>>) attributes {dimension_semantics = [#tpu.dimension_semantics<parallel>], iteration_bounds = array<i64: 2>, scalar_prefetch = 0 : i64, scratch_operands = 0 : i64, tpu.core_type = #tpu.core_type<tc>, window_params = [{transform_indices = @transform_0, window_bounds = array<i64: 1, 8, 128>}, {transform_indices = @transform_1, window_bounds = array<i64: 1, 3, 8, 128>}, {pipeline_mode = #tpu.pipeline_mode<synchronous>, transform_indices = @transform_2, window_bounds = array<i64: 8, 128>}, {pipeline_mode = #tpu.pipeline_mode<synchronous>, transform_indices = @transform_3, window_bounds = array<i64: 3, 8, 8>}, {pipeline_mode = #tpu.pipeline_mode<synchronous>, transform_indices = @transform_4, window_bounds = array<i64: 3, 8, 1>}, {pipeline_mode = #tpu.pipeline_mode<synchronous>, transform_indices = @transform_5, window_bounds = array<i64: 3, 8, 1>}, {pipeline_mode = #tpu.pipeline_mode<synchronous>, transform_indices = @transform_6, window_bounds = array<i64: 3, 9, 8, 1>}, {pipeline_mode = #tpu.pipeline_mode<synchronous>, transform_indices = @transform_7, window_bounds = array<i64: 3, 8, 1>}, {pipeline_mode = #tpu.pipeline_mode<synchronous>, transform_indices = @transform_8, window_bounds = array<i64: 3, 8, 1>}, {pipeline_mode = #tpu.pipeline_mode<synchronous>, transform_indices = @transform_9, window_bounds = array<i64: 3, 8, 8>}, {pipeline_mode = #tpu.pipeline_mode<synchronous>, transform_indices = @transform_10, window_bounds = array<i64: 3, 8, 1>}, {transform_indices = @transform_11, window_bounds = array<i64: 1, 8, 128>}, {transform_indices = @transform_12, window_bounds = array<i64: 1, 3, 8, 128>}]} {
    %0 = tpu.iota {dimensions = array<i32: 1>} : vector<8x128xi32>
    %c16_i32 = arith.constant 16 : i32
    %1 = vector.broadcast %c16_i32 : i32 to vector<8x128xi32>
    %2 = arith.cmpi slt, %0, %1 : vector<8x128xi32>
    %c112_i32 = arith.constant 112 : i32
    %3 = vector.broadcast %c112_i32 : i32 to vector<8x128xi32>
    %4 = arith.cmpi sge, %0, %3 : vector<8x128xi32>
    %c0 = arith.constant 0 : index
    %c0_0 = arith.constant 0 : index
    %5 = vector.load %arg3[%c0, %c0_0] : memref<8x128xi32, #tpu.memory_space<vmem>>, vector<8x128xi32>
    %c15_i32 = arith.constant 15 : i32
    %6 = vector.broadcast %c15_i32 : i32 to vector<8x128xi32>
    %7 = arith.cmpi sge, %5, %6 : vector<8x128xi32>
    %c14_i32 = arith.constant 14 : i32
    %8 = vector.broadcast %c14_i32 : i32 to vector<8x128xi32>
    %9 = arith.cmpi sge, %5, %8 : vector<8x128xi32>
    %c12_i32 = arith.constant 12 : i32
    %10 = vector.broadcast %c12_i32 : i32 to vector<8x128xi32>
    %11 = arith.cmpi sge, %5, %10 : vector<8x128xi32>
    %c14_i32_1 = arith.constant 14 : i32
    %12 = vector.broadcast %c14_i32_1 : i32 to vector<8x128xi32>
    %13 = arith.cmpi sge, %5, %12 : vector<8x128xi32>
    %c12_i32_2 = arith.constant 12 : i32
    %14 = vector.broadcast %c12_i32_2 : i32 to vector<8x128xi32>
    %15 = arith.cmpi sge, %5, %14 : vector<8x128xi32>
    %c8_i32 = arith.constant 8 : i32
    %16 = vector.broadcast %c8_i32 : i32 to vector<8x128xi32>
    %17 = arith.cmpi sge, %5, %16 : vector<8x128xi32>
    %c0_3 = arith.constant 0 : index
    %c0_4 = arith.constant 0 : index
    %c0_5 = arith.constant 0 : index
    %18 = vector.load %arg1[%c0_3, %c0_4, %c0_5] : memref<1x8x128xf32, #tpu.memory_space<vmem>>, vector<1x8x128xf32>
    %19 = vector.shape_cast %18 : vector<1x8x128xf32> to vector<8x128xf32>
    %c0_6 = arith.constant 0 : index
    %c0_7 = arith.constant 0 : index
    %c0_8 = arith.constant 0 : index
    %20 = vector.load %arg4[%c0_6, %c0_7, %c0_8] : memref<3x8x8xf32, #tpu.memory_space<vmem>>, vector<1x8x8xf32>
    %21 = vector.shape_cast %20 : vector<1x8x8xf32> to vector<8x8xf32>
    %cst = arith.constant dense<0.000000e+00> : vector<8x128xf32>
    %22 = tpu.matmul %21, %19, %cst {dimension_numbers = #tpu.dot_dimension_numbers<[1], [0], [0], [1], [0, 0, 1, 1], [], []>, precision = #tpu.contract_precision<fp32>} : vector<8x8xf32>, vector<8x128xf32>, vector<8x128xf32> -> vector<8x128xf32>
    %c0_9 = arith.constant 0 : index
    %c0_10 = arith.constant 0 : index
    %c0_11 = arith.constant 0 : index
    %23 = vector.load %arg5[%c0_9, %c0_10, %c0_11] : memref<3x8x1xf32, #tpu.memory_space<vmem>>, vector<1x8x1xf32>
    %24 = vector.shape_cast %23 : vector<1x8x1xf32> to vector<8x1xf32>
    %25 = vector.broadcast %24 : vector<8x1xf32> to vector<8x128xf32>
    %26 = arith.addf %22, %25 : vector<8x128xf32>
    %cst_12 = arith.constant 0.000000e+00 : f32
    %27 = vector.broadcast %cst_12 : f32 to vector<8x128xf32>
    %28 = arith.cmpf oge, %26, %27 : vector<8x128xf32>
    %c0_13 = arith.constant 0 : index
    %c0_14 = arith.constant 0 : index
    %c0_15 = arith.constant 0 : index
    %29 = vector.load %arg6[%c0_13, %c0_14, %c0_15] : memref<3x8x1xf32, #tpu.memory_space<vmem>>, vector<1x8x1xf32>
    %30 = vector.shape_cast %29 : vector<1x8x1xf32> to vector<8x1xf32>
    %31 = vector.broadcast %30 : vector<8x1xf32> to vector<8x128xf32>
    %32 = arith.mulf %31, %26 : vector<8x128xf32>
    %33 = arith.select %28, %26, %32 : vector<8x128xi1>, vector<8x128xf32>
    %c0_16 = arith.constant 0 : index
    %c0_17 = arith.constant 0 : index
    %c0_18 = arith.constant 0 : index
    %c0_19 = arith.constant 0 : index
    %34 = vector.load %arg13[%c0_16, %c0_17, %c0_18, %c0_19] : memref<1x3x8x128xf32, #tpu.memory_space<vmem>>, vector<1x1x8x128xf32>
    %35 = vector.shape_cast %34 : vector<1x1x8x128xf32> to vector<8x128xf32>
    %36 = vector.shape_cast %33 : vector<8x128xf32> to vector<1x1x8x128xf32>
    tpu.vector_store %arg13[%c0_16, %c0_17, %c0_18, %c0_19], %36 {strides = array<i32>} : memref<1x3x8x128xf32, #tpu.memory_space<vmem>>, vector<1x1x8x128xf32>,
    %c0_20 = arith.constant 0 : index
    %c0_21 = arith.constant 0 : index
    %c0_22 = arith.constant 0 : index
    %c0_23 = arith.constant 0 : index
    %37 = vector.load %arg2[%c0_20, %c0_21, %c0_22, %c0_23] : memref<1x3x8x128xf32, #tpu.memory_space<vmem>>, vector<1x1x8x128xf32>
    %38 = vector.shape_cast %37 : vector<1x1x8x128xf32> to vector<8x128xf32>
    %39 = arith.select %7, %38, %33 : vector<8x128xi1>, vector<8x128xf32>
    %c1_i32 = arith.constant 1 : i32
    %40 = tpu.dynamic_rotate %39 by %c1_i32 dim 1 : vector<8x128xf32>, i32 -> vector<8x128xf32>
    %41 = arith.select %13, %38, %33 : vector<8x128xi1>, vector<8x128xf32>
    %c2_i32 = arith.constant 2 : i32
    %42 = tpu.dynamic_rotate %41 by %c2_i32 dim 1 : vector<8x128xf32>, i32 -> vector<8x128xf32>
    %c0_24 = arith.constant 0 : index
    %c0_25 = arith.constant 0 : index
    %c0_26 = arith.constant 0 : index
    %c0_27 = arith.constant 0 : index
    %43 = vector.load %arg7[%c0_24, %c0_25, %c0_26, %c0_27] : memref<3x9x8x1xf32, #tpu.memory_space<vmem>>, vector<1x1x8x1xf32>
    %44 = vector.shape_cast %43 : vector<1x1x8x1xf32> to vector<8x1xf32>
    %c0_28 = arith.constant 0 : index
    %c1 = arith.constant 1 : index
    %c0_29 = arith.constant 0 : index
    %c0_30 = arith.constant 0 : index
    %45 = vector.load %arg7[%c0_28, %c1, %c0_29, %c0_30] : memref<3x9x8x1xf32, #tpu.memory_space<vmem>>, vector<1x1x8x1xf32>
    %46 = vector.shape_cast %45 : vector<1x1x8x1xf32> to vector<8x1xf32>
    %c0_31 = arith.constant 0 : index
    %c2 = arith.constant 2 : index
    %c0_32 = arith.constant 0 : index
    %c0_33 = arith.constant 0 : index
    %47 = vector.load %arg7[%c0_31, %c2, %c0_32, %c0_33] : memref<3x9x8x1xf32, #tpu.memory_space<vmem>>, vector<1x1x8x1xf32>
    %48 = vector.shape_cast %47 : vector<1x1x8x1xf32> to vector<8x1xf32>
    %c0_34 = arith.constant 0 : index
    %c3 = arith.constant 3 : index
    %c0_35 = arith.constant 0 : index
    %c0_36 = arith.constant 0 : index
    %49 = vector.load %arg7[%c0_34, %c3, %c0_35, %c0_36] : memref<3x9x8x1xf32, #tpu.memory_space<vmem>>, vector<1x1x8x1xf32>
    %50 = vector.shape_cast %49 : vector<1x1x8x1xf32> to vector<8x1xf32>
    %c0_37 = arith.constant 0 : index
    %c4 = arith.constant 4 : index
    %c0_38 = arith.constant 0 : index
    %c0_39 = arith.constant 0 : index
    %51 = vector.load %arg7[%c0_37, %c4, %c0_38, %c0_39] : memref<3x9x8x1xf32, #tpu.memory_space<vmem>>, vector<1x1x8x1xf32>
    %52 = vector.shape_cast %51 : vector<1x1x8x1xf32> to vector<8x1xf32>
    %c0_40 = arith.constant 0 : index
    %c5 = arith.constant 5 : index
    %c0_41 = arith.constant 0 : index
    %c0_42 = arith.constant 0 : index
    %53 = vector.load %arg7[%c0_40, %c5, %c0_41, %c0_42] : memref<3x9x8x1xf32, #tpu.memory_space<vmem>>, vector<1x1x8x1xf32>
    %54 = vector.shape_cast %53 : vector<1x1x8x1xf32> to vector<8x1xf32>
    %c0_43 = arith.constant 0 : index
    %c6 = arith.constant 6 : index
    %c0_44 = arith.constant 0 : index
    %c0_45 = arith.constant 0 : index
    %55 = vector.load %arg7[%c0_43, %c6, %c0_44, %c0_45] : memref<3x9x8x1xf32, #tpu.memory_space<vmem>>, vector<1x1x8x1xf32>
    %56 = vector.shape_cast %55 : vector<1x1x8x1xf32> to vector<8x1xf32>
    %c0_46 = arith.constant 0 : index
    %c7 = arith.constant 7 : index
    %c0_47 = arith.constant 0 : index
    %c0_48 = arith.constant 0 : index
    %57 = vector.load %arg7[%c0_46, %c7, %c0_47, %c0_48] : memref<3x9x8x1xf32, #tpu.memory_space<vmem>>, vector<1x1x8x1xf32>
    %58 = vector.shape_cast %57 : vector<1x1x8x1xf32> to vector<8x1xf32>
    %c0_49 = arith.constant 0 : index
    %c8 = arith.constant 8 : index
    %c0_50 = arith.constant 0 : index
    %c0_51 = arith.constant 0 : index
    %59 = vector.load %arg7[%c0_49, %c8, %c0_50, %c0_51] : memref<3x9x8x1xf32, #tpu.memory_space<vmem>>, vector<1x1x8x1xf32>
    %60 = vector.shape_cast %59 : vector<1x1x8x1xf32> to vector<8x1xf32>
    %61 = vector.broadcast %44 : vector<8x1xf32> to vector<8x128xf32>
    %62 = arith.mulf %42, %61 : vector<8x128xf32>
    %63 = vector.broadcast %46 : vector<8x1xf32> to vector<8x128xf32>
    %64 = arith.mulf %40, %63 : vector<8x128xf32>
    %65 = arith.addf %62, %64 : vector<8x128xf32>
    %66 = vector.broadcast %48 : vector<8x1xf32> to vector<8x128xf32>
    %67 = arith.mulf %33, %66 : vector<8x128xf32>
    %68 = arith.addf %65, %67 : vector<8x128xf32>
    %69 = vector.broadcast %50 : vector<8x1xf32> to vector<8x128xf32>
    %70 = arith.mulf %42, %69 : vector<8x128xf32>
    %71 = vector.broadcast %52 : vector<8x1xf32> to vector<8x128xf32>
    %72 = arith.mulf %40, %71 : vector<8x128xf32>
    %73 = arith.addf %70, %72 : vector<8x128xf32>
    %74 = vector.broadcast %54 : vector<8x1xf32> to vector<8x128xf32>
    %75 = arith.mulf %33, %74 : vector<8x128xf32>
    %76 = arith.addf %73, %75 : vector<8x128xf32>
    %77 = vector.broadcast %56 : vector<8x1xf32> to vector<8x128xf32>
    %78 = arith.mulf %42, %77 : vector<8x128xf32>
    %79 = vector.broadcast %58 : vector<8x1xf32> to vector<8x128xf32>
    %80 = arith.mulf %40, %79 : vector<8x128xf32>
    %81 = arith.addf %78, %80 : vector<8x128xf32>
    %82 = vector.broadcast %60 : vector<8x1xf32> to vector<8x128xf32>
    %83 = arith.mulf %33, %82 : vector<8x128xf32>
    %84 = arith.addf %81, %83 : vector<8x128xf32>
    %c16_i32_52 = arith.constant 16 : i32
    %85 = tpu.dynamic_rotate %68 by %c16_i32_52 dim 1 : vector<8x128xf32>, i32 -> vector<8x128xf32>
    %cst_53 = arith.constant 0.000000e+00 : f32
    %86 = vector.broadcast %cst_53 : f32 to vector<8x128xf32>
    %87 = arith.select %2, %86, %85 : vector<8x128xi1>, vector<8x128xf32>
    %c112_i32_54 = arith.constant 112 : i32
    %88 = tpu.dynamic_rotate %84 by %c112_i32_54 dim 1 : vector<8x128xf32>, i32 -> vector<8x128xf32>
    %cst_55 = arith.constant 0.000000e+00 : f32
    %89 = vector.broadcast %cst_55 : f32 to vector<8x128xf32>
    %90 = arith.select %4, %89, %88 : vector<8x128xi1>, vector<8x128xf32>
    %91 = arith.addf %87, %76 : vector<8x128xf32>
    %92 = arith.addf %91, %90 : vector<8x128xf32>
    %c0_56 = arith.constant 0 : index
    %c0_57 = arith.constant 0 : index
    %c0_58 = arith.constant 0 : index
    %93 = vector.load %arg8[%c0_56, %c0_57, %c0_58] : memref<3x8x1xf32, #tpu.memory_space<vmem>>, vector<1x8x1xf32>
    %94 = vector.shape_cast %93 : vector<1x8x1xf32> to vector<8x1xf32>
    %95 = vector.broadcast %94 : vector<8x1xf32> to vector<8x128xf32>
    %96 = arith.addf %92, %95 : vector<8x128xf32>
    %cst_59 = arith.constant 0.000000e+00 : f32
    %97 = vector.broadcast %cst_59 : f32 to vector<8x128xf32>
    %98 = arith.cmpf oge, %96, %97 : vector<8x128xf32>
    %c0_60 = arith.constant 0 : index
    %c0_61 = arith.constant 0 : index
    %c0_62 = arith.constant 0 : index
    %99 = vector.load %arg9[%c0_60, %c0_61, %c0_62] : memref<3x8x1xf32, #tpu.memory_space<vmem>>, vector<1x8x1xf32>
    %100 = vector.shape_cast %99 : vector<1x8x1xf32> to vector<8x1xf32>
    %101 = vector.broadcast %100 : vector<8x1xf32> to vector<8x128xf32>
    %102 = arith.mulf %101, %96 : vector<8x128xf32>
    %103 = arith.select %98, %96, %102 : vector<8x128xi1>, vector<8x128xf32>
    %c0_63 = arith.constant 0 : index
    %c0_64 = arith.constant 0 : index
    %c0_65 = arith.constant 0 : index
    %104 = vector.load %arg10[%c0_63, %c0_64, %c0_65] : memref<3x8x8xf32, #tpu.memory_space<vmem>>, vector<1x8x8xf32>
    %105 = vector.shape_cast %104 : vector<1x8x8xf32> to vector<8x8xf32>
    %cst_66 = arith.constant dense<0.000000e+00> : vector<8x128xf32>
    %106 = tpu.matmul %105, %103, %cst_66 {dimension_numbers = #tpu.dot_dimension_numbers<[1], [0], [0], [1], [0, 0, 1, 1], [], []>, precision = #tpu.contract_precision<fp32>} : vector<8x8xf32>, vector<8x128xf32>, vector<8x128xf32> -> vector<8x128xf32>
    %c0_67 = arith.constant 0 : index
    %c0_68 = arith.constant 0 : index
    %c0_69 = arith.constant 0 : index
    %107 = vector.load %arg11[%c0_67, %c0_68, %c0_69] : memref<3x8x1xf32, #tpu.memory_space<vmem>>, vector<1x8x1xf32>
    %108 = vector.shape_cast %107 : vector<1x8x1xf32> to vector<8x1xf32>
    %109 = vector.broadcast %108 : vector<8x1xf32> to vector<8x128xf32>
    %110 = arith.addf %106, %109 : vector<8x128xf32>
    %111 = arith.addf %110, %19 : vector<8x128xf32>
    %c1_70 = arith.constant 1 : index
    %c0_71 = arith.constant 0 : index
    %c0_72 = arith.constant 0 : index
    %112 = vector.load %arg4[%c1_70, %c0_71, %c0_72] : memref<3x8x8xf32, #tpu.memory_space<vmem>>, vector<1x8x8xf32>
    %113 = vector.shape_cast %112 : vector<1x8x8xf32> to vector<8x8xf32>
    %cst_73 = arith.constant dense<0.000000e+00> : vector<8x128xf32>
    %114 = tpu.matmul %113, %111, %cst_73 {dimension_numbers = #tpu.dot_dimension_numbers<[1], [0], [0], [1], [0, 0, 1, 1], [], []>, precision = #tpu.contract_precision<fp32>} : vector<8x8xf32>, vector<8x128xf32>, vector<8x128xf32> -> vector<8x128xf32>
    %c1_74 = arith.constant 1 : index
    %c0_75 = arith.constant 0 : index
    %c0_76 = arith.constant 0 : index
    %115 = vector.load %arg5[%c1_74, %c0_75, %c0_76] : memref<3x8x1xf32, #tpu.memory_space<vmem>>, vector<1x8x1xf32>
    %116 = vector.shape_cast %115 : vector<1x8x1xf32> to vector<8x1xf32>
    %117 = vector.broadcast %116 : vector<8x1xf32> to vector<8x128xf32>
    %118 = arith.addf %114, %117 : vector<8x128xf32>
    %cst_77 = arith.constant 0.000000e+00 : f32
    %119 = vector.broadcast %cst_77 : f32 to vector<8x128xf32>
    %120 = arith.cmpf oge, %118, %119 : vector<8x128xf32>
    %c1_78 = arith.constant 1 : index
    %c0_79 = arith.constant 0 : index
    %c0_80 = arith.constant 0 : index
    %121 = vector.load %arg6[%c1_78, %c0_79, %c0_80] : memref<3x8x1xf32, #tpu.memory_space<vmem>>, vector<1x8x1xf32>
    %122 = vector.shape_cast %121 : vector<1x8x1xf32> to vector<8x1xf32>
    %123 = vector.broadcast %122 : vector<8x1xf32> to vector<8x128xf32>
    %124 = arith.mulf %123, %118 : vector<8x128xf32>
    %125 = arith.select %120, %118, %124 : vector<8x128xi1>, vector<8x128xf32>
    %c0_81 = arith.constant 0 : index
    %c1_82 = arith.constant 1 : index
    %c0_83 = arith.constant 0 : index
    %c0_84 = arith.constant 0 : index
    %126 = vector.load %arg13[%c0_81, %c1_82, %c0_83, %c0_84] : memref<1x3x8x128xf32, #tpu.memory_space<vmem>>, vector<1x1x8x128xf32>
    %127 = vector.shape_cast %126 : vector<1x1x8x128xf32> to vector<8x128xf32>
    %128 = vector.shape_cast %125 : vector<8x128xf32> to vector<1x1x8x128xf32>
    tpu.vector_store %arg13[%c0_81, %c1_82, %c0_83, %c0_84], %128 {strides = array<i32>} : memref<1x3x8x128xf32, #tpu.memory_space<vmem>>, vector<1x1x8x128xf32>,
    %c0_85 = arith.constant 0 : index
    %c1_86 = arith.constant 1 : index
    %c0_87 = arith.constant 0 : index
    %c0_88 = arith.constant 0 : index
    %129 = vector.load %arg2[%c0_85, %c1_86, %c0_87, %c0_88] : memref<1x3x8x128xf32, #tpu.memory_space<vmem>>, vector<1x1x8x128xf32>
    %130 = vector.shape_cast %129 : vector<1x1x8x128xf32> to vector<8x128xf32>
    %131 = arith.select %9, %130, %125 : vector<8x128xi1>, vector<8x128xf32>
    %c2_i32_89 = arith.constant 2 : i32
    %132 = tpu.dynamic_rotate %131 by %c2_i32_89 dim 1 : vector<8x128xf32>, i32 -> vector<8x128xf32>
    %133 = arith.select %15, %130, %125 : vector<8x128xi1>, vector<8x128xf32>
    %c4_i32 = arith.constant 4 : i32
    %134 = tpu.dynamic_rotate %133 by %c4_i32 dim 1 : vector<8x128xf32>, i32 -> vector<8x128xf32>
    %c1_90 = arith.constant 1 : index
    %c0_91 = arith.constant 0 : index
    %c0_92 = arith.constant 0 : index
    %c0_93 = arith.constant 0 : index
    %135 = vector.load %arg7[%c1_90, %c0_91, %c0_92, %c0_93] : memref<3x9x8x1xf32, #tpu.memory_space<vmem>>, vector<1x1x8x1xf32>
    %136 = vector.shape_cast %135 : vector<1x1x8x1xf32> to vector<8x1xf32>
    %c1_94 = arith.constant 1 : index
    %c1_95 = arith.constant 1 : index
    %c0_96 = arith.constant 0 : index
    %c0_97 = arith.constant 0 : index
    %137 = vector.load %arg7[%c1_94, %c1_95, %c0_96, %c0_97] : memref<3x9x8x1xf32, #tpu.memory_space<vmem>>, vector<1x1x8x1xf32>
    %138 = vector.shape_cast %137 : vector<1x1x8x1xf32> to vector<8x1xf32>
    %c1_98 = arith.constant 1 : index
    %c2_99 = arith.constant 2 : index
    %c0_100 = arith.constant 0 : index
    %c0_101 = arith.constant 0 : index
    %139 = vector.load %arg7[%c1_98, %c2_99, %c0_100, %c0_101] : memref<3x9x8x1xf32, #tpu.memory_space<vmem>>, vector<1x1x8x1xf32>
    %140 = vector.shape_cast %139 : vector<1x1x8x1xf32> to vector<8x1xf32>
    %c1_102 = arith.constant 1 : index
    %c3_103 = arith.constant 3 : index
    %c0_104 = arith.constant 0 : index
    %c0_105 = arith.constant 0 : index
    %141 = vector.load %arg7[%c1_102, %c3_103, %c0_104, %c0_105] : memref<3x9x8x1xf32, #tpu.memory_space<vmem>>, vector<1x1x8x1xf32>
    %142 = vector.shape_cast %141 : vector<1x1x8x1xf32> to vector<8x1xf32>
    %c1_106 = arith.constant 1 : index
    %c4_107 = arith.constant 4 : index
    %c0_108 = arith.constant 0 : index
    %c0_109 = arith.constant 0 : index
    %143 = vector.load %arg7[%c1_106, %c4_107, %c0_108, %c0_109] : memref<3x9x8x1xf32, #tpu.memory_space<vmem>>, vector<1x1x8x1xf32>
    %144 = vector.shape_cast %143 : vector<1x1x8x1xf32> to vector<8x1xf32>
    %c1_110 = arith.constant 1 : index
    %c5_111 = arith.constant 5 : index
    %c0_112 = arith.constant 0 : index
    %c0_113 = arith.constant 0 : index
    %145 = vector.load %arg7[%c1_110, %c5_111, %c0_112, %c0_113] : memref<3x9x8x1xf32, #tpu.memory_space<vmem>>, vector<1x1x8x1xf32>
    %146 = vector.shape_cast %145 : vector<1x1x8x1xf32> to vector<8x1xf32>
    %c1_114 = arith.constant 1 : index
    %c6_115 = arith.constant 6 : index
    %c0_116 = arith.constant 0 : index
    %c0_117 = arith.constant 0 : index
    %147 = vector.load %arg7[%c1_114, %c6_115, %c0_116, %c0_117] : memref<3x9x8x1xf32, #tpu.memory_space<vmem>>, vector<1x1x8x1xf32>
    %148 = vector.shape_cast %147 : vector<1x1x8x1xf32> to vector<8x1xf32>
    %c1_118 = arith.constant 1 : index
    %c7_119 = arith.constant 7 : index
    %c0_120 = arith.constant 0 : index
    %c0_121 = arith.constant 0 : index
    %149 = vector.load %arg7[%c1_118, %c7_119, %c0_120, %c0_121] : memref<3x9x8x1xf32, #tpu.memory_space<vmem>>, vector<1x1x8x1xf32>
    %150 = vector.shape_cast %149 : vector<1x1x8x1xf32> to vector<8x1xf32>
    %c1_122 = arith.constant 1 : index
    %c8_123 = arith.constant 8 : index
    %c0_124 = arith.constant 0 : index
    %c0_125 = arith.constant 0 : index
    %151 = vector.load %arg7[%c1_122, %c8_123, %c0_124, %c0_125] : memref<3x9x8x1xf32, #tpu.memory_space<vmem>>, vector<1x1x8x1xf32>
    %152 = vector.shape_cast %151 : vector<1x1x8x1xf32> to vector<8x1xf32>
    %153 = vector.broadcast %136 : vector<8x1xf32> to vector<8x128xf32>
    %154 = arith.mulf %134, %153 : vector<8x128xf32>
    %155 = vector.broadcast %138 : vector<8x1xf32> to vector<8x128xf32>
    %156 = arith.mulf %132, %155 : vector<8x128xf32>
    %157 = arith.addf %154, %156 : vector<8x128xf32>
    %158 = vector.broadcast %140 : vector<8x1xf32> to vector<8x128xf32>
    %159 = arith.mulf %125, %158 : vector<8x128xf32>
    %160 = arith.addf %157, %159 : vector<8x128xf32>
    %161 = vector.broadcast %142 : vector<8x1xf32> to vector<8x128xf32>
    %162 = arith.mulf %134, %161 : vector<8x128xf32>
    %163 = vector.broadcast %144 : vector<8x1xf32> to vector<8x128xf32>
    %164 = arith.mulf %132, %163 : vector<8x128xf32>
    %165 = arith.addf %162, %164 : vector<8x128xf32>
    %166 = vector.broadcast %146 : vector<8x1xf32> to vector<8x128xf32>
    %167 = arith.mulf %125, %166 : vector<8x128xf32>
    %168 = arith.addf %165, %167 : vector<8x128xf32>
    %169 = vector.broadcast %148 : vector<8x1xf32> to vector<8x128xf32>
    %170 = arith.mulf %134, %169 : vector<8x128xf32>
    %171 = vector.broadcast %150 : vector<8x1xf32> to vector<8x128xf32>
    %172 = arith.mulf %132, %171 : vector<8x128xf32>
    %173 = arith.addf %170, %172 : vector<8x128xf32>
    %174 = vector.broadcast %152 : vector<8x1xf32> to vector<8x128xf32>
    %175 = arith.mulf %125, %174 : vector<8x128xf32>
    %176 = arith.addf %173, %175 : vector<8x128xf32>
    %c16_i32_126 = arith.constant 16 : i32
    %177 = tpu.dynamic_rotate %160 by %c16_i32_126 dim 1 : vector<8x128xf32>, i32 -> vector<8x128xf32>
    %cst_127 = arith.constant 0.000000e+00 : f32
    %178 = vector.broadcast %cst_127 : f32 to vector<8x128xf32>
    %179 = arith.select %2, %178, %177 : vector<8x128xi1>, vector<8x128xf32>
    %c112_i32_128 = arith.constant 112 : i32
    %180 = tpu.dynamic_rotate %176 by %c112_i32_128 dim 1 : vector<8x128xf32>, i32 -> vector<8x128xf32>
    %cst_129 = arith.constant 0.000000e+00 : f32
    %181 = vector.broadcast %cst_129 : f32 to vector<8x128xf32>
    %182 = arith.select %4, %181, %180 : vector<8x128xi1>, vector<8x128xf32>
    %183 = arith.addf %179, %168 : vector<8x128xf32>
    %184 = arith.addf %183, %182 : vector<8x128xf32>
    %c1_130 = arith.constant 1 : index
    %c0_131 = arith.constant 0 : index
    %c0_132 = arith.constant 0 : index
    %185 = vector.load %arg8[%c1_130, %c0_131, %c0_132] : memref<3x8x1xf32, #tpu.memory_space<vmem>>, vector<1x8x1xf32>
    %186 = vector.shape_cast %185 : vector<1x8x1xf32> to vector<8x1xf32>
    %187 = vector.broadcast %186 : vector<8x1xf32> to vector<8x128xf32>
    %188 = arith.addf %184, %187 : vector<8x128xf32>
    %cst_133 = arith.constant 0.000000e+00 : f32
    %189 = vector.broadcast %cst_133 : f32 to vector<8x128xf32>
    %190 = arith.cmpf oge, %188, %189 : vector<8x128xf32>
    %c1_134 = arith.constant 1 : index
    %c0_135 = arith.constant 0 : index
    %c0_136 = arith.constant 0 : index
    %191 = vector.load %arg9[%c1_134, %c0_135, %c0_136] : memref<3x8x1xf32, #tpu.memory_space<vmem>>, vector<1x8x1xf32>
    %192 = vector.shape_cast %191 : vector<1x8x1xf32> to vector<8x1xf32>
    %193 = vector.broadcast %192 : vector<8x1xf32> to vector<8x128xf32>
    %194 = arith.mulf %193, %188 : vector<8x128xf32>
    %195 = arith.select %190, %188, %194 : vector<8x128xi1>, vector<8x128xf32>
    %c1_137 = arith.constant 1 : index
    %c0_138 = arith.constant 0 : index
    %c0_139 = arith.constant 0 : index
    %196 = vector.load %arg10[%c1_137, %c0_138, %c0_139] : memref<3x8x8xf32, #tpu.memory_space<vmem>>, vector<1x8x8xf32>
    %197 = vector.shape_cast %196 : vector<1x8x8xf32> to vector<8x8xf32>
    %cst_140 = arith.constant dense<0.000000e+00> : vector<8x128xf32>
    %198 = tpu.matmul %197, %195, %cst_140 {dimension_numbers = #tpu.dot_dimension_numbers<[1], [0], [0], [1], [0, 0, 1, 1], [], []>, precision = #tpu.contract_precision<fp32>} : vector<8x8xf32>, vector<8x128xf32>, vector<8x128xf32> -> vector<8x128xf32>
    %c1_141 = arith.constant 1 : index
    %c0_142 = arith.constant 0 : index
    %c0_143 = arith.constant 0 : index
    %199 = vector.load %arg11[%c1_141, %c0_142, %c0_143] : memref<3x8x1xf32, #tpu.memory_space<vmem>>, vector<1x8x1xf32>
    %200 = vector.shape_cast %199 : vector<1x8x1xf32> to vector<8x1xf32>
    %201 = vector.broadcast %200 : vector<8x1xf32> to vector<8x128xf32>
    %202 = arith.addf %198, %201 : vector<8x128xf32>
    %203 = arith.addf %202, %111 : vector<8x128xf32>
    %c2_144 = arith.constant 2 : index
    %c0_145 = arith.constant 0 : index
    %c0_146 = arith.constant 0 : index
    %204 = vector.load %arg4[%c2_144, %c0_145, %c0_146] : memref<3x8x8xf32, #tpu.memory_space<vmem>>, vector<1x8x8xf32>
    %205 = vector.shape_cast %204 : vector<1x8x8xf32> to vector<8x8xf32>
    %cst_147 = arith.constant dense<0.000000e+00> : vector<8x128xf32>
    %206 = tpu.matmul %205, %203, %cst_147 {dimension_numbers = #tpu.dot_dimension_numbers<[1], [0], [0], [1], [0, 0, 1, 1], [], []>, precision = #tpu.contract_precision<fp32>} : vector<8x8xf32>, vector<8x128xf32>, vector<8x128xf32> -> vector<8x128xf32>
    %c2_148 = arith.constant 2 : index
    %c0_149 = arith.constant 0 : index
    %c0_150 = arith.constant 0 : index
    %207 = vector.load %arg5[%c2_148, %c0_149, %c0_150] : memref<3x8x1xf32, #tpu.memory_space<vmem>>, vector<1x8x1xf32>
    %208 = vector.shape_cast %207 : vector<1x8x1xf32> to vector<8x1xf32>
    %209 = vector.broadcast %208 : vector<8x1xf32> to vector<8x128xf32>
    %210 = arith.addf %206, %209 : vector<8x128xf32>
    %cst_151 = arith.constant 0.000000e+00 : f32
    %211 = vector.broadcast %cst_151 : f32 to vector<8x128xf32>
    %212 = arith.cmpf oge, %210, %211 : vector<8x128xf32>
    %c2_152 = arith.constant 2 : index
    %c0_153 = arith.constant 0 : index
    %c0_154 = arith.constant 0 : index
    %213 = vector.load %arg6[%c2_152, %c0_153, %c0_154] : memref<3x8x1xf32, #tpu.memory_space<vmem>>, vector<1x8x1xf32>
    %214 = vector.shape_cast %213 : vector<1x8x1xf32> to vector<8x1xf32>
    %215 = vector.broadcast %214 : vector<8x1xf32> to vector<8x128xf32>
    %216 = arith.mulf %215, %210 : vector<8x128xf32>
    %217 = arith.select %212, %210, %216 : vector<8x128xi1>, vector<8x128xf32>
    %c0_155 = arith.constant 0 : index
    %c2_156 = arith.constant 2 : index
    %c0_157 = arith.constant 0 : index
    %c0_158 = arith.constant 0 : index
    %218 = vector.load %arg13[%c0_155, %c2_156, %c0_157, %c0_158] : memref<1x3x8x128xf32, #tpu.memory_space<vmem>>, vector<1x1x8x128xf32>
    %219 = vector.shape_cast %218 : vector<1x1x8x128xf32> to vector<8x128xf32>
    %220 = vector.shape_cast %217 : vector<8x128xf32> to vector<1x1x8x128xf32>
    tpu.vector_store %arg13[%c0_155, %c2_156, %c0_157, %c0_158], %220 {strides = array<i32>} : memref<1x3x8x128xf32, #tpu.memory_space<vmem>>, vector<1x1x8x128xf32>,
    %c0_159 = arith.constant 0 : index
    %c2_160 = arith.constant 2 : index
    %c0_161 = arith.constant 0 : index
    %c0_162 = arith.constant 0 : index
    %221 = vector.load %arg2[%c0_159, %c2_160, %c0_161, %c0_162] : memref<1x3x8x128xf32, #tpu.memory_space<vmem>>, vector<1x1x8x128xf32>
    %222 = vector.shape_cast %221 : vector<1x1x8x128xf32> to vector<8x128xf32>
    %223 = arith.select %11, %222, %217 : vector<8x128xi1>, vector<8x128xf32>
    %c4_i32_163 = arith.constant 4 : i32
    %224 = tpu.dynamic_rotate %223 by %c4_i32_163 dim 1 : vector<8x128xf32>, i32 -> vector<8x128xf32>
    %225 = arith.select %17, %222, %217 : vector<8x128xi1>, vector<8x128xf32>
    %c8_i32_164 = arith.constant 8 : i32
    %226 = tpu.dynamic_rotate %225 by %c8_i32_164 dim 1 : vector<8x128xf32>, i32 -> vector<8x128xf32>
    %c2_165 = arith.constant 2 : index
    %c0_166 = arith.constant 0 : index
    %c0_167 = arith.constant 0 : index
    %c0_168 = arith.constant 0 : index
    %227 = vector.load %arg7[%c2_165, %c0_166, %c0_167, %c0_168] : memref<3x9x8x1xf32, #tpu.memory_space<vmem>>, vector<1x1x8x1xf32>
    %228 = vector.shape_cast %227 : vector<1x1x8x1xf32> to vector<8x1xf32>
    %c2_169 = arith.constant 2 : index
    %c1_170 = arith.constant 1 : index
    %c0_171 = arith.constant 0 : index
    %c0_172 = arith.constant 0 : index
    %229 = vector.load %arg7[%c2_169, %c1_170, %c0_171, %c0_172] : memref<3x9x8x1xf32, #tpu.memory_space<vmem>>, vector<1x1x8x1xf32>
    %230 = vector.shape_cast %229 : vector<1x1x8x1xf32> to vector<8x1xf32>
    %c2_173 = arith.constant 2 : index
    %c2_174 = arith.constant 2 : index
    %c0_175 = arith.constant 0 : index
    %c0_176 = arith.constant 0 : index
    %231 = vector.load %arg7[%c2_173, %c2_174, %c0_175, %c0_176] : memref<3x9x8x1xf32, #tpu.memory_space<vmem>>, vector<1x1x8x1xf32>
    %232 = vector.shape_cast %231 : vector<1x1x8x1xf32> to vector<8x1xf32>
    %c2_177 = arith.constant 2 : index
    %c3_178 = arith.constant 3 : index
    %c0_179 = arith.constant 0 : index
    %c0_180 = arith.constant 0 : index
    %233 = vector.load %arg7[%c2_177, %c3_178, %c0_179, %c0_180] : memref<3x9x8x1xf32, #tpu.memory_space<vmem>>, vector<1x1x8x1xf32>
    %234 = vector.shape_cast %233 : vector<1x1x8x1xf32> to vector<8x1xf32>
    %c2_181 = arith.constant 2 : index
    %c4_182 = arith.constant 4 : index
    %c0_183 = arith.constant 0 : index
    %c0_184 = arith.constant 0 : index
    %235 = vector.load %arg7[%c2_181, %c4_182, %c0_183, %c0_184] : memref<3x9x8x1xf32, #tpu.memory_space<vmem>>, vector<1x1x8x1xf32>
    %236 = vector.shape_cast %235 : vector<1x1x8x1xf32> to vector<8x1xf32>
    %c2_185 = arith.constant 2 : index
    %c5_186 = arith.constant 5 : index
    %c0_187 = arith.constant 0 : index
    %c0_188 = arith.constant 0 : index
    %237 = vector.load %arg7[%c2_185, %c5_186, %c0_187, %c0_188] : memref<3x9x8x1xf32, #tpu.memory_space<vmem>>, vector<1x1x8x1xf32>
    %238 = vector.shape_cast %237 : vector<1x1x8x1xf32> to vector<8x1xf32>
    %c2_189 = arith.constant 2 : index
    %c6_190 = arith.constant 6 : index
    %c0_191 = arith.constant 0 : index
    %c0_192 = arith.constant 0 : index
    %239 = vector.load %arg7[%c2_189, %c6_190, %c0_191, %c0_192] : memref<3x9x8x1xf32, #tpu.memory_space<vmem>>, vector<1x1x8x1xf32>
    %240 = vector.shape_cast %239 : vector<1x1x8x1xf32> to vector<8x1xf32>
    %c2_193 = arith.constant 2 : index
    %c7_194 = arith.constant 7 : index
    %c0_195 = arith.constant 0 : index
    %c0_196 = arith.constant 0 : index
    %241 = vector.load %arg7[%c2_193, %c7_194, %c0_195, %c0_196] : memref<3x9x8x1xf32, #tpu.memory_space<vmem>>, vector<1x1x8x1xf32>
    %242 = vector.shape_cast %241 : vector<1x1x8x1xf32> to vector<8x1xf32>
    %c2_197 = arith.constant 2 : index
    %c8_198 = arith.constant 8 : index
    %c0_199 = arith.constant 0 : index
    %c0_200 = arith.constant 0 : index
    %243 = vector.load %arg7[%c2_197, %c8_198, %c0_199, %c0_200] : memref<3x9x8x1xf32, #tpu.memory_space<vmem>>, vector<1x1x8x1xf32>
    %244 = vector.shape_cast %243 : vector<1x1x8x1xf32> to vector<8x1xf32>
    %245 = vector.broadcast %228 : vector<8x1xf32> to vector<8x128xf32>
    %246 = arith.mulf %226, %245 : vector<8x128xf32>
    %247 = vector.broadcast %230 : vector<8x1xf32> to vector<8x128xf32>
    %248 = arith.mulf %224, %247 : vector<8x128xf32>
    %249 = arith.addf %246, %248 : vector<8x128xf32>
    %250 = vector.broadcast %232 : vector<8x1xf32> to vector<8x128xf32>
    %251 = arith.mulf %217, %250 : vector<8x128xf32>
    %252 = arith.addf %249, %251 : vector<8x128xf32>
    %253 = vector.broadcast %234 : vector<8x1xf32> to vector<8x128xf32>
    %254 = arith.mulf %226, %253 : vector<8x128xf32>
    %255 = vector.broadcast %236 : vector<8x1xf32> to vector<8x128xf32>
    %256 = arith.mulf %224, %255 : vector<8x128xf32>
    %257 = arith.addf %254, %256 : vector<8x128xf32>
    %258 = vector.broadcast %238 : vector<8x1xf32> to vector<8x128xf32>
    %259 = arith.mulf %217, %258 : vector<8x128xf32>
    %260 = arith.addf %257, %259 : vector<8x128xf32>
    %261 = vector.broadcast %240 : vector<8x1xf32> to vector<8x128xf32>
    %262 = arith.mulf %226, %261 : vector<8x128xf32>
    %263 = vector.broadcast %242 : vector<8x1xf32> to vector<8x128xf32>
    %264 = arith.mulf %224, %263 : vector<8x128xf32>
    %265 = arith.addf %262, %264 : vector<8x128xf32>
    %266 = vector.broadcast %244 : vector<8x1xf32> to vector<8x128xf32>
    %267 = arith.mulf %217, %266 : vector<8x128xf32>
    %268 = arith.addf %265, %267 : vector<8x128xf32>
    %c16_i32_201 = arith.constant 16 : i32
    %269 = tpu.dynamic_rotate %252 by %c16_i32_201 dim 1 : vector<8x128xf32>, i32 -> vector<8x128xf32>
    %cst_202 = arith.constant 0.000000e+00 : f32
    %270 = vector.broadcast %cst_202 : f32 to vector<8x128xf32>
    %271 = arith.select %2, %270, %269 : vector<8x128xi1>, vector<8x128xf32>
    %c112_i32_203 = arith.constant 112 : i32
    %272 = tpu.dynamic_rotate %268 by %c112_i32_203 dim 1 : vector<8x128xf32>, i32 -> vector<8x128xf32>
    %cst_204 = arith.constant 0.000000e+00 : f32
    %273 = vector.broadcast %cst_204 : f32 to vector<8x128xf32>
    %274 = arith.select %4, %273, %272 : vector<8x128xi1>, vector<8x128xf32>
    %275 = arith.addf %271, %260 : vector<8x128xf32>
    %276 = arith.addf %275, %274 : vector<8x128xf32>
    %c2_205 = arith.constant 2 : index
    %c0_206 = arith.constant 0 : index
    %c0_207 = arith.constant 0 : index
    %277 = vector.load %arg8[%c2_205, %c0_206, %c0_207] : memref<3x8x1xf32, #tpu.memory_space<vmem>>, vector<1x8x1xf32>
    %278 = vector.shape_cast %277 : vector<1x8x1xf32> to vector<8x1xf32>
    %279 = vector.broadcast %278 : vector<8x1xf32> to vector<8x128xf32>
    %280 = arith.addf %276, %279 : vector<8x128xf32>
    %cst_208 = arith.constant 0.000000e+00 : f32
    %281 = vector.broadcast %cst_208 : f32 to vector<8x128xf32>
    %282 = arith.cmpf oge, %280, %281 : vector<8x128xf32>
    %c2_209 = arith.constant 2 : index
    %c0_210 = arith.constant 0 : index
    %c0_211 = arith.constant 0 : index
    %283 = vector.load %arg9[%c2_209, %c0_210, %c0_211] : memref<3x8x1xf32, #tpu.memory_space<vmem>>, vector<1x8x1xf32>
    %284 = vector.shape_cast %283 : vector<1x8x1xf32> to vector<8x1xf32>
    %285 = vector.broadcast %284 : vector<8x1xf32> to vector<8x128xf32>
    %286 = arith.mulf %285, %280 : vector<8x128xf32>
    %287 = arith.select %282, %280, %286 : vector<8x128xi1>, vector<8x128xf32>
    %c2_212 = arith.constant 2 : index
    %c0_213 = arith.constant 0 : index
    %c0_214 = arith.constant 0 : index
    %288 = vector.load %arg10[%c2_212, %c0_213, %c0_214] : memref<3x8x8xf32, #tpu.memory_space<vmem>>, vector<1x8x8xf32>
    %289 = vector.shape_cast %288 : vector<1x8x8xf32> to vector<8x8xf32>
    %cst_215 = arith.constant dense<0.000000e+00> : vector<8x128xf32>
    %290 = tpu.matmul %289, %287, %cst_215 {dimension_numbers = #tpu.dot_dimension_numbers<[1], [0], [0], [1], [0, 0, 1, 1], [], []>, precision = #tpu.contract_precision<fp32>} : vector<8x8xf32>, vector<8x128xf32>, vector<8x128xf32> -> vector<8x128xf32>
    %c2_216 = arith.constant 2 : index
    %c0_217 = arith.constant 0 : index
    %c0_218 = arith.constant 0 : index
    %291 = vector.load %arg11[%c2_216, %c0_217, %c0_218] : memref<3x8x1xf32, #tpu.memory_space<vmem>>, vector<1x8x1xf32>
    %292 = vector.shape_cast %291 : vector<1x8x1xf32> to vector<8x1xf32>
    %293 = vector.broadcast %292 : vector<8x1xf32> to vector<8x128xf32>
    %294 = arith.addf %290, %293 : vector<8x128xf32>
    %295 = arith.addf %294, %203 : vector<8x128xf32>
    %c0_219 = arith.constant 0 : index
    %c0_220 = arith.constant 0 : index
    %c0_221 = arith.constant 0 : index
    %296 = vector.load %arg12[%c0_219, %c0_220, %c0_221] : memref<1x8x128xf32, #tpu.memory_space<vmem>>, vector<1x8x128xf32>
    %297 = vector.shape_cast %296 : vector<1x8x128xf32> to vector<8x128xf32>
    %298 = vector.shape_cast %295 : vector<8x128xf32> to vector<1x8x128xf32>
    tpu.vector_store %arg12[%c0_219, %c0_220, %c0_221], %298 {strides = array<i32>} : memref<1x8x128xf32, #tpu.memory_space<vmem>>, vector<1x8x128xf32>,
    return
  }
  func.func @transform_0(%arg0: i32) -> (i32, i32, i32) {
    %c0_i32 = arith.constant 0 : i32
    %c0_i32_0 = arith.constant 0 : i32
    %c0_i32_1 = arith.constant 0 : i32
    return %arg0, %c0_i32, %c0_i32_0 : i32, i32, i32
  }
  func.func @transform_1(%arg0: i32) -> (i32, i32, i32, i32) {
    %c0_i32 = arith.constant 0 : i32
    %c0_i32_0 = arith.constant 0 : i32
    %c0_i32_1 = arith.constant 0 : i32
    %c0_i32_2 = arith.constant 0 : i32
    return %arg0, %c0_i32, %c0_i32_0, %c0_i32_1 : i32, i32, i32, i32
  }
  func.func @transform_2(%arg0: i32) -> (i32, i32) {
    %c0_i32 = arith.constant 0 : i32
    %c0_i32_0 = arith.constant 0 : i32
    %c0_i32_1 = arith.constant 0 : i32
    return %c0_i32, %c0_i32_0 : i32, i32
  }
  func.func @transform_3(%arg0: i32) -> (i32, i32, i32) {
    %c0_i32 = arith.constant 0 : i32
    %c0_i32_0 = arith.constant 0 : i32
    %c0_i32_1 = arith.constant 0 : i32
    %c0_i32_2 = arith.constant 0 : i32
    return %c0_i32, %c0_i32_0, %c0_i32_1 : i32, i32, i32
  }
  func.func @transform_4(%arg0: i32) -> (i32, i32, i32) {
    %c0_i32 = arith.constant 0 : i32
    %c0_i32_0 = arith.constant 0 : i32
    %c0_i32_1 = arith.constant 0 : i32
    %c0_i32_2 = arith.constant 0 : i32
    return %c0_i32, %c0_i32_0, %c0_i32_1 : i32, i32, i32
  }
  func.func @transform_5(%arg0: i32) -> (i32, i32, i32) {
    %c0_i32 = arith.constant 0 : i32
    %c0_i32_0 = arith.constant 0 : i32
    %c0_i32_1 = arith.constant 0 : i32
    %c0_i32_2 = arith.constant 0 : i32
    return %c0_i32, %c0_i32_0, %c0_i32_1 : i32, i32, i32
  }
  func.func @transform_6(%arg0: i32) -> (i32, i32, i32, i32) {
    %c0_i32 = arith.constant 0 : i32
    %c0_i32_0 = arith.constant 0 : i32
    %c0_i32_1 = arith.constant 0 : i32
    %c0_i32_2 = arith.constant 0 : i32
    %c0_i32_3 = arith.constant 0 : i32
    return %c0_i32, %c0_i32_0, %c0_i32_1, %c0_i32_2 : i32, i32, i32, i32
  }
  func.func @transform_7(%arg0: i32) -> (i32, i32, i32) {
    %c0_i32 = arith.constant 0 : i32
    %c0_i32_0 = arith.constant 0 : i32
    %c0_i32_1 = arith.constant 0 : i32
    %c0_i32_2 = arith.constant 0 : i32
    return %c0_i32, %c0_i32_0, %c0_i32_1 : i32, i32, i32
  }
  func.func @transform_8(%arg0: i32) -> (i32, i32, i32) {
    %c0_i32 = arith.constant 0 : i32
    %c0_i32_0 = arith.constant 0 : i32
    %c0_i32_1 = arith.constant 0 : i32
    %c0_i32_2 = arith.constant 0 : i32
    return %c0_i32, %c0_i32_0, %c0_i32_1 : i32, i32, i32
  }
  func.func @transform_9(%arg0: i32) -> (i32, i32, i32) {
    %c0_i32 = arith.constant 0 : i32
    %c0_i32_0 = arith.constant 0 : i32
    %c0_i32_1 = arith.constant 0 : i32
    %c0_i32_2 = arith.constant 0 : i32
    return %c0_i32, %c0_i32_0, %c0_i32_1 : i32, i32, i32
  }
  func.func @transform_10(%arg0: i32) -> (i32, i32, i32) {
    %c0_i32 = arith.constant 0 : i32
    %c0_i32_0 = arith.constant 0 : i32
    %c0_i32_1 = arith.constant 0 : i32
    %c0_i32_2 = arith.constant 0 : i32
    return %c0_i32, %c0_i32_0, %c0_i32_1 : i32, i32, i32
  }
  func.func @transform_11(%arg0: i32) -> (i32, i32, i32) {
    %c0_i32 = arith.constant 0 : i32
    %c0_i32_0 = arith.constant 0 : i32
    %c0_i32_1 = arith.constant 0 : i32
    return %arg0, %c0_i32, %c0_i32_0 : i32, i32, i32
  }
  func.func @transform_12(%arg0: i32) -> (i32, i32, i32, i32) {
    %c0_i32 = arith.constant 0 : i32
    %c0_i32_0 = arith.constant 0 : i32
    %c0_i32_1 = arith.constant 0 : i32
    %c0_i32_2 = arith.constant 0 : i32
    return %arg0, %c0_i32, %c0_i32_0, %c0_i32_1 : i32, i32, i32, i32
  }
}

</mosaic_0001>

<llo_original>
// kernel: tpu_custom_call.1
$region0: #{tpu_custom_call.1}
  #allocation0 [shape = 'u32[]', space=smem, size = 0x4, offset = 0x4, fixed_abs, tag = 'smem constant byte address 0x4 - core index']
  #allocation1 [shape = 'u32[144,128]{1,0:T(1,128)}', space=vmem, size = 0x12000, scoped, tag = 'internal scratch']
  %s0 = inlined_call_operand.vmem [shape: f32[2,8,128], index: 0, kind: input, shape index: {}]
  %s1 = inlined_call_operand.vmem [shape: f32[2,3,8,128], index: 1, kind: input, shape index: {}]
  %s2 = inlined_call_operand.vmem [shape: s32[8,128], index: 2, kind: input, shape index: {}]
  %s3 = inlined_call_operand.vmem [shape: f32[3,8,8], index: 3, kind: input, shape index: {}]
  %s4 = inlined_call_operand.vmem [shape: f32[3,8,1], index: 4, kind: input, shape index: {}]
  %s5 = inlined_call_operand.vmem [shape: f32[3,8,1], index: 5, kind: input, shape index: {}]
  %s6 = inlined_call_operand.vmem [shape: f32[3,9,8,1], index: 6, kind: input, shape index: {}]
  %s7 = inlined_call_operand.vmem [shape: f32[3,8,1], index: 7, kind: input, shape index: {}]
  %s8 = inlined_call_operand.vmem [shape: f32[3,8,1], index: 8, kind: input, shape index: {}]
  %s9 = inlined_call_operand.vmem [shape: f32[3,8,8], index: 9, kind: input, shape index: {}]
  %s10 = inlined_call_operand.vmem [shape: f32[3,8,1], index: 10, kind: input, shape index: {}]
  %s11 = inlined_call_operand.hbm [shape: f32[2,8,128], index: 11, kind: output, shape index: {0}]
  %s12 = inlined_call_operand.hbm [shape: f32[2,3,8,128], index: 12, kind: output, shape index: {1}]
  %13 = xla_tuple %s11, %s12
  %s14 = sld [smem:[#allocation0]]
  $region85: #{tpu_custom_call.1} parent=0
    _
  %s16 = ssub.s32 1, %s14
  %s17 = scalar_select 0, %s16, %s14
  $region1: #{tpu_custom_call.1} parent=0
    #allocation2 [shape = 'u8[8192]{0}', space=vmem, size = 0x2000, scoped, tag = 'output window, operand 0']
    #allocation3 [shape = 's32[2]{0}', space=sflag, size = 0x8, scoped, tag = 'scoped memory for tpu_custom_call.1']
    #allocation4 [shape = 'u8[24576]{0}', space=vmem, size = 0x6000, scoped, tag = 'output window, operand 1']
    #allocation5 [shape = 's32[2]{0}', space=sflag, size = 0x8, scoped, tag = 'scoped memory for tpu_custom_call.1']
    %18 = vsyncpa [#allocation3], 0
    %s19 = scalar_lea.sflag [#allocation3], 1
    %20 = vsyncpa %s19, 0
    %21 = vsyncpa [#allocation5], 0
    %s22 = scalar_lea.sflag [#allocation5], 1
    %23 = vsyncpa %s22, 0
    loop: start=0, step=1, limit=4
    $region2: #{tpu_custom_call.1} parent=1 // loop_pre_header
      _
    $region3: #{tpu_custom_call.1} parent=1 // loop_header
      %s25 = sphi 0, %s29
      %p26 = scmp.ge.s32.totalorder %s25, 4
      %s35 = sphi 0, %s37
      %s38 = sphi 0, %s35
      %s39 = sphi 0, %s38
      %s55 = sphi 0, %s39
      %s61 = sphi 0, %s63
      %s64 = sphi 0, %s61
      %s65 = sphi 0, %s64
      %s81 = sphi 0, %s65
      %s85 = sphi 0, %s85
      %s87 = sphi 0, %s85
      %s88 = sphi 0, %s87
      %s102 = sphi 0, %s88
      %s106 = sphi 0, %s106
      %s108 = sphi 0, %s106
      %s109 = sphi 0, %s108
      %s123 = sphi 0, %s109
      %s127 = sphi 0, %s127
      %s129 = sphi 0, %s127
      %s130 = sphi 0, %s129
      %s144 = sphi 0, %s130
      %s148 = sphi 0, %s148
      %s150 = sphi 0, %s148
      %s151 = sphi 0, %s150
      %s165 = sphi 0, %s151
      %s169 = sphi 0, %s169
      %s171 = sphi 0, %s169
      %s172 = sphi 0, %s171
      %s186 = sphi 0, %s172
      %s190 = sphi 0, %s190
      %s192 = sphi 0, %s190
      %s193 = sphi 0, %s192
      %s207 = sphi 0, %s193
      %s211 = sphi 0, %s211
      %s213 = sphi 0, %s211
      %s214 = sphi 0, %s213
      %s228 = sphi 0, %s214
      %s232 = sphi 0, %s232
      %s234 = sphi 0, %s232
      %s235 = sphi 0, %s234
      %s249 = sphi 0, %s235
      %s253 = sphi 0, %s253
      %s255 = sphi 0, %s253
      %s256 = sphi 0, %s255
      %s270 = sphi 0, %s256
      %s276 = sphi 0, %s278
      %s279 = sphi 0, %s276
      %s280 = sphi 0, %s279
      %s296 = sphi 0, %s280
      %s302 = sphi 0, %s304
      %s305 = sphi 0, %s302
      %s306 = sphi 0, %s305
      %s322 = sphi 0, %s306
    $region4: #{tpu_custom_call.1} parent=1 // loop_header_branch
      %28 = sbr.rel (%p26) target = $region8
    $region5: #{tpu_custom_call.1} parent=1 // loop_body
      %s30 = ssub.s32 %s25, 1
      %s31 = ssub.s32 %s25, 2
      %s32 = sadd.s32 %s25, 1
      %s33 = ssub.s32 %s25, %s32
      %p34 = scmp.eq.s32.totalorder %s33, 0
      %s36 = sadd.s32 %s35, 1
      %s37 = scalar_select %p34, %s35, %s36
      %p40 = pneg %p34
      %p41 = scmp.eq.s32.totalorder %s25, 1
      %p42 = por %p40, %p41
      %p43 = scmp.ne.s32.totalorder %s35, %s38
      %p44 = scmp.eq.s32.totalorder %s25, 0
      %p45 = por %p43, %p44
      %p46 = scmp.ne.s32.totalorder %s35, %s38
      %p47 = scmp.eq.s32.totalorder %s30, 1
      %p48 = por %p46, %p47
      %p49 = scmp.ne.s32.totalorder %s38, %s39
      %p50 = scmp.eq.s32.totalorder %s30, 0
      %p51 = por %p49, %p50
      %p52 = scmp.ne.s32.totalorder %s38, %s39
      %p53 = scmp.eq.s32.totalorder %s31, 1
      %p54 = por %p52, %p53
      %p56 = scmp.ne.s32.totalorder %s39, %s55
      %p57 = scmp.eq.s32.totalorder %s31, 0
      %p58 = por %p56, %p57
      %s59 = ssub.s32 %s25, %s32
      %p60 = scmp.eq.s32.totalorder %s59, 0
      %s62 = sadd.s32 %s61, 1
      %s63 = scalar_select %p60, %s61, %s62
      %p66 = pneg %p60
      %p67 = scmp.eq.s32.totalorder %s25, 1
      %p68 = por %p66, %p67
      %p69 = scmp.ne.s32.totalorder %s61, %s64
      %p70 = scmp.eq.s32.totalorder %s25, 0
      %p71 = por %p69, %p70
      %p72 = scmp.ne.s32.totalorder %s61, %s64
      %p73 = scmp.eq.s32.totalorder %s30, 1
      %p74 = por %p72, %p73
      %p75 = scmp.ne.s32.totalorder %s64, %s65
      %p76 = scmp.eq.s32.totalorder %s30, 0
      %p77 = por %p75, %p76
      %p78 = scmp.ne.s32.totalorder %s64, %s65
      %p79 = scmp.eq.s32.totalorder %s31, 1
      %p80 = por %p78, %p79
      %p82 = scmp.ne.s32.totalorder %s65, %s81
      %p83 = scmp.eq.s32.totalorder %s31, 0
      %p84 = por %p82, %p83
      %s86 = sadd.s32 %s85, 1
      %p89 = scmp.eq.s32.totalorder %s25, 1
      %p90 = scmp.ne.s32.totalorder %s85, %s87
      %p91 = scmp.eq.s32.totalorder %s25, 0
      %p92 = por %p90, %p91
      %p93 = scmp.ne.s32.totalorder %s85, %s87
      %p94 = scmp.eq.s32.totalorder %s30, 1
      %p95 = por %p93, %p94
      %p96 = scmp.ne.s32.totalorder %s87, %s88
      %p97 = scmp.eq.s32.totalorder %s30, 0
      %p98 = por %p96, %p97
      %p99 = scmp.ne.s32.totalorder %s87, %s88
      %p100 = scmp.eq.s32.totalorder %s31, 1
      %p101 = por %p99, %p100
      %p103 = scmp.ne.s32.totalorder %s88, %s102
      %p104 = scmp.eq.s32.totalorder %s31, 0
      %p105 = por %p103, %p104
      %s107 = sadd.s32 %s106, 1
      %p110 = scmp.eq.s32.totalorder %s25, 1
      %p111 = scmp.ne.s32.totalorder %s106, %s108
      %p112 = scmp.eq.s32.totalorder %s25, 0
      %p113 = por %p111, %p112
      %p114 = scmp.ne.s32.totalorder %s106, %s108
      %p115 = scmp.eq.s32.totalorder %s30, 1
      %p116 = por %p114, %p115
      %p117 = scmp.ne.s32.totalorder %s108, %s109
      %p118 = scmp.eq.s32.totalorder %s30, 0
      %p119 = por %p117, %p118
      %p120 = scmp.ne.s32.totalorder %s108, %s109
      %p121 = scmp.eq.s32.totalorder %s31, 1
      %p122 = por %p120, %p121
      %p124 = scmp.ne.s32.totalorder %s109, %s123
      %p125 = scmp.eq.s32.totalorder %s31, 0
      %p126 = por %p124, %p125
      %s128 = sadd.s32 %s127, 1
      %p131 = scmp.eq.s32.totalorder %s25, 1
      %p132 = scmp.ne.s32.totalorder %s127, %s129
      %p133 = scmp.eq.s32.totalorder %s25, 0
      %p134 = por %p132, %p133
      %p135 = scmp.ne.s32.totalorder %s127, %s129
      %p136 = scmp.eq.s32.totalorder %s30, 1
      %p137 = por %p135, %p136
      %p138 = scmp.ne.s32.totalorder %s129, %s130
      %p139 = scmp.eq.s32.totalorder %s30, 0
      %p140 = por %p138, %p139
      %p141 = scmp.ne.s32.totalorder %s129, %s130
      %p142 = scmp.eq.s32.totalorder %s31, 1
      %p143 = por %p141, %p142
      %p145 = scmp.ne.s32.totalorder %s130, %s144
      %p146 = scmp.eq.s32.totalorder %s31, 0
      %p147 = por %p145, %p146
      %s149 = sadd.s32 %s148, 1
      %p152 = scmp.eq.s32.totalorder %s25, 1
      %p153 = scmp.ne.s32.totalorder %s148, %s150
      %p154 = scmp.eq.s32.totalorder %s25, 0
      %p155 = por %p153, %p154
      %p156 = scmp.ne.s32.totalorder %s148, %s150
      %p157 = scmp.eq.s32.totalorder %s30, 1
      %p158 = por %p156, %p157
      %p159 = scmp.ne.s32.totalorder %s150, %s151
      %p160 = scmp.eq.s32.totalorder %s30, 0
      %p161 = por %p159, %p160
      %p162 = scmp.ne.s32.totalorder %s150, %s151
      %p163 = scmp.eq.s32.totalorder %s31, 1
      %p164 = por %p162, %p163
      %p166 = scmp.ne.s32.totalorder %s151, %s165
      %p167 = scmp.eq.s32.totalorder %s31, 0
      %p168 = por %p166, %p167
      %s170 = sadd.s32 %s169, 1
      %p173 = scmp.eq.s32.totalorder %s25, 1
      %p174 = scmp.ne.s32.totalorder %s169, %s171
      %p175 = scmp.eq.s32.totalorder %s25, 0
      %p176 = por %p174, %p175
      %p177 = scmp.ne.s32.totalorder %s169, %s171
      %p178 = scmp.eq.s32.totalorder %s30, 1
      %p179 = por %p177, %p178
      %p180 = scmp.ne.s32.totalorder %s171, %s172
      %p181 = scmp.eq.s32.totalorder %s30, 0
      %p182 = por %p180, %p181
      %p183 = scmp.ne.s32.totalorder %s171, %s172
      %p184 = scmp.eq.s32.totalorder %s31, 1
      %p185 = por %p183, %p184
      %p187 = scmp.ne.s32.totalorder %s172, %s186
      %p188 = scmp.eq.s32.totalorder %s31, 0
      %p189 = por %p187, %p188
      %s191 = sadd.s32 %s190, 1
      %p194 = scmp.eq.s32.totalorder %s25, 1
      %p195 = scmp.ne.s32.totalorder %s190, %s192
      %p196 = scmp.eq.s32.totalorder %s25, 0
      %p197 = por %p195, %p196
      %p198 = scmp.ne.s32.totalorder %s190, %s192
      %p199 = scmp.eq.s32.totalorder %s30, 1
      %p200 = por %p198, %p199
      %p201 = scmp.ne.s32.totalorder %s192, %s193
      %p202 = scmp.eq.s32.totalorder %s30, 0
      %p203 = por %p201, %p202
      %p204 = scmp.ne.s32.totalorder %s192, %s193
      %p205 = scmp.eq.s32.totalorder %s31, 1
      %p206 = por %p204, %p205
      %p208 = scmp.ne.s32.totalorder %s193, %s207
      %p209 = scmp.eq.s32.totalorder %s31, 0
      %p210 = por %p208, %p209
      %s212 = sadd.s32 %s211, 1
      %p215 = scmp.eq.s32.totalorder %s25, 1
      %p216 = scmp.ne.s32.totalorder %s211, %s213
      %p217 = scmp.eq.s32.totalorder %s25, 0
      %p218 = por %p216, %p217
      %p219 = scmp.ne.s32.totalorder %s211, %s213
      %p220 = scmp.eq.s32.totalorder %s30, 1
      %p221 = por %p219, %p220
      %p222 = scmp.ne.s32.totalorder %s213, %s214
      %p223 = scmp.eq.s32.totalorder %s30, 0
      %p224 = por %p222, %p223
      %p225 = scmp.ne.s32.totalorder %s213, %s214
      %p226 = scmp.eq.s32.totalorder %s31, 1
      %p227 = por %p225, %p226
      %p229 = scmp.ne.s32.totalorder %s214, %s228
      %p230 = scmp.eq.s32.totalorder %s31, 0
      %p231 = por %p229, %p230
      %s233 = sadd.s32 %s232, 1
      %p236 = scmp.eq.s32.totalorder %s25, 1
      %p237 = scmp.ne.s32.totalorder %s232, %s234
      %p238 = scmp.eq.s32.totalorder %s25, 0
      %p239 = por %p237, %p238
      %p240 = scmp.ne.s32.totalorder %s232, %s234
      %p241 = scmp.eq.s32.totalorder %s30, 1
      %p242 = por %p240, %p241
      %p243 = scmp.ne.s32.totalorder %s234, %s235
      %p244 = scmp.eq.s32.totalorder %s30, 0
      %p245 = por %p243, %p244
      %p246 = scmp.ne.s32.totalorder %s234, %s235
      %p247 = scmp.eq.s32.totalorder %s31, 1
      %p248 = por %p246, %p247
      %p250 = scmp.ne.s32.totalorder %s235, %s249
      %p251 = scmp.eq.s32.totalorder %s31, 0
      %p252 = por %p250, %p251
      %s254 = sadd.s32 %s253, 1
      %p257 = scmp.eq.s32.totalorder %s25, 1
      %p258 = scmp.ne.s32.totalorder %s253, %s255
      %p259 = scmp.eq.s32.totalorder %s25, 0
      %p260 = por %p258, %p259
      %p261 = scmp.ne.s32.totalorder %s253, %s255
      %p262 = scmp.eq.s32.totalorder %s30, 1
      %p263 = por %p261, %p262
      %p264 = scmp.ne.s32.totalorder %s255, %s256
      %p265 = scmp.eq.s32.totalorder %s30, 0
      %p266 = por %p264, %p265
      %p267 = scmp.ne.s32.totalorder %s255, %s256
      %p268 = scmp.eq.s32.totalorder %s31, 1
      %p269 = por %p267, %p268
      %p271 = scmp.ne.s32.totalorder %s256, %s270
      %p272 = scmp.eq.s32.totalorder %s31, 0
      %p273 = por %p271, %p272
      %s274 = ssub.s32 %s25, %s32
      %p275 = scmp.eq.s32.totalorder %s274, 0
      %s277 = sadd.s32 %s276, 1
      %s278 = scalar_select %p275, %s276, %s277
      %p281 = pneg %p275
      %p282 = scmp.eq.s32.totalorder %s25, 1
      %p283 = por %p281, %p282
      %p284 = scmp.ne.s32.totalorder %s276, %s279
      %p285 = scmp.eq.s32.totalorder %s25, 0
      %p286 = por %p284, %p285
      %p287 = scmp.ne.s32.totalorder %s276, %s279
      %p288 = scmp.eq.s32.totalorder %s30, 1
      %p289 = por %p287, %p288
      %p290 = scmp.ne.s32.totalorder %s279, %s280
      %p291 = scmp.eq.s32.totalorder %s30, 0
      %p292 = por %p290, %p291
      %p293 = scmp.ne.s32.totalorder %s279, %s280
      %p294 = scmp.eq.s32.totalorder %s31, 1
      %p295 = por %p293, %p294
      %p297 = scmp.ne.s32.totalorder %s280, %s296
      %p298 = scmp.eq.s32.totalorder %s31, 0
      %p299 = por %p297, %p298
      %s300 = ssub.s32 %s25, %s32
      %p301 = scmp.eq.s32.totalorder %s300, 0
      %s303 = sadd.s32 %s302, 1
      %s304 = scalar_select %p301, %s302, %s303
      %p307 = pneg %p301
      %p308 = scmp.eq.s32.totalorder %s25, 1
      %p309 = por %p307, %p308
      %p310 = scmp.ne.s32.totalorder %s302, %s305
      %p311 = scmp.eq.s32.totalorder %s25, 0
      %p312 = por %p310, %p311
      %p313 = scmp.ne.s32.totalorder %s302, %s305
      %p314 = scmp.eq.s32.totalorder %s30, 1
      %p315 = por %p313, %p314
      %p316 = scmp.ne.s32.totalorder %s305, %s306
      %p317 = scmp.eq.s32.totalorder %s30, 0
      %p318 = por %p316, %p317
      %p319 = scmp.ne.s32.totalorder %s305, %s306
      %p320 = scmp.eq.s32.totalorder %s31, 1
      %p321 = por %p319, %p320
      %p323 = scmp.ne.s32.totalorder %s306, %s322
      %p324 = scmp.eq.s32.totalorder %s31, 0
      %p325 = por %p323, %p324
      %p326 = scmp.le.s32.totalorder 1, %s25
      %p327 = scmp.lt.s32.totalorder %s25, 3
      %p328 = pnand %p326, %p327
      %p329 = pneg %p328
      // Predicated region
      $region9: #{tpu_custom_call.1} parent=5 // pred_check
        _
      $region10: #{tpu_custom_call.1} parent=5 // pred_check_branch
        %331 = sbr.rel (%p328) target = $region12
      $region11: #{tpu_custom_call.1} parent=5 // pred_region
        %s332 = ssub.s32 %s25, 1
        // Predicated region
        $region13: #{tpu_custom_call.1} parent=11 // pred_check
          %p333 = pneg %p98
        $region14: #{tpu_custom_call.1} parent=11 // pred_check_branch
          %335 = sbr.rel (%p333) target = $region16
        $region15: #{tpu_custom_call.1} parent=11 // pred_region
          _
        $region16: #{tpu_custom_call.1} parent=11 // pred_fallthru
          _
        // Predicated region
        $region17: #{tpu_custom_call.1} parent=11 // pred_check
          %p336 = pneg %p119
        $region18: #{tpu_custom_call.1} parent=11 // pred_check_branch
          %338 = sbr.rel (%p336) target = $region20
        $region19: #{tpu_custom_call.1} parent=11 // pred_region
          _
        $region20: #{tpu_custom_call.1} parent=11 // pred_fallthru
          _
        // Predicated region
        $region21: #{tpu_custom_call.1} parent=11 // pred_check
          %p339 = pneg %p140
        $region22: #{tpu_custom_call.1} parent=11 // pred_check_branch
          %341 = sbr.rel (%p339) target = $region24
        $region23: #{tpu_custom_call.1} parent=11 // pred_region
          _
        $region24: #{tpu_custom_call.1} parent=11 // pred_fallthru
          _
        // Predicated region
        $region25: #{tpu_custom_call.1} parent=11 // pred_check
          %p342 = pneg %p161
        $region26: #{tpu_custom_call.1} parent=11 // pred_check_branch
          %344 = sbr.rel (%p342) target = $region28
        $region27: #{tpu_custom_call.1} parent=11 // pred_region
          _
        $region28: #{tpu_custom_call.1} parent=11 // pred_fallthru
          _
        // Predicated region
        $region29: #{tpu_custom_call.1} parent=11 // pred_check
          %p345 = pneg %p182
        $region30: #{tpu_custom_call.1} parent=11 // pred_check_branch
          %347 = sbr.rel (%p345) target = $region32
        $region31: #{tpu_custom_call.1} parent=11 // pred_region
          _
        $region32: #{tpu_custom_call.1} parent=11 // pred_fallthru
          _
        // Predicated region
        $region33: #{tpu_custom_call.1} parent=11 // pred_check
          %p348 = pneg %p203
        $region34: #{tpu_custom_call.1} parent=11 // pred_check_branch
          %350 = sbr.rel (%p348) target = $region36
        $region35: #{tpu_custom_call.1} parent=11 // pred_region
          _
        $region36: #{tpu_custom_call.1} parent=11 // pred_fallthru
          _
        // Predicated region
        $region37: #{tpu_custom_call.1} parent=11 // pred_check
          %p351 = pneg %p224
        $region38: #{tpu_custom_call.1} parent=11 // pred_check_branch
          %353 = sbr.rel (%p351) target = $region40
        $region39: #{tpu_custom_call.1} parent=11 // pred_region
          _
        $region40: #{tpu_custom_call.1} parent=11 // pred_fallthru
          _
        // Predicated region
        $region41: #{tpu_custom_call.1} parent=11 // pred_check
          %p354 = pneg %p245
        $region42: #{tpu_custom_call.1} parent=11 // pred_check_branch
          %356 = sbr.rel (%p354) target = $region44
        $region43: #{tpu_custom_call.1} parent=11 // pred_region
          _
        $region44: #{tpu_custom_call.1} parent=11 // pred_fallthru
          _
        // Predicated region
        $region45: #{tpu_custom_call.1} parent=11 // pred_check
          %p357 = pneg %p266
        $region46: #{tpu_custom_call.1} parent=11 // pred_check_branch
          %359 = sbr.rel (%p357) target = $region48
        $region47: #{tpu_custom_call.1} parent=11 // pred_region
          _
        $region48: #{tpu_custom_call.1} parent=11 // pred_fallthru
          _
      $region12: #{tpu_custom_call.1} parent=5 // pred_fallthru
        _
      %p360 = scmp.lt.s32.totalorder %s25, 2
      // Predicated region
      $region49: #{tpu_custom_call.1} parent=5 // pred_check
        %p361 = pneg %p360
      $region50: #{tpu_custom_call.1} parent=5 // pred_check_branch
        %363 = sbr.rel (%p361) target = $region52
      $region51: #{tpu_custom_call.1} parent=5 // pred_region
        // Predicated region
        $region53: #{tpu_custom_call.1} parent=51 // pred_check
          %p364 = pneg %p45
        $region54: #{tpu_custom_call.1} parent=51 // pred_check_branch
          %366 = sbr.rel (%p364) target = $region56
        $region55: #{tpu_custom_call.1} parent=51 // pred_region
          %p367 = scmp.lt.s32.totalorder %s25, 1
          %s368 = scalar_select %p367, %s25, 1
          %s369 = smul.addr %s368, 8
          %s370 = scalar_lea.vmem %s0, %s369
        $region56: #{tpu_custom_call.1} parent=51 // pred_fallthru
          _
        // Predicated region
        $region57: #{tpu_custom_call.1} parent=51 // pred_check
          %p371 = pneg %p71
        $region58: #{tpu_custom_call.1} parent=51 // pred_check_branch
          %373 = sbr.rel (%p371) target = $region60
        $region59: #{tpu_custom_call.1} parent=51 // pred_region
          %p374 = scmp.lt.s32.totalorder %s25, 1
          %s375 = scalar_select %p374, %s25, 1
          %s376 = smul.addr %s375, 3
          %s377 = smul.addr %s376, 8
          %s378 = scalar_lea.vmem %s1, %s377
        $region60: #{tpu_custom_call.1} parent=51 // pred_fallthru
          _
      $region52: #{tpu_custom_call.1} parent=5 // pred_fallthru
        _
      %p379 = scmp.le.s32.totalorder 1, %s25
      %p380 = scmp.lt.s32.totalorder %s25, 3
      %p381 = pnand %p379, %p380
      %p382 = pneg %p381
      // Predicated region
      $region61: #{tpu_custom_call.1} parent=5 // pred_check
        _
      $region62: #{tpu_custom_call.1} parent=5 // pred_check_branch
        %384 = sbr.rel (%p381) target = $region64
      $region63: #{tpu_custom_call.1} parent=5 // pred_region
        %s385 = ssub.s32 %s25, 1
        %p386 = scmp.lt.s32.totalorder %s30, 1
        %s387 = scalar_select %p386, %s30, 1
        %s388 = smul.addr %s387, 8
        %s389 = scalar_lea.vmem %s0, %s388
        %p390 = pneg %p51
        %p391 = pneg %p48
        %p392 = scmp.lt.s32.totalorder %s30, 1
        %s393 = scalar_select %p392, %s30, 1
        %s394 = smul.addr %s393, 3
        %s395 = smul.addr %s394, 8
        %s396 = scalar_lea.vmem %s1, %s395
        %p397 = pneg %p77
        %p398 = pneg %p74
        %p399 = pneg %p98
        %p400 = pneg %p95
        %p401 = pneg %p119
        %p402 = pneg %p116
        %p403 = pneg %p140
        %p404 = pneg %p137
        %p405 = pneg %p161
        %p406 = pneg %p158
        %p407 = pneg %p182
        %p408 = pneg %p179
        %p409 = pneg %p203
        %p410 = pneg %p200
        %p411 = pneg %p224
        %p412 = pneg %p221
        %p413 = pneg %p245
        %p414 = pneg %p242
        %p415 = pneg %p266
        %p416 = pneg %p263
        %p417 = pneg %p292
        %p418 = pneg %p289
        %s419 = sand.u32 %s279, 1
        %s420 = scalar_lea.sflag [#allocation3], %s419
        %s421 = sand.u32 %s279, 1
        %s422 = smul.addr %s421, 8
        %s423 = scalar_lea.vmem [#allocation2], %s422
        %p424 = pneg %p318
        %p425 = pneg %p315
        %s426 = sand.u32 %s305, 1
        %s427 = scalar_lea.sflag [#allocation5], %s426
        %s428 = sand.u32 %s305, 1
        %s429 = smul.addr %s428, 24
        %s430 = scalar_lea.vmem [#allocation4], %s429
        %p431 = scmp.lt.s32.totalorder %s30, 1
        %s432 = scalar_select %p431, %s30, 1
        %s433 = smul.addr %s432, 8
        %s434 = scalar_lea.vmem %s0, %s433
        %p435 = scmp.lt.s32.totalorder %s30, 1
        %s436 = scalar_select %p435, %s30, 1
        %s437 = smul.addr %s436, 3
        %s438 = smul.addr %s437, 8
        %s439 = scalar_lea.vmem %s1, %s438
        %v440 = vlaneseq
        %v441 = vand.u32 %v440, 127
        %vm442 = vcmp.lt.s32.totalorder %v441, 16
        %vm443 = vcmp.ge.s32.totalorder %v441, 112
        %v444 = vld [vmem:[%s2] sm:$0xff]
        %vm445 = vcmp.ge.s32.totalorder %v444, 15
        %vm446 = vcmp.ge.s32.totalorder %v444, 14
        %vm447 = vcmp.ge.s32.totalorder %v444, 12
        %vm448 = vcmp.ge.s32.totalorder %v444, 8
        %v449 = vld [vmem:[%s434] sm:$0xff]
        %v450 = vld [vmem:[%s3] sm:$0xff]
        %v451 = vld [vmem:[%s4] sm:$0xff]
        %453 = vset.pattern.permute.xlu0 0
        %454 = vperm.xlu0 %453, %v451
        %v455 = vpop.permute.xlu0 %454
        %vm457 = vcmask 64512
        %v459 = vsel %vm457, %v450, 0
        %461 = vmatprep.subr.mxu0 0.0
        %v462 = vand.u32 %v449, 4294901760
        %463 = vmatpush1.msra.mxu0 %v462
        %464 = vmatprep.subr.mxu0 0.0
        %465 = vmatpush1.msra.mxu0 0.0
        %466 = vmatprep.subr.mxu0 0.0
        %467 = vmatpush1.msra.mxu0 0.0
        %468 = vmatprep.subr.mxu0 0.0
        %469 = vmatpush1.msra.mxu0 0.0
        %470 = vmatprep.subr.mxu0 0.0
        %471 = vmatpush1.msra.mxu0 0.0
        %472 = vmatprep.subr.mxu0 0.0
        %473 = vmatpush1.msra.mxu0 0.0
        %474 = vmatprep.subr.mxu0 0.0
        %475 = vmatpush1.msra.mxu0 0.0
        %476 = vmatprep.subr.mxu0 0.0
        %477 = vmatpush1.msra.mxu0 0.0
        %478 = vmatprep.subr.mxu0 0.0
        %479 = vmatpush1.msra.mxu0 0.0
        %480 = vmatprep.subr.mxu0 0.0
        %481 = vmatpush1.msra.mxu0 0.0
        %482 = vmatprep.subr.mxu0 0.0
        %483 = vmatpush1.msra.mxu0 0.0
        %484 = vmatprep.subr.mxu0 0.0
        %485 = vmatpush1.msra.mxu0 0.0
        %486 = vmatprep.subr.mxu0 0.0
        %487 = vmatpush1.msra.mxu0 0.0
        %488 = vmatprep.subr.mxu0 0.0
        %489 = vmatpush1.msra.mxu0 0.0
        %490 = vmatprep.subr.mxu0 0.0
        %491 = vmatpush1.msra.mxu0 0.0
        %492 = vmatprep.subr.mxu0 0.0
        %493 = vmatpush1.msra.mxu0 0.0
        %494 = vmatprep.subr.mxu0 0.0
        %495 = vmatpush1.msra.mxu0 0.0
        %496 = vmatprep.subr.mxu0 0.0
        %497 = vmatpush1.msra.mxu0 0.0
        %498 = vmatprep.subr.mxu0 0.0
        %499 = vmatpush1.msra.mxu0 0.0
        %500 = vmatprep.subr.mxu0 0.0
        %501 = vmatpush1.msra.mxu0 0.0
        %502 = vmatprep.subr.mxu0 0.0
        %503 = vmatpush1.msra.mxu0 0.0
        %504 = vmatprep.subr.mxu0 0.0
        %505 = vmatpush1.msra.mxu0 0.0
        %506 = vmatprep.subr.mxu0 0.0
        %507 = vmatpush1.msra.mxu0 0.0
        %508 = vmatprep.subr.mxu0 0.0
        %509 = vmatpush1.msra.mxu0 0.0
        %510 = vmatprep.subr.mxu0 0.0
        %511 = vmatpush1.msra.mxu0 0.0
        %512 = vmatprep.subr.mxu0 0.0
        %513 = vmatpush1.msra.mxu0 0.0
        %514 = vmatprep.subr.mxu0 0.0
        %515 = vmatpush1.msra.mxu0 0.0
        %516 = vmatprep.subr.mxu0 0.0
        %517 = vmatpush1.msra.mxu0 0.0
        %518 = vmatprep.subr.mxu0 0.0
        %519 = vmatpush1.msra.mxu0 0.0
        %520 = vmatprep.subr.mxu0 0.0
        %521 = vmatpush1.msra.mxu0 0.0
        %522 = vmatprep.subr.mxu0 0.0
        %523 = vmatpush1.msra.mxu0 0.0
        %524 = vmatprep.subr.mxu0 0.0
        %525 = vmatpush1.msra.mxu0 0.0
        %526 = vmatprep.mubr.f32.mxu0 0.0
        %v527 = vand.u32 %v459, 4294901760
        %v528 = vsub.f32 %v459, %v527
        %v529 = vand.u32 %v528, 4294901760
        %v530 = vsub.f32 %v528, %v529
        %v531 = vand.u32 %v530, 4294901760
        %532 = vmatmul.mubr.f32.gmra.mrb[0].mxu0 %v531
        %v533 = vpop.f32.mrb[0].mxu0
        %v534 = vadd.f32 %v455, %v533
        %v535 = vpop.f32.mrb[0].mxu0
        %536 = vdwg.mxu0
        %537 = vmatprep.subr.mxu0 0.0
        %v538 = vand.u32 %v449, 4294901760
        %v539 = vsub.f32 %v449, %v538
        %v540 = vand.u32 %v539, 4294901760
        %v541 = vsub.f32 %v539, %v540
        %v542 = vand.u32 %v541, 4294901760
        %543 = vmatpush1.msra.mxu0 %v542
        %544 = vmatprep.subr.mxu0 0.0
        %545 = vmatpush1.msra.mxu0 0.0
        %546 = vmatprep.subr.mxu0 0.0
        %547 = vmatpush1.msra.mxu0 0.0
        %548 = vmatprep.subr.mxu0 0.0
        %549 = vmatpush1.msra.mxu0 0.0
        %550 = vmatprep.subr.mxu0 0.0
        %551 = vmatpush1.msra.mxu0 0.0
        %552 = vmatprep.subr.mxu0 0.0
        %553 = vmatpush1.msra.mxu0 0.0
        %554 = vmatprep.subr.mxu0 0.0
        %555 = vmatpush1.msra.mxu0 0.0
        %556 = vmatprep.subr.mxu0 0.0
        %557 = vmatpush1.msra.mxu0 0.0
        %558 = vmatprep.subr.mxu0 0.0
        %559 = vmatpush1.msra.mxu0 0.0
        %560 = vmatprep.subr.mxu0 0.0
        %561 = vmatpush1.msra.mxu0 0.0
        %562 = vmatprep.subr.mxu0 0.0
        %563 = vmatpush1.msra.mxu0 0.0
        %564 = vmatprep.subr.mxu0 0.0
        %565 = vmatpush1.msra.mxu0 0.0
        %566 = vmatprep.subr.mxu0 0.0
        %567 = vmatpush1.msra.mxu0 0.0
        %568 = vmatprep.subr.mxu0 0.0
        %569 = vmatpush1.msra.mxu0 0.0
        %570 = vmatprep.subr.mxu0 0.0
        %571 = vmatpush1.msra.mxu0 0.0
        %572 = vmatprep.subr.mxu0 0.0
        %573 = vmatpush1.msra.mxu0 0.0
        %574 = vmatprep.subr.mxu0 0.0
        %575 = vmatpush1.msra.mxu0 0.0
        %576 = vmatprep.subr.mxu0 0.0
        %577 = vmatpush1.msra.mxu0 0.0
        %578 = vmatprep.subr.mxu0 0.0
        %579 = vmatpush1.msra.mxu0 0.0
        %580 = vmatprep.subr.mxu0 0.0
        %581 = vmatpush1.msra.mxu0 0.0
        %582 = vmatprep.subr.mxu0 0.0
        %583 = vmatpush1.msra.mxu0 0.0
        %584 = vmatprep.subr.mxu0 0.0
        %585 = vmatpush1.msra.mxu0 0.0
        %586 = vmatprep.subr.mxu0 0.0
        %587 = vmatpush1.msra.mxu0 0.0
        %588 = vmatprep.subr.mxu0 0.0
        %589 = vmatpush1.msra.mxu0 0.0
        %590 = vmatprep.subr.mxu0 0.0
        %591 = vmatpush1.msra.mxu0 0.0
        %592 = vmatprep.subr.mxu0 0.0
        %593 = vmatpush1.msra.mxu0 0.0
        %594 = vmatprep.subr.mxu0 0.0
        %595 = vmatpush1.msra.mxu0 0.0
        %596 = vmatprep.subr.mxu0 0.0
        %597 = vmatpush1.msra.mxu0 0.0
        %598 = vmatprep.subr.mxu0 0.0
        %599 = vmatpush1.msra.mxu0 0.0
        %600 = vmatprep.subr.mxu0 0.0
        %601 = vmatpush1.msra.mxu0 0.0
        %602 = vmatprep.subr.mxu0 0.0
        %603 = vmatpush1.msra.mxu0 0.0
        %604 = vmatprep.subr.mxu0 0.0
        %605 = vmatpush1.msra.mxu0 0.0
        %606 = vmatprep.mubr.f32.mxu0 0.0
        %v607 = vand.u32 %v459, 4294901760
        %608 = vmatmul.mubr.f32.gmra.mrb[0].mxu0 %v607
        %v609 = vpop.f32.mrb[0].mxu0
        %v610 = vadd.f32 %v534, %v609
        %v611 = vpop.f32.mrb[0].mxu0
        %612 = vdwg.mxu0
        %613 = vmatprep.subr.mxu0 0.0
        %v614 = vand.u32 %v449, 4294901760
        %v615 = vsub.f32 %v449, %v614
        %616 = vmatpush1.msra.mxu0 %v615
        %617 = vmatprep.subr.mxu0 0.0
        %618 = vmatpush1.msra.mxu0 0.0
        %619 = vmatprep.subr.mxu0 0.0
        %620 = vmatpush1.msra.mxu0 0.0
        %621 = vmatprep.subr.mxu0 0.0
        %622 = vmatpush1.msra.mxu0 0.0
        %623 = vmatprep.subr.mxu0 0.0
        %624 = vmatpush1.msra.mxu0 0.0
        %625 = vmatprep.subr.mxu0 0.0
        %626 = vmatpush1.msra.mxu0 0.0
        %627 = vmatprep.subr.mxu0 0.0
        %628 = vmatpush1.msra.mxu0 0.0
        %629 = vmatprep.subr.mxu0 0.0
        %630 = vmatpush1.msra.mxu0 0.0
        %631 = vmatprep.subr.mxu0 0.0
        %632 = vmatpush1.msra.mxu0 0.0
        %633 = vmatprep.subr.mxu0 0.0
        %634 = vmatpush1.msra.mxu0 0.0
        %635 = vmatprep.subr.mxu0 0.0
        %636 = vmatpush1.msra.mxu0 0.0
        %637 = vmatprep.subr.mxu0 0.0
        %638 = vmatpush1.msra.mxu0 0.0
        %639 = vmatprep.subr.mxu0 0.0
        %640 = vmatpush1.msra.mxu0 0.0
        %641 = vmatprep.subr.mxu0 0.0
        %642 = vmatpush1.msra.mxu0 0.0
        %643 = vmatprep.subr.mxu0 0.0
        %644 = vmatpush1.msra.mxu0 0.0
        %645 = vmatprep.subr.mxu0 0.0
        %646 = vmatpush1.msra.mxu0 0.0
        %647 = vmatprep.subr.mxu0 0.0
        %648 = vmatpush1.msra.mxu0 0.0
        %649 = vmatprep.subr.mxu0 0.0
        %650 = vmatpush1.msra.mxu0 0.0
        %651 = vmatprep.subr.mxu0 0.0
        %652 = vmatpush1.msra.mxu0 0.0
        %653 = vmatprep.subr.mxu0 0.0
        %654 = vmatpush1.msra.mxu0 0.0
        %655 = vmatprep.subr.mxu0 0.0
        %656 = vmatpush1.msra.mxu0 0.0
        %657 = vmatprep.subr.mxu0 0.0
        %658 = vmatpush1.msra.mxu0 0.0
        %659 = vmatprep.subr.mxu0 0.0
        %660 = vmatpush1.msra.mxu0 0.0
        %661 = vmatprep.subr.mxu0 0.0
        %662 = vmatpush1.msra.mxu0 0.0
        %663 = vmatprep.subr.mxu0 0.0
        %664 = vmatpush1.msra.mxu0 0.0
        %665 = vmatprep.subr.mxu0 0.0
        %666 = vmatpush1.msra.mxu0 0.0
        %667 = vmatprep.subr.mxu0 0.0
        %668 = vmatpush1.msra.mxu0 0.0
        %669 = vmatprep.subr.mxu0 0.0
        %670 = vmatpush1.msra.mxu0 0.0
        %671 = vmatprep.subr.mxu0 0.0
        %672 = vmatpush1.msra.mxu0 0.0
        %673 = vmatprep.subr.mxu0 0.0
        %674 = vmatpush1.msra.mxu0 0.0
        %675 = vmatprep.subr.mxu0 0.0
        %676 = vmatpush1.msra.mxu0 0.0
        %677 = vmatprep.subr.mxu0 0.0
        %678 = vmatpush1.msra.mxu0 0.0
        %679 = vmatprep.mubr.f32.mxu0 0.0
        %v680 = vand.u32 %v459, 4294901760
        %v681 = vsub.f32 %v459, %v680
        %682 = vmatmul.mubr.f32.gmra.mrb[0].mxu0 %v681
        %v683 = vpop.f32.mrb[0].mxu0
        %v684 = vadd.f32 %v610, %v683
        %v685 = vpop.f32.mrb[0].mxu0
        %686 = vdwg.mxu0
        %687 = vmatprep.subr.mxu0 0.0
        %v688 = vand.u32 %v449, 4294901760
        %689 = vmatpush1.msra.mxu0 %v688
        %690 = vmatprep.subr.mxu0 0.0
        %691 = vmatpush1.msra.mxu0 0.0
        %692 = vmatprep.subr.mxu0 0.0
        %693 = vmatpush1.msra.mxu0 0.0
        %694 = vmatprep.subr.mxu0 0.0
        %695 = vmatpush1.msra.mxu0 0.0
        %696 = vmatprep.subr.mxu0 0.0
        %697 = vmatpush1.msra.mxu0 0.0
        %698 = vmatprep.subr.mxu0 0.0
        %699 = vmatpush1.msra.mxu0 0.0
        %700 = vmatprep.subr.mxu0 0.0
        %701 = vmatpush1.msra.mxu0 0.0
        %702 = vmatprep.subr.mxu0 0.0
        %703 = vmatpush1.msra.mxu0 0.0
        %704 = vmatprep.subr.mxu0 0.0
        %705 = vmatpush1.msra.mxu0 0.0
        %706 = vmatprep.subr.mxu0 0.0
        %707 = vmatpush1.msra.mxu0 0.0
        %708 = vmatprep.subr.mxu0 0.0
        %709 = vmatpush1.msra.mxu0 0.0
        %710 = vmatprep.subr.mxu0 0.0
        %711 = vmatpush1.msra.mxu0 0.0
        %712 = vmatprep.subr.mxu0 0.0
        %713 = vmatpush1.msra.mxu0 0.0
        %714 = vmatprep.subr.mxu0 0.0
        %715 = vmatpush1.msra.mxu0 0.0
        %716 = vmatprep.subr.mxu0 0.0
        %717 = vmatpush1.msra.mxu0 0.0
        %718 = vmatprep.subr.mxu0 0.0
        %719 = vmatpush1.msra.mxu0 0.0
        %720 = vmatprep.subr.mxu0 0.0
        %721 = vmatpush1.msra.mxu0 0.0
        %722 = vmatprep.subr.mxu0 0.0
        %723 = vmatpush1.msra.mxu0 0.0
        %724 = vmatprep.subr.mxu0 0.0
        %725 = vmatpush1.msra.mxu0 0.0
        %726 = vmatprep.subr.mxu0 0.0
        %727 = vmatpush1.msra.mxu0 0.0
        %728 = vmatprep.subr.mxu0 0.0
        %729 = vmatpush1.msra.mxu0 0.0
        %730 = vmatprep.subr.mxu0 0.0
        %731 = vmatpush1.msra.mxu0 0.0
        %732 = vmatprep.subr.mxu0 0.0
        %733 = vmatpush1.msra.mxu0 0.0
        %734 = vmatprep.subr.mxu0 0.0
        %735 = vmatpush1.msra.mxu0 0.0
        %736 = vmatprep.subr.mxu0 0.0
        %737 = vmatpush1.msra.mxu0 0.0
        %738 = vmatprep.subr.mxu0 0.0
        %739 = vmatpush1.msra.mxu0 0.0
        %740 = vmatprep.subr.mxu0 0.0
        %741 = vmatpush1.msra.mxu0 0.0
        %742 = vmatprep.subr.mxu0 0.0
        %743 = vmatpush1.msra.mxu0 0.0
        %744 = vmatprep.subr.mxu0 0.0
        %745 = vmatpush1.msra.mxu0 0.0
        %746 = vmatprep.subr.mxu0 0.0
        %747 = vmatpush1.msra.mxu0 0.0
        %748 = vmatprep.subr.mxu0 0.0
        %749 = vmatpush1.msra.mxu0 0.0
        %750 = vmatprep.subr.mxu0 0.0
        %751 = vmatpush1.msra.mxu0 0.0
        %752 = vmatprep.mubr.f32.mxu0 0.0
        %v753 = vand.u32 %v459, 4294901760
        %v754 = vsub.f32 %v459, %v753
        %v755 = vand.u32 %v754, 4294901760
        %756 = vmatmul.mubr.f32.gmra.mrb[0].mxu0 %v755
        %v757 = vpop.f32.mrb[0].mxu0
        %v758 = vadd.f32 %v684, %v757
        %v759 = vpop.f32.mrb[0].mxu0
        %760 = vdwg.mxu0
        %761 = vmatprep.subr.mxu0 0.0
        %v762 = vand.u32 %v449, 4294901760
        %v763 = vsub.f32 %v449, %v762
        %v764 = vand.u32 %v763, 4294901760
        %765 = vmatpush1.msra.mxu0 %v764
        %766 = vmatprep.subr.mxu0 0.0
        %767 = vmatpush1.msra.mxu0 0.0
        %768 = vmatprep.subr.mxu0 0.0
        %769 = vmatpush1.msra.mxu0 0.0
        %770 = vmatprep.subr.mxu0 0.0
        %771 = vmatpush1.msra.mxu0 0.0
        %772 = vmatprep.subr.mxu0 0.0
        %773 = vmatpush1.msra.mxu0 0.0
        %774 = vmatprep.subr.mxu0 0.0
        %775 = vmatpush1.msra.mxu0 0.0
        %776 = vmatprep.subr.mxu0 0.0
        %777 = vmatpush1.msra.mxu0 0.0
        %778 = vmatprep.subr.mxu0 0.0
        %779 = vmatpush1.msra.mxu0 0.0
        %780 = vmatprep.subr.mxu0 0.0
        %781 = vmatpush1.msra.mxu0 0.0
        %782 = vmatprep.subr.mxu0 0.0
        %783 = vmatpush1.msra.mxu0 0.0
        %784 = vmatprep.subr.mxu0 0.0
        %785 = vmatpush1.msra.mxu0 0.0
        %786 = vmatprep.subr.mxu0 0.0
        %787 = vmatpush1.msra.mxu0 0.0
        %788 = vmatprep.subr.mxu0 0.0
        %789 = vmatpush1.msra.mxu0 0.0
        %790 = vmatprep.subr.mxu0 0.0
        %791 = vmatpush1.msra.mxu0 0.0
        %792 = vmatprep.subr.mxu0 0.0
        %793 = vmatpush1.msra.mxu0 0.0
        %794 = vmatprep.subr.mxu0 0.0
        %795 = vmatpush1.msra.mxu0 0.0
        %796 = vmatprep.subr.mxu0 0.0
        %797 = vmatpush1.msra.mxu0 0.0
        %798 = vmatprep.subr.mxu0 0.0
        %799 = vmatpush1.msra.mxu0 0.0
        %800 = vmatprep.subr.mxu0 0.0
        %801 = vmatpush1.msra.mxu0 0.0
        %802 = vmatprep.subr.mxu0 0.0
        %803 = vmatpush1.msra.mxu0 0.0
        %804 = vmatprep.subr.mxu0 0.0
        %805 = vmatpush1.msra.mxu0 0.0
        %806 = vmatprep.subr.mxu0 0.0
        %807 = vmatpush1.msra.mxu0 0.0
        %808 = vmatprep.subr.mxu0 0.0
        %809 = vmatpush1.msra.mxu0 0.0
        %810 = vmatprep.subr.mxu0 0.0
        %811 = vmatpush1.msra.mxu0 0.0
        %812 = vmatprep.subr.mxu0 0.0
        %813 = vmatpush1.msra.mxu0 0.0
        %814 = vmatprep.subr.mxu0 0.0
        %815 = vmatpush1.msra.mxu0 0.0
        %816 = vmatprep.subr.mxu0 0.0
        %817 = vmatpush1.msra.mxu0 0.0
        %818 = vmatprep.subr.mxu0 0.0
        %819 = vmatpush1.msra.mxu0 0.0
        %820 = vmatprep.subr.mxu0 0.0
        %821 = vmatpush1.msra.mxu0 0.0
        %822 = vmatprep.subr.mxu0 0.0
        %823 = vmatpush1.msra.mxu0 0.0
        %824 = vmatprep.subr.mxu0 0.0
        %825 = vmatpush1.msra.mxu0 0.0
        %826 = vmatprep.subr.mxu0 0.0
        %827 = vmatpush1.msra.mxu0 0.0
        %828 = vmatprep.mubr.f32.mxu0 0.0
        %v829 = vand.u32 %v459, 4294901760
        %830 = vmatmul.mubr.f32.gmra.mrb[0].mxu0 %v829
        %v831 = vpop.f32.mrb[0].mxu0
        %v832 = vadd.f32 %v758, %v831
        %v833 = vpop.f32.mrb[0].mxu0
        %834 = vdwg.mxu0
        %835 = vmatprep.subr.mxu0 0.0
        %v836 = vand.u32 %v449, 4294901760
        %837 = vmatpush1.msra.mxu0 %v836
        %838 = vmatprep.subr.mxu0 0.0
        %839 = vmatpush1.msra.mxu0 0.0
        %840 = vmatprep.subr.mxu0 0.0
        %841 = vmatpush1.msra.mxu0 0.0
        %842 = vmatprep.subr.mxu0 0.0
        %843 = vmatpush1.msra.mxu0 0.0
        %844 = vmatprep.subr.mxu0 0.0
        %845 = vmatpush1.msra.mxu0 0.0
        %846 = vmatprep.subr.mxu0 0.0
        %847 = vmatpush1.msra.mxu0 0.0
        %848 = vmatprep.subr.mxu0 0.0
        %849 = vmatpush1.msra.mxu0 0.0
        %850 = vmatprep.subr.mxu0 0.0
        %851 = vmatpush1.msra.mxu0 0.0
        %852 = vmatprep.subr.mxu0 0.0
        %853 = vmatpush1.msra.mxu0 0.0
        %854 = vmatprep.subr.mxu0 0.0
        %855 = vmatpush1.msra.mxu0 0.0
        %856 = vmatprep.subr.mxu0 0.0
        %857 = vmatpush1.msra.mxu0 0.0
        %858 = vmatprep.subr.mxu0 0.0
        %859 = vmatpush1.msra.mxu0 0.0
        %860 = vmatprep.subr.mxu0 0.0
        %861 = vmatpush1.msra.mxu0 0.0
        %862 = vmatprep.subr.mxu0 0.0
        %863 = vmatpush1.msra.mxu0 0.0
        %864 = vmatprep.subr.mxu0 0.0
        %865 = vmatpush1.msra.mxu0 0.0
        %866 = vmatprep.subr.mxu0 0.0
        %867 = vmatpush1.msra.mxu0 0.0
        %868 = vmatprep.subr.mxu0 0.0
        %869 = vmatpush1.msra.mxu0 0.0
        %870 = vmatprep.subr.mxu0 0.0
        %871 = vmatpush1.msra.mxu0 0.0
        %872 = vmatprep.subr.mxu0 0.0
        %873 = vmatpush1.msra.mxu0 0.0
        %874 = vmatprep.subr.mxu0 0.0
        %875 = vmatpush1.msra.mxu0 0.0
        %876 = vmatprep.subr.mxu0 0.0
        %877 = vmatpush1.msra.mxu0 0.0
        %878 = vmatprep.subr.mxu0 0.0
        %879 = vmatpush1.msra.mxu0 0.0
        %880 = vmatprep.subr.mxu0 0.0
        %881 = vmatpush1.msra.mxu0 0.0
        %882 = vmatprep.subr.mxu0 0.0
        %883 = vmatpush1.msra.mxu0 0.0
        %884 = vmatprep.subr.mxu0 0.0
        %885 = vmatpush1.msra.mxu0 0.0
        %886 = vmatprep.subr.mxu0 0.0
        %887 = vmatpush1.msra.mxu0 0.0
        %888 = vmatprep.subr.mxu0 0.0
        %889 = vmatpush1.msra.mxu0 0.0
        %890 = vmatprep.subr.mxu0 0.0
        %891 = vmatpush1.msra.mxu0 0.0
        %892 = vmatprep.subr.mxu0 0.0
        %893 = vmatpush1.msra.mxu0 0.0
        %894 = vmatprep.subr.mxu0 0.0
        %895 = vmatpush1.msra.mxu0 0.0
        %896 = vmatprep.subr.mxu0 0.0
        %897 = vmatpush1.msra.mxu0 0.0
        %898 = vmatprep.subr.mxu0 0.0
        %899 = vmatpush1.msra.mxu0 0.0
        %900 = vmatprep.mubr.f32.mxu0 0.0
        %v901 = vand.u32 %v459, 4294901760
        %902 = vmatmul.mubr.f32.gmra.mrb[0].mxu0 %v901
        %v903 = vpop.f32.mrb[0].mxu0
        %v904 = vadd.f32 %v832, %v903
        %v905 = vpop.f32.mrb[0].mxu0
        %906 = vdwg.mxu0
        %vm907 = vcmp.ge.f32.partialorder %v904, 0.0
        %v908 = vld [vmem:[%s5] sm:$0xff]
        %910 = vset.pattern.permute.xlu0 0
        %911 = vperm.xlu0 %910, %v908
        %v912 = vpop.permute.xlu0 %911
        %v914 = vmul.f32 %v912, %v904
        %v915 = vsel %vm907, %v904, %v914
        %916 = vst [vmem:[%s430] sm:$0xff] %v915
        %v917 = vld [vmem:[%s439] sm:$0xff]
        %v918 = vsel %vm445, %v917, %v915
        %919 = vrot.lane.b32.xlu0 %v918, 1
        %v920 = vpop.permute.xlu0 %919
        %v921 = vsel %vm446, %v917, %v915
        %922 = vrot.lane.b32.xlu0 %v921, 2
        %v923 = vpop.permute.xlu0 %922
        %v924 = vld [vmem:[%s6] sm:$0xff]
        %s925 = scalar_lea.vmem %s6, 8
        %v926 = vld [vmem:[%s925] sm:$0xff]
        %s927 = scalar_lea.vmem %s6, 16
        %v928 = vld [vmem:[%s927] sm:$0xff]
        %s929 = scalar_lea.vmem %s6, 24
        %v930 = vld [vmem:[%s929] sm:$0xff]
        %s931 = scalar_lea.vmem %s6, 32
        %v932 = vld [vmem:[%s931] sm:$0xff]
        %s933 = scalar_lea.vmem %s6, 40
        %v934 = vld [vmem:[%s933] sm:$0xff]
        %s935 = scalar_lea.vmem %s6, 48
        %v936 = vld [vmem:[%s935] sm:$0xff]
        %s937 = scalar_lea.vmem %s6, 56
        %v938 = vld [vmem:[%s937] sm:$0xff]
        %s939 = scalar_lea.vmem %s6, 64
        %v940 = vld [vmem:[%s939] sm:$0xff]
        %942 = vset.pattern.permute.xlu0 0
        %943 = vperm.xlu0 %942, %v924
        %v944 = vpop.permute.xlu0 %943
        %v946 = vmul.f32 %v923, %v944
        %948 = vset.pattern.permute.xlu0 0
        %949 = vperm.xlu0 %948, %v926
        %v950 = vpop.permute.xlu0 %949
        %v952 = vmul.f32 %v920, %v950
        %v953 = vadd.f32 %v946, %v952
        %955 = vset.pattern.permute.xlu0 0
        %956 = vperm.xlu0 %955, %v928
        %v957 = vpop.permute.xlu0 %956
        %v959 = vmul.f32 %v915, %v957
        %v960 = vadd.f32 %v953, %v959
        %962 = vset.pattern.permute.xlu0 0
        %963 = vperm.xlu0 %962, %v930
        %v964 = vpop.permute.xlu0 %963
        %v966 = vmul.f32 %v923, %v964
        %968 = vset.pattern.permute.xlu0 0
        %969 = vperm.xlu0 %968, %v932
        %v970 = vpop.permute.xlu0 %969
        %v972 = vmul.f32 %v920, %v970
        %v973 = vadd.f32 %v966, %v972
        %975 = vset.pattern.permute.xlu0 0
        %976 = vperm.xlu0 %975, %v934
        %v977 = vpop.permute.xlu0 %976
        %v979 = vmul.f32 %v915, %v977
        %v980 = vadd.f32 %v973, %v979
        %982 = vset.pattern.permute.xlu0 0
        %983 = vperm.xlu0 %982, %v936
        %v984 = vpop.permute.xlu0 %983
        %v986 = vmul.f32 %v923, %v984
        %988 = vset.pattern.permute.xlu0 0
        %989 = vperm.xlu0 %988, %v938
        %v990 = vpop.permute.xlu0 %989
        %v992 = vmul.f32 %v920, %v990
        %v993 = vadd.f32 %v986, %v992
        %995 = vset.pattern.permute.xlu0 0
        %996 = vperm.xlu0 %995, %v940
        %v997 = vpop.permute.xlu0 %996
        %v999 = vmul.f32 %v915, %v997
        %v1000 = vadd.f32 %v993, %v999
        %1001 = vrot.lane.b32.xlu0 %v960, 16
        %v1002 = vpop.permute.xlu0 %1001
        %v1003 = vsel %vm442, 0.0, %v1002
        %1004 = vrot.lane.b32.xlu0 %v1000, 112
        %v1005 = vpop.permute.xlu0 %1004
        %v1006 = vsel %vm443, 0.0, %v1005
        %v1007 = vadd.f32 %v1003, %v980
        %v1008 = vadd.f32 %v1007, %v1006
        %v1009 = vld [vmem:[%s7] sm:$0xff]
        %1011 = vset.pattern.permute.xlu0 0
        %1012 = vperm.xlu0 %1011, %v1009
        %v1013 = vpop.permute.xlu0 %1012
        %v1015 = vadd.f32 %v1008, %v1013
        %vm1016 = vcmp.ge.f32.partialorder %v1015, 0.0
        %v1017 = vld [vmem:[%s8] sm:$0xff]
        %1019 = vset.pattern.permute.xlu0 0
        %1020 = vperm.xlu0 %1019, %v1017
        %v1021 = vpop.permute.xlu0 %1020
        %v1023 = vmul.f32 %v1021, %v1015
        %v1024 = vsel %vm1016, %v1015, %v1023
        %v1025 = vld [vmem:[%s9] sm:$0xff]
        %v1026 = vld [vmem:[%s10] sm:$0xff]
        %1028 = vset.pattern.permute.xlu0 0
        %1029 = vperm.xlu0 %1028, %v1026
        %v1030 = vpop.permute.xlu0 %1029
        %v1033 = vsel %vm457, %v1025, 0
        %1035 = vmatprep.subr.mxu0 0.0
        %v1036 = vand.u32 %v1024, 4294901760
        %1037 = vmatpush1.msra.mxu0 %v1036
        %1038 = vmatprep.subr.mxu0 0.0
        %1039 = vmatpush1.msra.mxu0 0.0
        %1040 = vmatprep.subr.mxu0 0.0
        %1041 = vmatpush1.msra.mxu0 0.0
        %1042 = vmatprep.subr.mxu0 0.0
        %1043 = vmatpush1.msra.mxu0 0.0
        %1044 = vmatprep.subr.mxu0 0.0
        %1045 = vmatpush1.msra.mxu0 0.0
        %1046 = vmatprep.subr.mxu0 0.0
        %1047 = vmatpush1.msra.mxu0 0.0
        %1048 = vmatprep.subr.mxu0 0.0
        %1049 = vmatpush1.msra.mxu0 0.0
        %1050 = vmatprep.subr.mxu0 0.0
        %1051 = vmatpush1.msra.mxu0 0.0
        %1052 = vmatprep.subr.mxu0 0.0
        %1053 = vmatpush1.msra.mxu0 0.0
        %1054 = vmatprep.subr.mxu0 0.0
        %1055 = vmatpush1.msra.mxu0 0.0
        %1056 = vmatprep.subr.mxu0 0.0
        %1057 = vmatpush1.msra.mxu0 0.0
        %1058 = vmatprep.subr.mxu0 0.0
        %1059 = vmatpush1.msra.mxu0 0.0
        %1060 = vmatprep.subr.mxu0 0.0
        %1061 = vmatpush1.msra.mxu0 0.0
        %1062 = vmatprep.subr.mxu0 0.0
        %1063 = vmatpush1.msra.mxu0 0.0
        %1064 = vmatprep.subr.mxu0 0.0
        %1065 = vmatpush1.msra.mxu0 0.0
        %1066 = vmatprep.subr.mxu0 0.0
        %1067 = vmatpush1.msra.mxu0 0.0
        %1068 = vmatprep.subr.mxu0 0.0
        %1069 = vmatpush1.msra.mxu0 0.0
        %1070 = vmatprep.subr.mxu0 0.0
        %1071 = vmatpush1.msra.mxu0 0.0
        %1072 = vmatprep.subr.mxu0 0.0
        %1073 = vmatpush1.msra.mxu0 0.0
        %1074 = vmatprep.subr.mxu0 0.0
        %1075 = vmatpush1.msra.mxu0 0.0
        %1076 = vmatprep.subr.mxu0 0.0
        %1077 = vmatpush1.msra.mxu0 0.0
        %1078 = vmatprep.subr.mxu0 0.0
        %1079 = vmatpush1.msra.mxu0 0.0
        %1080 = vmatprep.subr.mxu0 0.0
        %1081 = vmatpush1.msra.mxu0 0.0
        %1082 = vmatprep.subr.mxu0 0.0
        %1083 = vmatpush1.msra.mxu0 0.0
        %1084 = vmatprep.subr.mxu0 0.0
        %1085 = vmatpush1.msra.mxu0 0.0
        %1086 = vmatprep.subr.mxu0 0.0
        %1087 = vmatpush1.msra.mxu0 0.0
        %1088 = vmatprep.subr.mxu0 0.0
        %1089 = vmatpush1.msra.mxu0 0.0
        %1090 = vmatprep.subr.mxu0 0.0
        %1091 = vmatpush1.msra.mxu0 0.0
        %1092 = vmatprep.subr.mxu0 0.0
        %1093 = vmatpush1.msra.mxu0 0.0
        %1094 = vmatprep.subr.mxu0 0.0
        %1095 = vmatpush1.msra.mxu0 0.0
        %1096 = vmatprep.subr.mxu0 0.0
        %1097 = vmatpush1.msra.mxu0 0.0
        %1098 = vmatprep.subr.mxu0 0.0
        %1099 = vmatpush1.msra.mxu0 0.0
        %1100 = vmatprep.mubr.f32.mxu0 0.0
        %v1101 = vand.u32 %v1033, 4294901760
        %v1102 = vsub.f32 %v1033, %v1101
        %v1103 = vand.u32 %v1102, 4294901760
        %v1104 = vsub.f32 %v1102, %v1103
        %v1105 = vand.u32 %v1104, 4294901760
        %1106 = vmatmul.mubr.f32.gmra.mrb[0].mxu0 %v1105
        %v1107 = vpop.f32.mrb[0].mxu0
        %v1108 = vadd.f32 %v1030, %v1107
        %v1109 = vpop.f32.mrb[0].mxu0
        %1110 = vdwg.mxu0
        %1111 = vmatprep.subr.mxu0 0.0
        %v1112 = vand.u32 %v1024, 4294901760
        %v1113 = vsub.f32 %v1024, %v1112
        %v1114 = vand.u32 %v1113, 4294901760
        %v1115 = vsub.f32 %v1113, %v1114
        %v1116 = vand.u32 %v1115, 4294901760
        %1117 = vmatpush1.msra.mxu0 %v1116
        %1118 = vmatprep.subr.mxu0 0.0
        %1119 = vmatpush1.msra.mxu0 0.0
        %1120 = vmatprep.subr.mxu0 0.0
        %1121 = vmatpush1.msra.mxu0 0.0
        %1122 = vmatprep.subr.mxu0 0.0
        %1123 = vmatpush1.msra.mxu0 0.0
        %1124 = vmatprep.subr.mxu0 0.0
        %1125 = vmatpush1.msra.mxu0 0.0
        %1126 = vmatprep.subr.mxu0 0.0
        %1127 = vmatpush1.msra.mxu0 0.0
        %1128 = vmatprep.subr.mxu0 0.0
        %1129 = vmatpush1.msra.mxu0 0.0
        %1130 = vmatprep.subr.mxu0 0.0
        %1131 = vmatpush1.msra.mxu0 0.0
        %1132 = vmatprep.subr.mxu0 0.0
        %1133 = vmatpush1.msra.mxu0 0.0
        %1134 = vmatprep.subr.mxu0 0.0
        %1135 = vmatpush1.msra.mxu0 0.0
        %1136 = vmatprep.subr.mxu0 0.0
        %1137 = vmatpush1.msra.mxu0 0.0
        %1138 = vmatprep.subr.mxu0 0.0
        %1139 = vmatpush1.msra.mxu0 0.0
        %1140 = vmatprep.subr.mxu0 0.0
        %1141 = vmatpush1.msra.mxu0 0.0
        %1142 = vmatprep.subr.mxu0 0.0
        %1143 = vmatpush1.msra.mxu0 0.0
        %1144 = vmatprep.subr.mxu0 0.0
        %1145 = vmatpush1.msra.mxu0 0.0
        %1146 = vmatprep.subr.mxu0 0.0
        %1147 = vmatpush1.msra.mxu0 0.0
        %1148 = vmatprep.subr.mxu0 0.0
        %1149 = vmatpush1.msra.mxu0 0.0
        %1150 = vmatprep.subr.mxu0 0.0
        %1151 = vmatpush1.msra.mxu0 0.0
        %1152 = vmatprep.subr.mxu0 0.0
        %1153 = vmatpush1.msra.mxu0 0.0
        %1154 = vmatprep.subr.mxu0 0.0
        %1155 = vmatpush1.msra.mxu0 0.0
        %1156 = vmatprep.subr.mxu0 0.0
        %1157 = vmatpush1.msra.mxu0 0.0
        %1158 = vmatprep.subr.mxu0 0.0
        %1159 = vmatpush1.msra.mxu0 0.0
        %1160 = vmatprep.subr.mxu0 0.0
        %1161 = vmatpush1.msra.mxu0 0.0
        %1162 = vmatprep.subr.mxu0 0.0
        %1163 = vmatpush1.msra.mxu0 0.0
        %1164 = vmatprep.subr.mxu0 0.0
        %1165 = vmatpush1.msra.mxu0 0.0
        %1166 = vmatprep.subr.mxu0 0.0
        %1167 = vmatpush1.msra.mxu0 0.0
        %1168 = vmatprep.subr.mxu0 0.0
        %1169 = vmatpush1.msra.mxu0 0.0
        %1170 = vmatprep.subr.mxu0 0.0
        %1171 = vmatpush1.msra.mxu0 0.0
        %1172 = vmatprep.subr.mxu0 0.0
        %1173 = vmatpush1.msra.mxu0 0.0
        %1174 = vmatprep.subr.mxu0 0.0
        %1175 = vmatpush1.msra.mxu0 0.0
        %1176 = vmatprep.subr.mxu0 0.0
        %1177 = vmatpush1.msra.mxu0 0.0
        %1178 = vmatprep.subr.mxu0 0.0
        %1179 = vmatpush1.msra.mxu0 0.0
        %1180 = vmatprep.mubr.f32.mxu0 0.0
        %v1181 = vand.u32 %v1033, 4294901760
        %1182 = vmatmul.mubr.f32.gmra.mrb[0].mxu0 %v1181
        %v1183 = vpop.f32.mrb[0].mxu0
        %v1184 = vadd.f32 %v1108, %v1183
        %v1185 = vpop.f32.mrb[0].mxu0
        %1186 = vdwg.mxu0
        %1187 = vmatprep.subr.mxu0 0.0
        %v1188 = vand.u32 %v1024, 4294901760
        %v1189 = vsub.f32 %v1024, %v1188
        %1190 = vmatpush1.msra.mxu0 %v1189
        %1191 = vmatprep.subr.mxu0 0.0
        %1192 = vmatpush1.msra.mxu0 0.0
        %1193 = vmatprep.subr.mxu0 0.0
        %1194 = vmatpush1.msra.mxu0 0.0
        %1195 = vmatprep.subr.mxu0 0.0
        %1196 = vmatpush1.msra.mxu0 0.0
        %1197 = vmatprep.subr.mxu0 0.0
        %1198 = vmatpush1.msra.mxu0 0.0
        %1199 = vmatprep.subr.mxu0 0.0
        %1200 = vmatpush1.msra.mxu0 0.0
        %1201 = vmatprep.subr.mxu0 0.0
        %1202 = vmatpush1.msra.mxu0 0.0
        %1203 = vmatprep.subr.mxu0 0.0
        %1204 = vmatpush1.msra.mxu0 0.0
        %1205 = vmatprep.subr.mxu0 0.0
        %1206 = vmatpush1.msra.mxu0 0.0
        %1207 = vmatprep.subr.mxu0 0.0
        %1208 = vmatpush1.msra.mxu0 0.0
        %1209 = vmatprep.subr.mxu0 0.0
        %1210 = vmatpush1.msra.mxu0 0.0
        %1211 = vmatprep.subr.mxu0 0.0
        %1212 = vmatpush1.msra.mxu0 0.0
        %1213 = vmatprep.subr.mxu0 0.0
        %1214 = vmatpush1.msra.mxu0 0.0
        %1215 = vmatprep.subr.mxu0 0.0
        %1216 = vmatpush1.msra.mxu0 0.0
        %1217 = vmatprep.subr.mxu0 0.0
        %1218 = vmatpush1.msra.mxu0 0.0
        %1219 = vmatprep.subr.mxu0 0.0
        %1220 = vmatpush1.msra.mxu0 0.0
        %1221 = vmatprep.subr.mxu0 0.0
        %1222 = vmatpush1.msra.mxu0 0.0
        %1223 = vmatprep.subr.mxu0 0.0
        %1224 = vmatpush1.msra.mxu0 0.0
        %1225 = vmatprep.subr.mxu0 0.0
        %1226 = vmatpush1.msra.mxu0 0.0
        %1227 = vmatprep.subr.mxu0 0.0
        %1228 = vmatpush1.msra.mxu0 0.0
        %1229 = vmatprep.subr.mxu0 0.0
        %1230 = vmatpush1.msra.mxu0 0.0
        %1231 = vmatprep.subr.mxu0 0.0
        %1232 = vmatpush1.msra.mxu0 0.0
        %1233 = vmatprep.subr.mxu0 0.0
        %1234 = vmatpush1.msra.mxu0 0.0
        %1235 = vmatprep.subr.mxu0 0.0
        %1236 = vmatpush1.msra.mxu0 0.0
        %1237 = vmatprep.subr.mxu0 0.0
        %1238 = vmatpush1.msra.mxu0 0.0
        %1239 = vmatprep.subr.mxu0 0.0
        %1240 = vmatpush1.msra.mxu0 0.0
        %1241 = vmatprep.subr.mxu0 0.0
        %1242 = vmatpush1.msra.mxu0 0.0
        %1243 = vmatprep.subr.mxu0 0.0
        %1244 = vmatpush1.msra.mxu0 0.0
        %1245 = vmatprep.subr.mxu0 0.0
        %1246 = vmatpush1.msra.mxu0 0.0
        %1247 = vmatprep.subr.mxu0 0.0
        %1248 = vmatpush1.msra.mxu0 0.0
        %1249 = vmatprep.subr.mxu0 0.0
        %1250 = vmatpush1.msra.mxu0 0.0
        %1251 = vmatprep.subr.mxu0 0.0
        %1252 = vmatpush1.msra.mxu0 0.0
        %1253 = vmatprep.mubr.f32.mxu0 0.0
        %v1254 = vand.u32 %v1033, 4294901760
        %v1255 = vsub.f32 %v1033, %v1254
        %1256 = vmatmul.mubr.f32.gmra.mrb[0].mxu0 %v1255
        %v1257 = vpop.f32.mrb[0].mxu0
        %v1258 = vadd.f32 %v1184, %v1257
        %v1259 = vpop.f32.mrb[0].mxu0
        %1260 = vdwg.mxu0
        %1261 = vmatprep.subr.mxu0 0.0
        %v1262 = vand.u32 %v1024, 4294901760
        %1263 = vmatpush1.msra.mxu0 %v1262
        %1264 = vmatprep.subr.mxu0 0.0
        %1265 = vmatpush1.msra.mxu0 0.0
        %1266 = vmatprep.subr.mxu0 0.0
        %1267 = vmatpush1.msra.mxu0 0.0
        %1268 = vmatprep.subr.mxu0 0.0
        %1269 = vmatpush1.msra.mxu0 0.0
        %1270 = vmatprep.subr.mxu0 0.0
        %1271 = vmatpush1.msra.mxu0 0.0
        %1272 = vmatprep.subr.mxu0 0.0
        %1273 = vmatpush1.msra.mxu0 0.0
        %1274 = vmatprep.subr.mxu0 0.0
        %1275 = vmatpush1.msra.mxu0 0.0
        %1276 = vmatprep.subr.mxu0 0.0
        %1277 = vmatpush1.msra.mxu0 0.0
        %1278 = vmatprep.subr.mxu0 0.0
        %1279 = vmatpush1.msra.mxu0 0.0
        %1280 = vmatprep.subr.mxu0 0.0
        %1281 = vmatpush1.msra.mxu0 0.0
        %1282 = vmatprep.subr.mxu0 0.0
        %1283 = vmatpush1.msra.mxu0 0.0
        %1284 = vmatprep.subr.mxu0 0.0
        %1285 = vmatpush1.msra.mxu0 0.0
        %1286 = vmatprep.subr.mxu0 0.0
        %1287 = vmatpush1.msra.mxu0 0.0
        %1288 = vmatprep.subr.mxu0 0.0
        %1289 = vmatpush1.msra.mxu0 0.0
        %1290 = vmatprep.subr.mxu0 0.0
        %1291 = vmatpush1.msra.mxu0 0.0
        %1292 = vmatprep.subr.mxu0 0.0
        %1293 = vmatpush1.msra.mxu0 0.0
        %1294 = vmatprep.subr.mxu0 0.0
        %1295 = vmatpush1.msra.mxu0 0.0
        %1296 = vmatprep.subr.mxu0 0.0
        %1297 = vmatpush1.msra.mxu0 0.0
        %1298 = vmatprep.subr.mxu0 0.0
        %1299 = vmatpush1.msra.mxu0 0.0
        %1300 = vmatprep.subr.mxu0 0.0
        %1301 = vmatpush1.msra.mxu0 0.0
        %1302 = vmatprep.subr.mxu0 0.0
        %1303 = vmatpush1.msra.mxu0 0.0
        %1304 = vmatprep.subr.mxu0 0.0
        %1305 = vmatpush1.msra.mxu0 0.0
        %1306 = vmatprep.subr.mxu0 0.0
        %1307 = vmatpush1.msra.mxu0 0.0
        %1308 = vmatprep.subr.mxu0 0.0
        %1309 = vmatpush1.msra.mxu0 0.0
        %1310 = vmatprep.subr.mxu0 0.0
        %1311 = vmatpush1.msra.mxu0 0.0
        %1312 = vmatprep.subr.mxu0 0.0
        %1313 = vmatpush1.msra.mxu0 0.0
        %1314 = vmatprep.subr.mxu0 0.0
        %1315 = vmatpush1.msra.mxu0 0.0
        %1316 = vmatprep.subr.mxu0 0.0
        %1317 = vmatpush1.msra.mxu0 0.0
        %1318 = vmatprep.subr.mxu0 0.0
        %1319 = vmatpush1.msra.mxu0 0.0
        %1320 = vmatprep.subr.mxu0 0.0
        %1321 = vmatpush1.msra.mxu0 0.0
        %1322 = vmatprep.subr.mxu0 0.0
        %1323 = vmatpush1.msra.mxu0 0.0
        %1324 = vmatprep.subr.mxu0 0.0
        %1325 = vmatpush1.msra.mxu0 0.0
        %1326 = vmatprep.mubr.f32.mxu0 0.0
        %v1327 = vand.u32 %v1033, 4294901760
        %v1328 = vsub.f32 %v1033, %v1327
        %v1329 = vand.u32 %v1328, 4294901760
        %1330 = vmatmul.mubr.f32.gmra.mrb[0].mxu0 %v1329
        %v1331 = vpop.f32.mrb[0].mxu0
        %v1332 = vadd.f32 %v1258, %v1331
        %v1333 = vpop.f32.mrb[0].mxu0
        %1334 = vdwg.mxu0
        %1335 = vmatprep.subr.mxu0 0.0
        %v1336 = vand.u32 %v1024, 4294901760
        %v1337 = vsub.f32 %v1024, %v1336
        %v1338 = vand.u32 %v1337, 4294901760
        %1339 = vmatpush1.msra.mxu0 %v1338
        %1340 = vmatprep.subr.mxu0 0.0
        %1341 = vmatpush1.msra.mxu0 0.0
        %1342 = vmatprep.subr.mxu0 0.0
        %1343 = vmatpush1.msra.mxu0 0.0
        %1344 = vmatprep.subr.mxu0 0.0
        %1345 = vmatpush1.msra.mxu0 0.0
        %1346 = vmatprep.subr.mxu0 0.0
        %1347 = vmatpush1.msra.mxu0 0.0
        %1348 = vmatprep.subr.mxu0 0.0
        %1349 = vmatpush1.msra.mxu0 0.0
        %1350 = vmatprep.subr.mxu0 0.0
        %1351 = vmatpush1.msra.mxu0 0.0
        %1352 = vmatprep.subr.mxu0 0.0
        %1353 = vmatpush1.msra.mxu0 0.0
        %1354 = vmatprep.subr.mxu0 0.0
        %1355 = vmatpush1.msra.mxu0 0.0
        %1356 = vmatprep.subr.mxu0 0.0
        %1357 = vmatpush1.msra.mxu0 0.0
        %1358 = vmatprep.subr.mxu0 0.0
        %1359 = vmatpush1.msra.mxu0 0.0
        %1360 = vmatprep.subr.mxu0 0.0
        %1361 = vmatpush1.msra.mxu0 0.0
        %1362 = vmatprep.subr.mxu0 0.0
        %1363 = vmatpush1.msra.mxu0 0.0
        %1364 = vmatprep.subr.mxu0 0.0
        %1365 = vmatpush1.msra.mxu0 0.0
        %1366 = vmatprep.subr.mxu0 0.0
        %1367 = vmatpush1.msra.mxu0 0.0
        %1368 = vmatprep.subr.mxu0 0.0
        %1369 = vmatpush1.msra.mxu0 0.0
        %1370 = vmatprep.subr.mxu0 0.0
        %1371 = vmatpush1.msra.mxu0 0.0
        %1372 = vmatprep.subr.mxu0 0.0
        %1373 = vmatpush1.msra.mxu0 0.0
        %1374 = vmatprep.subr.mxu0 0.0
        %1375 = vmatpush1.msra.mxu0 0.0
        %1376 = vmatprep.subr.mxu0 0.0
        %1377 = vmatpush1.msra.mxu0 0.0
        %1378 = vmatprep.subr.mxu0 0.0
        %1379 = vmatpush1.msra.mxu0 0.0
        %1380 = vmatprep.subr.mxu0 0.0
        %1381 = vmatpush1.msra.mxu0 0.0
        %1382 = vmatprep.subr.mxu0 0.0
        %1383 = vmatpush1.msra.mxu0 0.0
        %1384 = vmatprep.subr.mxu0 0.0
        %1385 = vmatpush1.msra.mxu0 0.0
        %1386 = vmatprep.subr.mxu0 0.0
        %1387 = vmatpush1.msra.mxu0 0.0
        %1388 = vmatprep.subr.mxu0 0.0
        %1389 = vmatpush1.msra.mxu0 0.0
        %1390 = vmatprep.subr.mxu0 0.0
        %1391 = vmatpush1.msra.mxu0 0.0
        %1392 = vmatprep.subr.mxu0 0.0
        %1393 = vmatpush1.msra.mxu0 0.0
        %1394 = vmatprep.subr.mxu0 0.0
        %1395 = vmatpush1.msra.mxu0 0.0
        %1396 = vmatprep.subr.mxu0 0.0
        %1397 = vmatpush1.msra.mxu0 0.0
        %1398 = vmatprep.subr.mxu0 0.0
        %1399 = vmatpush1.msra.mxu0 0.0
        %1400 = vmatprep.subr.mxu0 0.0
        %1401 = vmatpush1.msra.mxu0 0.0
        %1402 = vmatprep.mubr.f32.mxu0 0.0
        %v1403 = vand.u32 %v1033, 4294901760
        %1404 = vmatmul.mubr.f32.gmra.mrb[0].mxu0 %v1403
        %v1405 = vpop.f32.mrb[0].mxu0
        %v1406 = vadd.f32 %v1332, %v1405
        %v1407 = vpop.f32.mrb[0].mxu0
        %1408 = vdwg.mxu0
        %1409 = vmatprep.subr.mxu0 0.0
        %v1410 = vand.u32 %v1024, 4294901760
        %1411 = vmatpush1.msra.mxu0 %v1410
        %1412 = vmatprep.subr.mxu0 0.0
        %1413 = vmatpush1.msra.mxu0 0.0
        %1414 = vmatprep.subr.mxu0 0.0
        %1415 = vmatpush1.msra.mxu0 0.0
        %1416 = vmatprep.subr.mxu0 0.0
        %1417 = vmatpush1.msra.mxu0 0.0
        %1418 = vmatprep.subr.mxu0 0.0
        %1419 = vmatpush1.msra.mxu0 0.0
        %1420 = vmatprep.subr.mxu0 0.0
        %1421 = vmatpush1.msra.mxu0 0.0
        %1422 = vmatprep.subr.mxu0 0.0
        %1423 = vmatpush1.msra.mxu0 0.0
        %1424 = vmatprep.subr.mxu0 0.0
        %1425 = vmatpush1.msra.mxu0 0.0
        %1426 = vmatprep.subr.mxu0 0.0
        %1427 = vmatpush1.msra.mxu0 0.0
        %1428 = vmatprep.subr.mxu0 0.0
        %1429 = vmatpush1.msra.mxu0 0.0
        %1430 = vmatprep.subr.mxu0 0.0
        %1431 = vmatpush1.msra.mxu0 0.0
        %1432 = vmatprep.subr.mxu0 0.0
        %1433 = vmatpush1.msra.mxu0 0.0
        %1434 = vmatprep.subr.mxu0 0.0
        %1435 = vmatpush1.msra.mxu0 0.0
        %1436 = vmatprep.subr.mxu0 0.0
        %1437 = vmatpush1.msra.mxu0 0.0
        %1438 = vmatprep.subr.mxu0 0.0
        %1439 = vmatpush1.msra.mxu0 0.0
        %1440 = vmatprep.subr.mxu0 0.0
        %1441 = vmatpush1.msra.mxu0 0.0
        %1442 = vmatprep.subr.mxu0 0.0
        %1443 = vmatpush1.msra.mxu0 0.0
        %1444 = vmatprep.subr.mxu0 0.0
        %1445 = vmatpush1.msra.mxu0 0.0
        %1446 = vmatprep.subr.mxu0 0.0
        %1447 = vmatpush1.msra.mxu0 0.0
        %1448 = vmatprep.subr.mxu0 0.0
        %1449 = vmatpush1.msra.mxu0 0.0
        %1450 = vmatprep.subr.mxu0 0.0
        %1451 = vmatpush1.msra.mxu0 0.0
        %1452 = vmatprep.subr.mxu0 0.0
        %1453 = vmatpush1.msra.mxu0 0.0
        %1454 = vmatprep.subr.mxu0 0.0
        %1455 = vmatpush1.msra.mxu0 0.0
        %1456 = vmatprep.subr.mxu0 0.0
        %1457 = vmatpush1.msra.mxu0 0.0
        %1458 = vmatprep.subr.mxu0 0.0
        %1459 = vmatpush1.msra.mxu0 0.0
        %1460 = vmatprep.subr.mxu0 0.0
        %1461 = vmatpush1.msra.mxu0 0.0
        %1462 = vmatprep.subr.mxu0 0.0
        %1463 = vmatpush1.msra.mxu0 0.0
        %1464 = vmatprep.subr.mxu0 0.0
        %1465 = vmatpush1.msra.mxu0 0.0
        %1466 = vmatprep.subr.mxu0 0.0
        %1467 = vmatpush1.msra.mxu0 0.0
        %1468 = vmatprep.subr.mxu0 0.0
        %1469 = vmatpush1.msra.mxu0 0.0
        %1470 = vmatprep.subr.mxu0 0.0
        %1471 = vmatpush1.msra.mxu0 0.0
        %1472 = vmatprep.subr.mxu0 0.0
        %1473 = vmatpush1.msra.mxu0 0.0
        %1474 = vmatprep.mubr.f32.mxu0 0.0
        %v1475 = vand.u32 %v1033, 4294901760
        %1476 = vmatmul.mubr.f32.gmra.mrb[0].mxu0 %v1475
        %v1477 = vpop.f32.mrb[0].mxu0
        %v1478 = vadd.f32 %v1406, %v1477
        %v1479 = vpop.f32.mrb[0].mxu0
        %1480 = vdwg.mxu0
        %v1481 = vadd.f32 %v1478, %v449
        %s1482 = scalar_lea.vmem %s3, 8
        %v1483 = vld [vmem:[%s1482] sm:$0xff]
        %s1484 = scalar_lea.vmem %s4, 8
        %v1485 = vld [vmem:[%s1484] sm:$0xff]
        %1487 = vset.pattern.permute.xlu0 0
        %1488 = vperm.xlu0 %1487, %v1485
        %v1489 = vpop.permute.xlu0 %1488
        %v1492 = vsel %vm457, %v1483, 0
        %1494 = vmatprep.subr.mxu0 0.0
        %v1495 = vand.u32 %v1481, 4294901760
        %1496 = vmatpush1.msra.mxu0 %v1495
        %1497 = vmatprep.subr.mxu0 0.0
        %1498 = vmatpush1.msra.mxu0 0.0
        %1499 = vmatprep.subr.mxu0 0.0
        %1500 = vmatpush1.msra.mxu0 0.0
        %1501 = vmatprep.subr.mxu0 0.0
        %1502 = vmatpush1.msra.mxu0 0.0
        %1503 = vmatprep.subr.mxu0 0.0
        %1504 = vmatpush1.msra.mxu0 0.0
        %1505 = vmatprep.subr.mxu0 0.0
        %1506 = vmatpush1.msra.mxu0 0.0
        %1507 = vmatprep.subr.mxu0 0.0
        %1508 = vmatpush1.msra.mxu0 0.0
        %1509 = vmatprep.subr.mxu0 0.0
        %1510 = vmatpush1.msra.mxu0 0.0
        %1511 = vmatprep.subr.mxu0 0.0
        %1512 = vmatpush1.msra.mxu0 0.0
        %1513 = vmatprep.subr.mxu0 0.0
        %1514 = vmatpush1.msra.mxu0 0.0
        %1515 = vmatprep.subr.mxu0 0.0
        %1516 = vmatpush1.msra.mxu0 0.0
        %1517 = vmatprep.subr.mxu0 0.0
        %1518 = vmatpush1.msra.mxu0 0.0
        %1519 = vmatprep.subr.mxu0 0.0
        %1520 = vmatpush1.msra.mxu0 0.0
        %1521 = vmatprep.subr.mxu0 0.0
        %1522 = vmatpush1.msra.mxu0 0.0
        %1523 = vmatprep.subr.mxu0 0.0
        %1524 = vmatpush1.msra.mxu0 0.0
        %1525 = vmatprep.subr.mxu0 0.0
        %1526 = vmatpush1.msra.mxu0 0.0
        %1527 = vmatprep.subr.mxu0 0.0
        %1528 = vmatpush1.msra.mxu0 0.0
        %1529 = vmatprep.subr.mxu0 0.0
        %1530 = vmatpush1.msra.mxu0 0.0
        %1531 = vmatprep.subr.mxu0 0.0
        %1532 = vmatpush1.msra.mxu0 0.0
        %1533 = vmatprep.subr.mxu0 0.0
        %1534 = vmatpush1.msra.mxu0 0.0
        %1535 = vmatprep.subr.mxu0 0.0
        %1536 = vmatpush1.msra.mxu0 0.0
        %1537 = vmatprep.subr.mxu0 0.0
        %1538 = vmatpush1.msra.mxu0 0.0
        %1539 = vmatprep.subr.mxu0 0.0
        %1540 = vmatpush1.msra.mxu0 0.0
        %1541 = vmatprep.subr.mxu0 0.0
        %1542 = vmatpush1.msra.mxu0 0.0
        %1543 = vmatprep.subr.mxu0 0.0
        %1544 = vmatpush1.msra.mxu0 0.0
        %1545 = vmatprep.subr.mxu0 0.0
        %1546 = vmatpush1.msra.mxu0 0.0
        %1547 = vmatprep.subr.mxu0 0.0
        %1548 = vmatpush1.msra.mxu0 0.0
        %1549 = vmatprep.subr.mxu0 0.0
        %1550 = vmatpush1.msra.mxu0 0.0
        %1551 = vmatprep.subr.mxu0 0.0
        %1552 = vmatpush1.msra.mxu0 0.0
        %1553 = vmatprep.subr.mxu0 0.0
        %1554 = vmatpush1.msra.mxu0 0.0
        %1555 = vmatprep.subr.mxu0 0.0
        %1556 = vmatpush1.msra.mxu0 0.0
        %1557 = vmatprep.subr.mxu0 0.0
        %1558 = vmatpush1.msra.mxu0 0.0
        %1559 = vmatprep.mubr.f32.mxu0 0.0
        %v1560 = vand.u32 %v1492, 4294901760
        %v1561 = vsub.f32 %v1492, %v1560
        %v1562 = vand.u32 %v1561, 4294901760
        %v1563 = vsub.f32 %v1561, %v1562
        %v1564 = vand.u32 %v1563, 4294901760
        %1565 = vmatmul.mubr.f32.gmra.mrb[0].mxu0 %v1564
        %v1566 = vpop.f32.mrb[0].mxu0
        %v1567 = vadd.f32 %v1489, %v1566
        %v1568 = vpop.f32.mrb[0].mxu0
        %1569 = vdwg.mxu0
        %1570 = vmatprep.subr.mxu0 0.0
        %v1571 = vand.u32 %v1481, 4294901760
        %v1572 = vsub.f32 %v1481, %v1571
        %v1573 = vand.u32 %v1572, 4294901760
        %v1574 = vsub.f32 %v1572, %v1573
        %v1575 = vand.u32 %v1574, 4294901760
        %1576 = vmatpush1.msra.mxu0 %v1575
        %1577 = vmatprep.subr.mxu0 0.0
        %1578 = vmatpush1.msra.mxu0 0.0
        %1579 = vmatprep.subr.mxu0 0.0
        %1580 = vmatpush1.msra.mxu0 0.0
        %1581 = vmatprep.subr.mxu0 0.0
        %1582 = vmatpush1.msra.mxu0 0.0
        %1583 = vmatprep.subr.mxu0 0.0
        %1584 = vmatpush1.msra.mxu0 0.0
        %1585 = vmatprep.subr.mxu0 0.0
        %1586 = vmatpush1.msra.mxu0 0.0
        %1587 = vmatprep.subr.mxu0 0.0
        %1588 = vmatpush1.msra.mxu0 0.0
        %1589 = vmatprep.subr.mxu0 0.0
        %1590 = vmatpush1.msra.mxu0 0.0
        %1591 = vmatprep.subr.mxu0 0.0
        %1592 = vmatpush1.msra.mxu0 0.0
        %1593 = vmatprep.subr.mxu0 0.0
        %1594 = vmatpush1.msra.mxu0 0.0
        %1595 = vmatprep.subr.mxu0 0.0
        %1596 = vmatpush1.msra.mxu0 0.0
        %1597 = vmatprep.subr.mxu0 0.0
        %1598 = vmatpush1.msra.mxu0 0.0
        %1599 = vmatprep.subr.mxu0 0.0
        %1600 = vmatpush1.msra.mxu0 0.0
        %1601 = vmatprep.subr.mxu0 0.0
        %1602 = vmatpush1.msra.mxu0 0.0
        %1603 = vmatprep.subr.mxu0 0.0
        %1604 = vmatpush1.msra.mxu0 0.0
        %1605 = vmatprep.subr.mxu0 0.0
        %1606 = vmatpush1.msra.mxu0 0.0
        %1607 = vmatprep.subr.mxu0 0.0
        %1608 = vmatpush1.msra.mxu0 0.0
        %1609 = vmatprep.subr.mxu0 0.0
        %1610 = vmatpush1.msra.mxu0 0.0
        %1611 = vmatprep.subr.mxu0 0.0
        %1612 = vmatpush1.msra.mxu0 0.0
        %1613 = vmatprep.subr.mxu0 0.0
        %1614 = vmatpush1.msra.mxu0 0.0
        %1615 = vmatprep.subr.mxu0 0.0
        %1616 = vmatpush1.msra.mxu0 0.0
        %1617 = vmatprep.subr.mxu0 0.0
        %1618 = vmatpush1.msra.mxu0 0.0
        %1619 = vmatprep.subr.mxu0 0.0
        %1620 = vmatpush1.msra.mxu0 0.0
        %1621 = vmatprep.subr.mxu0 0.0
        %1622 = vmatpush1.msra.mxu0 0.0
        %1623 = vmatprep.subr.mxu0 0.0
        %1624 = vmatpush1.msra.mxu0 0.0
        %1625 = vmatprep.subr.mxu0 0.0
        %1626 = vmatpush1.msra.mxu0 0.0
        %1627 = vmatprep.subr.mxu0 0.0
        %1628 = vmatpush1.msra.mxu0 0.0
        %1629 = vmatprep.subr.mxu0 0.0
        %1630 = vmatpush1.msra.mxu0 0.0
        %1631 = vmatprep.subr.mxu0 0.0
        %1632 = vmatpush1.msra.mxu0 0.0
        %1633 = vmatprep.subr.mxu0 0.0
        %1634 = vmatpush1.msra.mxu0 0.0
        %1635 = vmatprep.subr.mxu0 0.0
        %1636 = vmatpush1.msra.mxu0 0.0
        %1637 = vmatprep.subr.mxu0 0.0
        %1638 = vmatpush1.msra.mxu0 0.0
        %1639 = vmatprep.mubr.f32.mxu0 0.0
        %v1640 = vand.u32 %v1492, 4294901760
        %1641 = vmatmul.mubr.f32.gmra.mrb[0].mxu0 %v1640
        %v1642 = vpop.f32.mrb[0].mxu0
        %v1643 = vadd.f32 %v1567, %v1642
        %v1644 = vpop.f32.mrb[0].mxu0
        %1645 = vdwg.mxu0
        %1646 = vmatprep.subr.mxu0 0.0
        %v1647 = vand.u32 %v1481, 4294901760
        %v1648 = vsub.f32 %v1481, %v1647
        %1649 = vmatpush1.msra.mxu0 %v1648
        %1650 = vmatprep.subr.mxu0 0.0
        %1651 = vmatpush1.msra.mxu0 0.0
        %1652 = vmatprep.subr.mxu0 0.0
        %1653 = vmatpush1.msra.mxu0 0.0
        %1654 = vmatprep.subr.mxu0 0.0
        %1655 = vmatpush1.msra.mxu0 0.0
        %1656 = vmatprep.subr.mxu0 0.0
        %1657 = vmatpush1.msra.mxu0 0.0
        %1658 = vmatprep.subr.mxu0 0.0
        %1659 = vmatpush1.msra.mxu0 0.0
        %1660 = vmatprep.subr.mxu0 0.0
        %1661 = vmatpush1.msra.mxu0 0.0
        %1662 = vmatprep.subr.mxu0 0.0
        %1663 = vmatpush1.msra.mxu0 0.0
        %1664 = vmatprep.subr.mxu0 0.0
        %1665 = vmatpush1.msra.mxu0 0.0
        %1666 = vmatprep.subr.mxu0 0.0
        %1667 = vmatpush1.msra.mxu0 0.0
        %1668 = vmatprep.subr.mxu0 0.0
        %1669 = vmatpush1.msra.mxu0 0.0
        %1670 = vmatprep.subr.mxu0 0.0
        %1671 = vmatpush1.msra.mxu0 0.0
        %1672 = vmatprep.subr.mxu0 0.0
        %1673 = vmatpush1.msra.mxu0 0.0
        %1674 = vmatprep.subr.mxu0 0.0
        %1675 = vmatpush1.msra.mxu0 0.0
        %1676 = vmatprep.subr.mxu0 0.0
        %1677 = vmatpush1.msra.mxu0 0.0
        %1678 = vmatprep.subr.mxu0 0.0
        %1679 = vmatpush1.msra.mxu0 0.0
        %1680 = vmatprep.subr.mxu0 0.0
        %1681 = vmatpush1.msra.mxu0 0.0
        %1682 = vmatprep.subr.mxu0 0.0
        %1683 = vmatpush1.msra.mxu0 0.0
        %1684 = vmatprep.subr.mxu0 0.0
        %1685 = vmatpush1.msra.mxu0 0.0
        %1686 = vmatprep.subr.mxu0 0.0
        %1687 = vmatpush1.msra.mxu0 0.0
        %1688 = vmatprep.subr.mxu0 0.0
        %1689 = vmatpush1.msra.mxu0 0.0
        %1690 = vmatprep.subr.mxu0 0.0
        %1691 = vmatpush1.msra.mxu0 0.0
        %1692 = vmatprep.subr.mxu0 0.0
        %1693 = vmatpush1.msra.mxu0 0.0
        %1694 = vmatprep.subr.mxu0 0.0
        %1695 = vmatpush1.msra.mxu0 0.0
        %1696 = vmatprep.subr.mxu0 0.0
        %1697 = vmatpush1.msra.mxu0 0.0
        %1698 = vmatprep.subr.mxu0 0.0
        %1699 = vmatpush1.msra.mxu0 0.0
        %1700 = vmatprep.subr.mxu0 0.0
        %1701 = vmatpush1.msra.mxu0 0.0
        %1702 = vmatprep.subr.mxu0 0.0
        %1703 = vmatpush1.msra.mxu0 0.0
        %1704 = vmatprep.subr.mxu0 0.0
        %1705 = vmatpush1.msra.mxu0 0.0
        %1706 = vmatprep.subr.mxu0 0.0
        %1707 = vmatpush1.msra.mxu0 0.0
        %1708 = vmatprep.subr.mxu0 0.0
        %1709 = vmatpush1.msra.mxu0 0.0
        %1710 = vmatprep.subr.mxu0 0.0
        %1711 = vmatpush1.msra.mxu0 0.0
        %1712 = vmatprep.mubr.f32.mxu0 0.0
        %v1713 = vand.u32 %v1492, 4294901760
        %v1714 = vsub.f32 %v1492, %v1713
        %1715 = vmatmul.mubr.f32.gmra.mrb[0].mxu0 %v1714
        %v1716 = vpop.f32.mrb[0].mxu0
        %v1717 = vadd.f32 %v1643, %v1716
        %v1718 = vpop.f32.mrb[0].mxu0
        %1719 = vdwg.mxu0
        %1720 = vmatprep.subr.mxu0 0.0
        %v1721 = vand.u32 %v1481, 4294901760
        %1722 = vmatpush1.msra.mxu0 %v1721
        %1723 = vmatprep.subr.mxu0 0.0
        %1724 = vmatpush1.msra.mxu0 0.0
        %1725 = vmatprep.subr.mxu0 0.0
        %1726 = vmatpush1.msra.mxu0 0.0
        %1727 = vmatprep.subr.mxu0 0.0
        %1728 = vmatpush1.msra.mxu0 0.0
        %1729 = vmatprep.subr.mxu0 0.0
        %1730 = vmatpush1.msra.mxu0 0.0
        %1731 = vmatprep.subr.mxu0 0.0
        %1732 = vmatpush1.msra.mxu0 0.0
        %1733 = vmatprep.subr.mxu0 0.0
        %1734 = vmatpush1.msra.mxu0 0.0
        %1735 = vmatprep.subr.mxu0 0.0
        %1736 = vmatpush1.msra.mxu0 0.0
        %1737 = vmatprep.subr.mxu0 0.0
        %1738 = vmatpush1.msra.mxu0 0.0
        %1739 = vmatprep.subr.mxu0 0.0
        %1740 = vmatpush1.msra.mxu0 0.0
        %1741 = vmatprep.subr.mxu0 0.0
        %1742 = vmatpush1.msra.mxu0 0.0
        %1743 = vmatprep.subr.mxu0 0.0
        %1744 = vmatpush1.msra.mxu0 0.0
        %1745 = vmatprep.subr.mxu0 0.0
        %1746 = vmatpush1.msra.mxu0 0.0
        %1747 = vmatprep.subr.mxu0 0.0
        %1748 = vmatpush1.msra.mxu0 0.0
        %1749 = vmatprep.subr.mxu0 0.0
        %1750 = vmatpush1.msra.mxu0 0.0
        %1751 = vmatprep.subr.mxu0 0.0
        %1752 = vmatpush1.msra.mxu0 0.0
        %1753 = vmatprep.subr.mxu0 0.0
        %1754 = vmatpush1.msra.mxu0 0.0
        %1755 = vmatprep.subr.mxu0 0.0
        %1756 = vmatpush1.msra.mxu0 0.0
        %1757 = vmatprep.subr.mxu0 0.0
        %1758 = vmatpush1.msra.mxu0 0.0
        %1759 = vmatprep.subr.mxu0 0.0
        %1760 = vmatpush1.msra.mxu0 0.0
        %1761 = vmatprep.subr.mxu0 0.0
        %1762 = vmatpush1.msra.mxu0 0.0
        %1763 = vmatprep.subr.mxu0 0.0
        %1764 = vmatpush1.msra.mxu0 0.0
        %1765 = vmatprep.subr.mxu0 0.0
        %1766 = vmatpush1.msra.mxu0 0.0
        %1767 = vmatprep.subr.mxu0 0.0
        %1768 = vmatpush1.msra.mxu0 0.0
        %1769 = vmatprep.subr.mxu0 0.0
        %1770 = vmatpush1.msra.mxu0 0.0
        %1771 = vmatprep.subr.mxu0 0.0
        %1772 = vmatpush1.msra.mxu0 0.0
        %1773 = vmatprep.subr.mxu0 0.0
        %1774 = vmatpush1.msra.mxu0 0.0
        %1775 = vmatprep.subr.mxu0 0.0
        %1776 = vmatpush1.msra.mxu0 0.0
        %1777 = vmatprep.subr.mxu0 0.0
        %1778 = vmatpush1.msra.mxu0 0.0
        %1779 = vmatprep.subr.mxu0 0.0
        %1780 = vmatpush1.msra.mxu0 0.0
        %1781 = vmatprep.subr.mxu0 0.0
        %1782 = vmatpush1.msra.mxu0 0.0
        %1783 = vmatprep.subr.mxu0 0.0
        %1784 = vmatpush1.msra.mxu0 0.0
        %1785 = vmatprep.mubr.f32.mxu0 0.0
        %v1786 = vand.u32 %v1492, 4294901760
        %v1787 = vsub.f32 %v1492, %v1786
        %v1788 = vand.u32 %v1787, 4294901760
        %1789 = vmatmul.mubr.f32.gmra.mrb[0].mxu0 %v1788
        %v1790 = vpop.f32.mrb[0].mxu0
        %v1791 = vadd.f32 %v1717, %v1790
        %v1792 = vpop.f32.mrb[0].mxu0
        %1793 = vdwg.mxu0
        %1794 = vmatprep.subr.mxu0 0.0
        %v1795 = vand.u32 %v1481, 4294901760
        %v1796 = vsub.f32 %v1481, %v1795
        %v1797 = vand.u32 %v1796, 4294901760
        %1798 = vmatpush1.msra.mxu0 %v1797
        %1799 = vmatprep.subr.mxu0 0.0
        %1800 = vmatpush1.msra.mxu0 0.0
        %1801 = vmatprep.subr.mxu0 0.0
        %1802 = vmatpush1.msra.mxu0 0.0
        %1803 = vmatprep.subr.mxu0 0.0
        %1804 = vmatpush1.msra.mxu0 0.0
        %1805 = vmatprep.subr.mxu0 0.0
        %1806 = vmatpush1.msra.mxu0 0.0
        %1807 = vmatprep.subr.mxu0 0.0
        %1808 = vmatpush1.msra.mxu0 0.0
        %1809 = vmatprep.subr.mxu0 0.0
        %1810 = vmatpush1.msra.mxu0 0.0
        %1811 = vmatprep.subr.mxu0 0.0
        %1812 = vmatpush1.msra.mxu0 0.0
        %1813 = vmatprep.subr.mxu0 0.0
        %1814 = vmatpush1.msra.mxu0 0.0
        %1815 = vmatprep.subr.mxu0 0.0
        %1816 = vmatpush1.msra.mxu0 0.0
        %1817 = vmatprep.subr.mxu0 0.0
        %1818 = vmatpush1.msra.mxu0 0.0
        %1819 = vmatprep.subr.mxu0 0.0
        %1820 = vmatpush1.msra.mxu0 0.0
        %1821 = vmatprep.subr.mxu0 0.0
        %1822 = vmatpush1.msra.mxu0 0.0
        %1823 = vmatprep.subr.mxu0 0.0
        %1824 = vmatpush1.msra.mxu0 0.0
        %1825 = vmatprep.subr.mxu0 0.0
        %1826 = vmatpush1.msra.mxu0 0.0
        %1827 = vmatprep.subr.mxu0 0.0
        %1828 = vmatpush1.msra.mxu0 0.0
        %1829 = vmatprep.subr.mxu0 0.0
        %1830 = vmatpush1.msra.mxu0 0.0
        %1831 = vmatprep.subr.mxu0 0.0
        %1832 = vmatpush1.msra.mxu0 0.0
        %1833 = vmatprep.subr.mxu0 0.0
        %1834 = vmatpush1.msra.mxu0 0.0
        %1835 = vmatprep.subr.mxu0 0.0
        %1836 = vmatpush1.msra.mxu0 0.0
        %1837 = vmatprep.subr.mxu0 0.0
        %1838 = vmatpush1.msra.mxu0 0.0
        %1839 = vmatprep.subr.mxu0 0.0
        %1840 = vmatpush1.msra.mxu0 0.0
        %1841 = vmatprep.subr.mxu0 0.0
        %1842 = vmatpush1.msra.mxu0 0.0
        %1843 = vmatprep.subr.mxu0 0.0
        %1844 = vmatpush1.msra.mxu0 0.0
        %1845 = vmatprep.subr.mxu0 0.0
        %1846 = vmatpush1.msra.mxu0 0.0
        %1847 = vmatprep.subr.mxu0 0.0
        %1848 = vmatpush1.msra.mxu0 0.0
        %1849 = vmatprep.subr.mxu0 0.0
        %1850 = vmatpush1.msra.mxu0 0.0
        %1851 = vmatprep.subr.mxu0 0.0
        %1852 = vmatpush1.msra.mxu0 0.0
        %1853 = vmatprep.subr.mxu0 0.0
        %1854 = vmatpush1.msra.mxu0 0.0
        %1855 = vmatprep.subr.mxu0 0.0
        %1856 = vmatpush1.msra.mxu0 0.0
        %1857 = vmatprep.subr.mxu0 0.0
        %1858 = vmatpush1.msra.mxu0 0.0
        %1859 = vmatprep.subr.mxu0 0.0
        %1860 = vmatpush1.msra.mxu0 0.0
        %1861 = vmatprep.mubr.f32.mxu0 0.0
        %v1862 = vand.u32 %v1492, 4294901760
        %1863 = vmatmul.mubr.f32.gmra.mrb[0].mxu0 %v1862
        %v1864 = vpop.f32.mrb[0].mxu0
        %v1865 = vadd.f32 %v1791, %v1864
        %v1866 = vpop.f32.mrb[0].mxu0
        %1867 = vdwg.mxu0
        %1868 = vmatprep.subr.mxu0 0.0
        %v1869 = vand.u32 %v1481, 4294901760
        %1870 = vmatpush1.msra.mxu0 %v1869
        %1871 = vmatprep.subr.mxu0 0.0
        %1872 = vmatpush1.msra.mxu0 0.0
        %1873 = vmatprep.subr.mxu0 0.0
        %1874 = vmatpush1.msra.mxu0 0.0
        %1875 = vmatprep.subr.mxu0 0.0
        %1876 = vmatpush1.msra.mxu0 0.0
        %1877 = vmatprep.subr.mxu0 0.0
        %1878 = vmatpush1.msra.mxu0 0.0
        %1879 = vmatprep.subr.mxu0 0.0
        %1880 = vmatpush1.msra.mxu0 0.0
        %1881 = vmatprep.subr.mxu0 0.0
        %1882 = vmatpush1.msra.mxu0 0.0
        %1883 = vmatprep.subr.mxu0 0.0
        %1884 = vmatpush1.msra.mxu0 0.0
        %1885 = vmatprep.subr.mxu0 0.0
        %1886 = vmatpush1.msra.mxu0 0.0
        %1887 = vmatprep.subr.mxu0 0.0
        %1888 = vmatpush1.msra.mxu0 0.0
        %1889 = vmatprep.subr.mxu0 0.0
        %1890 = vmatpush1.msra.mxu0 0.0
        %1891 = vmatprep.subr.mxu0 0.0
        %1892 = vmatpush1.msra.mxu0 0.0
        %1893 = vmatprep.subr.mxu0 0.0
        %1894 = vmatpush1.msra.mxu0 0.0
        %1895 = vmatprep.subr.mxu0 0.0
        %1896 = vmatpush1.msra.mxu0 0.0
        %1897 = vmatprep.subr.mxu0 0.0
        %1898 = vmatpush1.msra.mxu0 0.0
        %1899 = vmatprep.subr.mxu0 0.0
        %1900 = vmatpush1.msra.mxu0 0.0
        %1901 = vmatprep.subr.mxu0 0.0
        %1902 = vmatpush1.msra.mxu0 0.0
        %1903 = vmatprep.subr.mxu0 0.0
        %1904 = vmatpush1.msra.mxu0 0.0
        %1905 = vmatprep.subr.mxu0 0.0
        %1906 = vmatpush1.msra.mxu0 0.0
        %1907 = vmatprep.subr.mxu0 0.0
        %1908 = vmatpush1.msra.mxu0 0.0
        %1909 = vmatprep.subr.mxu0 0.0
        %1910 = vmatpush1.msra.mxu0 0.0
        %1911 = vmatprep.subr.mxu0 0.0
        %1912 = vmatpush1.msra.mxu0 0.0
        %1913 = vmatprep.subr.mxu0 0.0
        %1914 = vmatpush1.msra.mxu0 0.0
        %1915 = vmatprep.subr.mxu0 0.0
        %1916 = vmatpush1.msra.mxu0 0.0
        %1917 = vmatprep.subr.mxu0 0.0
        %1918 = vmatpush1.msra.mxu0 0.0
        %1919 = vmatprep.subr.mxu0 0.0
        %1920 = vmatpush1.msra.mxu0 0.0
        %1921 = vmatprep.subr.mxu0 0.0
        %1922 = vmatpush1.msra.mxu0 0.0
        %1923 = vmatprep.subr.mxu0 0.0
        %1924 = vmatpush1.msra.mxu0 0.0
        %1925 = vmatprep.subr.mxu0 0.0
        %1926 = vmatpush1.msra.mxu0 0.0
        %1927 = vmatprep.subr.mxu0 0.0
        %1928 = vmatpush1.msra.mxu0 0.0
        %1929 = vmatprep.subr.mxu0 0.0
        %1930 = vmatpush1.msra.mxu0 0.0
        %1931 = vmatprep.subr.mxu0 0.0
        %1932 = vmatpush1.msra.mxu0 0.0
        %1933 = vmatprep.mubr.f32.mxu0 0.0
        %v1934 = vand.u32 %v1492, 4294901760
        %1935 = vmatmul.mubr.f32.gmra.mrb[0].mxu0 %v1934
        %v1936 = vpop.f32.mrb[0].mxu0
        %v1937 = vadd.f32 %v1865, %v1936
        %v1938 = vpop.f32.mrb[0].mxu0
        %1939 = vdwg.mxu0
        %vm1940 = vcmp.ge.f32.partialorder %v1937, 0.0
        %s1941 = scalar_lea.vmem %s5, 8
        %v1942 = vld [vmem:[%s1941] sm:$0xff]
        %1944 = vset.pattern.permute.xlu0 0
        %1945 = vperm.xlu0 %1944, %v1942
        %v1946 = vpop.permute.xlu0 %1945
        %v1948 = vmul.f32 %v1946, %v1937
        %v1949 = vsel %vm1940, %v1937, %v1948
        %s1950 = scalar_lea.vmem %s430, 8 [#allocation4]
        %1951 = vst [vmem:[%s1950] sm:$0xff] %v1949
        %s1952 = scalar_lea.vmem %s439, 8
        %v1953 = vld [vmem:[%s1952] sm:$0xff]
        %v1954 = vsel %vm446, %v1953, %v1949
        %1955 = vrot.lane.b32.xlu0 %v1954, 2
        %v1956 = vpop.permute.xlu0 %1955
        %v1957 = vsel %vm447, %v1953, %v1949
        %1958 = vrot.lane.b32.xlu0 %v1957, 4
        %v1959 = vpop.permute.xlu0 %1958
        %s1960 = scalar_lea.vmem %s6, 72
        %v1961 = vld [vmem:[%s1960] sm:$0xff]
        %s1962 = scalar_lea.vmem %s6, 80
        %v1963 = vld [vmem:[%s1962] sm:$0xff]
        %s1964 = scalar_lea.vmem %s6, 88
        %v1965 = vld [vmem:[%s1964] sm:$0xff]
        %s1966 = scalar_lea.vmem %s6, 96
        %v1967 = vld [vmem:[%s1966] sm:$0xff]
        %s1968 = scalar_lea.vmem %s6, 104
        %v1969 = vld [vmem:[%s1968] sm:$0xff]
        %s1970 = scalar_lea.vmem %s6, 112
        %v1971 = vld [vmem:[%s1970] sm:$0xff]
        %s1972 = scalar_lea.vmem %s6, 120
        %v1973 = vld [vmem:[%s1972] sm:$0xff]
        %s1974 = scalar_lea.vmem %s6, 128
        %v1975 = vld [vmem:[%s1974] sm:$0xff]
        %s1976 = scalar_lea.vmem %s6, 136
        %v1977 = vld [vmem:[%s1976] sm:$0xff]
        %1979 = vset.pattern.permute.xlu0 0
        %1980 = vperm.xlu0 %1979, %v1961
        %v1981 = vpop.permute.xlu0 %1980
        %v1983 = vmul.f32 %v1959, %v1981
        %1985 = vset.pattern.permute.xlu0 0
        %1986 = vperm.xlu0 %1985, %v1963
        %v1987 = vpop.permute.xlu0 %1986
        %v1989 = vmul.f32 %v1956, %v1987
        %v1990 = vadd.f32 %v1983, %v1989
        %1992 = vset.pattern.permute.xlu0 0
        %1993 = vperm.xlu0 %1992, %v1965
        %v1994 = vpop.permute.xlu0 %1993
        %v1996 = vmul.f32 %v1949, %v1994
        %v1997 = vadd.f32 %v1990, %v1996
        %1999 = vset.pattern.permute.xlu0 0
        %2000 = vperm.xlu0 %1999, %v1967
        %v2001 = vpop.permute.xlu0 %2000
        %v2003 = vmul.f32 %v1959, %v2001
        %2005 = vset.pattern.permute.xlu0 0
        %2006 = vperm.xlu0 %2005, %v1969
        %v2007 = vpop.permute.xlu0 %2006
        %v2009 = vmul.f32 %v1956, %v2007
        %v2010 = vadd.f32 %v2003, %v2009
        %2012 = vset.pattern.permute.xlu0 0
        %2013 = vperm.xlu0 %2012, %v1971
        %v2014 = vpop.permute.xlu0 %2013
        %v2016 = vmul.f32 %v1949, %v2014
        %v2017 = vadd.f32 %v2010, %v2016
        %2019 = vset.pattern.permute.xlu0 0
        %2020 = vperm.xlu0 %2019, %v1973
        %v2021 = vpop.permute.xlu0 %2020
        %v2023 = vmul.f32 %v1959, %v2021
        %2025 = vset.pattern.permute.xlu0 0
        %2026 = vperm.xlu0 %2025, %v1975
        %v2027 = vpop.permute.xlu0 %2026
        %v2029 = vmul.f32 %v1956, %v2027
        %v2030 = vadd.f32 %v2023, %v2029
        %2032 = vset.pattern.permute.xlu0 0
        %2033 = vperm.xlu0 %2032, %v1977
        %v2034 = vpop.permute.xlu0 %2033
        %v2036 = vmul.f32 %v1949, %v2034
        %v2037 = vadd.f32 %v2030, %v2036
        %2038 = vrot.lane.b32.xlu0 %v1997, 16
        %v2039 = vpop.permute.xlu0 %2038
        %v2040 = vsel %vm442, 0.0, %v2039
        %2041 = vrot.lane.b32.xlu0 %v2037, 112
        %v2042 = vpop.permute.xlu0 %2041
        %v2043 = vsel %vm443, 0.0, %v2042
        %v2044 = vadd.f32 %v2040, %v2017
        %v2045 = vadd.f32 %v2044, %v2043
        %s2046 = scalar_lea.vmem %s7, 8
        %v2047 = vld [vmem:[%s2046] sm:$0xff]
        %2049 = vset.pattern.permute.xlu0 0
        %2050 = vperm.xlu0 %2049, %v2047
        %v2051 = vpop.permute.xlu0 %2050
        %v2053 = vadd.f32 %v2045, %v2051
        %vm2054 = vcmp.ge.f32.partialorder %v2053, 0.0
        %s2055 = scalar_lea.vmem %s8, 8
        %v2056 = vld [vmem:[%s2055] sm:$0xff]
        %2058 = vset.pattern.permute.xlu0 0
        %2059 = vperm.xlu0 %2058, %v2056
        %v2060 = vpop.permute.xlu0 %2059
        %v2062 = vmul.f32 %v2060, %v2053
        %v2063 = vsel %vm2054, %v2053, %v2062
        %s2064 = scalar_lea.vmem %s9, 8
        %v2065 = vld [vmem:[%s2064] sm:$0xff]
        %s2066 = scalar_lea.vmem %s10, 8
        %v2067 = vld [vmem:[%s2066] sm:$0xff]
        %2069 = vset.pattern.permute.xlu0 0
        %2070 = vperm.xlu0 %2069, %v2067
        %v2071 = vpop.permute.xlu0 %2070
        %v2074 = vsel %vm457, %v2065, 0
        %2076 = vmatprep.subr.mxu0 0.0
        %v2077 = vand.u32 %v2063, 4294901760
        %2078 = vmatpush1.msra.mxu0 %v2077
        %2079 = vmatprep.subr.mxu0 0.0
        %2080 = vmatpush1.msra.mxu0 0.0
        %2081 = vmatprep.subr.mxu0 0.0
        %2082 = vmatpush1.msra.mxu0 0.0
        %2083 = vmatprep.subr.mxu0 0.0
        %2084 = vmatpush1.msra.mxu0 0.0
        %2085 = vmatprep.subr.mxu0 0.0
        %2086 = vmatpush1.msra.mxu0 0.0
        %2087 = vmatprep.subr.mxu0 0.0
        %2088 = vmatpush1.msra.mxu0 0.0
        %2089 = vmatprep.subr.mxu0 0.0
        %2090 = vmatpush1.msra.mxu0 0.0
        %2091 = vmatprep.subr.mxu0 0.0
        %2092 = vmatpush1.msra.mxu0 0.0
        %2093 = vmatprep.subr.mxu0 0.0
        %2094 = vmatpush1.msra.mxu0 0.0
        %2095 = vmatprep.subr.mxu0 0.0
        %2096 = vmatpush1.msra.mxu0 0.0
        %2097 = vmatprep.subr.mxu0 0.0
        %2098 = vmatpush1.msra.mxu0 0.0
        %2099 = vmatprep.subr.mxu0 0.0
        %2100 = vmatpush1.msra.mxu0 0.0
        %2101 = vmatprep.subr.mxu0 0.0
        %2102 = vmatpush1.msra.mxu0 0.0
        %2103 = vmatprep.subr.mxu0 0.0
        %2104 = vmatpush1.msra.mxu0 0.0
        %2105 = vmatprep.subr.mxu0 0.0
        %2106 = vmatpush1.msra.mxu0 0.0
        %2107 = vmatprep.subr.mxu0 0.0
        %2108 = vmatpush1.msra.mxu0 0.0
        %2109 = vmatprep.subr.mxu0 0.0
        %2110 = vmatpush1.msra.mxu0 0.0
        %2111 = vmatprep.subr.mxu0 0.0
        %2112 = vmatpush1.msra.mxu0 0.0
        %2113 = vmatprep.subr.mxu0 0.0
        %2114 = vmatpush1.msra.mxu0 0.0
        %2115 = vmatprep.subr.mxu0 0.0
        %2116 = vmatpush1.msra.mxu0 0.0
        %2117 = vmatprep.subr.mxu0 0.0
        %2118 = vmatpush1.msra.mxu0 0.0
        %2119 = vmatprep.subr.mxu0 0.0
        %2120 = vmatpush1.msra.mxu0 0.0
        %2121 = vmatprep.subr.mxu0 0.0
        %2122 = vmatpush1.msra.mxu0 0.0
        %2123 = vmatprep.subr.mxu0 0.0
        %2124 = vmatpush1.msra.mxu0 0.0
        %2125 = vmatprep.subr.mxu0 0.0
        %2126 = vmatpush1.msra.mxu0 0.0
        %2127 = vmatprep.subr.mxu0 0.0
        %2128 = vmatpush1.msra.mxu0 0.0
        %2129 = vmatprep.subr.mxu0 0.0
        %2130 = vmatpush1.msra.mxu0 0.0
        %2131 = vmatprep.subr.mxu0 0.0
        %2132 = vmatpush1.msra.mxu0 0.0
        %2133 = vmatprep.subr.mxu0 0.0
        %2134 = vmatpush1.msra.mxu0 0.0
        %2135 = vmatprep.subr.mxu0 0.0
        %2136 = vmatpush1.msra.mxu0 0.0
        %2137 = vmatprep.subr.mxu0 0.0
        %2138 = vmatpush1.msra.mxu0 0.0
        %2139 = vmatprep.subr.mxu0 0.0
        %2140 = vmatpush1.msra.mxu0 0.0
        %2141 = vmatprep.mubr.f32.mxu0 0.0
        %v2142 = vand.u32 %v2074, 4294901760
        %v2143 = vsub.f32 %v2074, %v2142
        %v2144 = vand.u32 %v2143, 4294901760
        %v2145 = vsub.f32 %v2143, %v2144
        %v2146 = vand.u32 %v2145, 4294901760
        %2147 = vmatmul.mubr.f32.gmra.mrb[0].mxu0 %v2146
        %v2148 = vpop.f32.mrb[0].mxu0
        %v2149 = vadd.f32 %v2071, %v2148
        %v2150 = vpop.f32.mrb[0].mxu0
        %2151 = vdwg.mxu0
        %2152 = vmatprep.subr.mxu0 0.0
        %v2153 = vand.u32 %v2063, 4294901760
        %v2154 = vsub.f32 %v2063, %v2153
        %v2155 = vand.u32 %v2154, 4294901760
        %v2156 = vsub.f32 %v2154, %v2155
        %v2157 = vand.u32 %v2156, 4294901760
        %2158 = vmatpush1.msra.mxu0 %v2157
        %2159 = vmatprep.subr.mxu0 0.0
        %2160 = vmatpush1.msra.mxu0 0.0
        %2161 = vmatprep.subr.mxu0 0.0
        %2162 = vmatpush1.msra.mxu0 0.0
        %2163 = vmatprep.subr.mxu0 0.0
        %2164 = vmatpush1.msra.mxu0 0.0
        %2165 = vmatprep.subr.mxu0 0.0
        %2166 = vmatpush1.msra.mxu0 0.0
        %2167 = vmatprep.subr.mxu0 0.0
        %2168 = vmatpush1.msra.mxu0 0.0
        %2169 = vmatprep.subr.mxu0 0.0
        %2170 = vmatpush1.msra.mxu0 0.0
        %2171 = vmatprep.subr.mxu0 0.0
        %2172 = vmatpush1.msra.mxu0 0.0
        %2173 = vmatprep.subr.mxu0 0.0
        %2174 = vmatpush1.msra.mxu0 0.0
        %2175 = vmatprep.subr.mxu0 0.0
        %2176 = vmatpush1.msra.mxu0 0.0
        %2177 = vmatprep.subr.mxu0 0.0
        %2178 = vmatpush1.msra.mxu0 0.0
        %2179 = vmatprep.subr.mxu0 0.0
        %2180 = vmatpush1.msra.mxu0 0.0
        %2181 = vmatprep.subr.mxu0 0.0
        %2182 = vmatpush1.msra.mxu0 0.0
        %2183 = vmatprep.subr.mxu0 0.0
        %2184 = vmatpush1.msra.mxu0 0.0
        %2185 = vmatprep.subr.mxu0 0.0
        %2186 = vmatpush1.msra.mxu0 0.0
        %2187 = vmatprep.subr.mxu0 0.0
        %2188 = vmatpush1.msra.mxu0 0.0
        %2189 = vmatprep.subr.mxu0 0.0
        %2190 = vmatpush1.msra.mxu0 0.0
        %2191 = vmatprep.subr.mxu0 0.0
        %2192 = vmatpush1.msra.mxu0 0.0
        %2193 = vmatprep.subr.mxu0 0.0
        %2194 = vmatpush1.msra.mxu0 0.0
        %2195 = vmatprep.subr.mxu0 0.0
        %2196 = vmatpush1.msra.mxu0 0.0
        %2197 = vmatprep.subr.mxu0 0.0
        %2198 = vmatpush1.msra.mxu0 0.0
        %2199 = vmatprep.subr.mxu0 0.0
        %2200 = vmatpush1.msra.mxu0 0.0
        %2201 = vmatprep.subr.mxu0 0.0
        %2202 = vmatpush1.msra.mxu0 0.0
        %2203 = vmatprep.subr.mxu0 0.0
        %2204 = vmatpush1.msra.mxu0 0.0
        %2205 = vmatprep.subr.mxu0 0.0
        %2206 = vmatpush1.msra.mxu0 0.0
        %2207 = vmatprep.subr.mxu0 0.0
        %2208 = vmatpush1.msra.mxu0 0.0
        %2209 = vmatprep.subr.mxu0 0.0
        %2210 = vmatpush1.msra.mxu0 0.0
        %2211 = vmatprep.subr.mxu0 0.0
        %2212 = vmatpush1.msra.mxu0 0.0
        %2213 = vmatprep.subr.mxu0 0.0
        %2214 = vmatpush1.msra.mxu0 0.0
        %2215 = vmatprep.subr.mxu0 0.0
        %2216 = vmatpush1.msra.mxu0 0.0
        %2217 = vmatprep.subr.mxu0 0.0
        %2218 = vmatpush1.msra.mxu0 0.0
        %2219 = vmatprep.subr.mxu0 0.0
        %2220 = vmatpush1.msra.mxu0 0.0
        %2221 = vmatprep.mubr.f32.mxu0 0.0
        %v2222 = vand.u32 %v2074, 4294901760
        %2223 = vmatmul.mubr.f32.gmra.mrb[0].mxu0 %v2222
        %v2224 = vpop.f32.mrb[0].mxu0
        %v2225 = vadd.f32 %v2149, %v2224
        %v2226 = vpop.f32.mrb[0].mxu0
        %2227 = vdwg.mxu0
        %2228 = vmatprep.subr.mxu0 0.0
        %v2229 = vand.u32 %v2063, 4294901760
        %v2230 = vsub.f32 %v2063, %v2229
        %2231 = vmatpush1.msra.mxu0 %v2230
        %2232 = vmatprep.subr.mxu0 0.0
        %2233 = vmatpush1.msra.mxu0 0.0
        %2234 = vmatprep.subr.mxu0 0.0
        %2235 = vmatpush1.msra.mxu0 0.0
        %2236 = vmatprep.subr.mxu0 0.0
        %2237 = vmatpush1.msra.mxu0 0.0
        %2238 = vmatprep.subr.mxu0 0.0
        %2239 = vmatpush1.msra.mxu0 0.0
        %2240 = vmatprep.subr.mxu0 0.0
        %2241 = vmatpush1.msra.mxu0 0.0
        %2242 = vmatprep.subr.mxu0 0.0
        %2243 = vmatpush1.msra.mxu0 0.0
        %2244 = vmatprep.subr.mxu0 0.0
        %2245 = vmatpush1.msra.mxu0 0.0
        %2246 = vmatprep.subr.mxu0 0.0
        %2247 = vmatpush1.msra.mxu0 0.0
        %2248 = vmatprep.subr.mxu0 0.0
        %2249 = vmatpush1.msra.mxu0 0.0
        %2250 = vmatprep.subr.mxu0 0.0
        %2251 = vmatpush1.msra.mxu0 0.0
        %2252 = vmatprep.subr.mxu0 0.0
        %2253 = vmatpush1.msra.mxu0 0.0
        %2254 = vmatprep.subr.mxu0 0.0
        %2255 = vmatpush1.msra.mxu0 0.0
        %2256 = vmatprep.subr.mxu0 0.0
        %2257 = vmatpush1.msra.mxu0 0.0
        %2258 = vmatprep.subr.mxu0 0.0
        %2259 = vmatpush1.msra.mxu0 0.0
        %2260 = vmatprep.subr.mxu0 0.0
        %2261 = vmatpush1.msra.mxu0 0.0
        %2262 = vmatprep.subr.mxu0 0.0
        %2263 = vmatpush1.msra.mxu0 0.0
        %2264 = vmatprep.subr.mxu0 0.0
        %2265 = vmatpush1.msra.mxu0 0.0
        %2266 = vmatprep.subr.mxu0 0.0
        %2267 = vmatpush1.msra.mxu0 0.0
        %2268 = vmatprep.subr.mxu0 0.0
        %2269 = vmatpush1.msra.mxu0 0.0
        %2270 = vmatprep.subr.mxu0 0.0
        %2271 = vmatpush1.msra.mxu0 0.0
        %2272 = vmatprep.subr.mxu0 0.0
        %2273 = vmatpush1.msra.mxu0 0.0
        %2274 = vmatprep.subr.mxu0 0.0
        %2275 = vmatpush1.msra.mxu0 0.0
        %2276 = vmatprep.subr.mxu0 0.0
        %2277 = vmatpush1.msra.mxu0 0.0
        %2278 = vmatprep.subr.mxu0 0.0
        %2279 = vmatpush1.msra.mxu0 0.0
        %2280 = vmatprep.subr.mxu0 0.0
        %2281 = vmatpush1.msra.mxu0 0.0
        %2282 = vmatprep.subr.mxu0 0.0
        %2283 = vmatpush1.msra.mxu0 0.0
        %2284 = vmatprep.subr.mxu0 0.0
        %2285 = vmatpush1.msra.mxu0 0.0
        %2286 = vmatprep.subr.mxu0 0.0
        %2287 = vmatpush1.msra.mxu0 0.0
        %2288 = vmatprep.subr.mxu0 0.0
        %2289 = vmatpush1.msra.mxu0 0.0
        %2290 = vmatprep.subr.mxu0 0.0
        %2291 = vmatpush1.msra.mxu0 0.0
        %2292 = vmatprep.subr.mxu0 0.0
        %2293 = vmatpush1.msra.mxu0 0.0
        %2294 = vmatprep.mubr.f32.mxu0 0.0
        %v2295 = vand.u32 %v2074, 4294901760
        %v2296 = vsub.f32 %v2074, %v2295
        %2297 = vmatmul.mubr.f32.gmra.mrb[0].mxu0 %v2296
        %v2298 = vpop.f32.mrb[0].mxu0
        %v2299 = vadd.f32 %v2225, %v2298
        %v2300 = vpop.f32.mrb[0].mxu0
        %2301 = vdwg.mxu0
        %2302 = vmatprep.subr.mxu0 0.0
        %v2303 = vand.u32 %v2063, 4294901760
        %2304 = vmatpush1.msra.mxu0 %v2303
        %2305 = vmatprep.subr.mxu0 0.0
        %2306 = vmatpush1.msra.mxu0 0.0
        %2307 = vmatprep.subr.mxu0 0.0
        %2308 = vmatpush1.msra.mxu0 0.0
        %2309 = vmatprep.subr.mxu0 0.0
        %2310 = vmatpush1.msra.mxu0 0.0
        %2311 = vmatprep.subr.mxu0 0.0
        %2312 = vmatpush1.msra.mxu0 0.0
        %2313 = vmatprep.subr.mxu0 0.0
        %2314 = vmatpush1.msra.mxu0 0.0
        %2315 = vmatprep.subr.mxu0 0.0
        %2316 = vmatpush1.msra.mxu0 0.0
        %2317 = vmatprep.subr.mxu0 0.0
        %2318 = vmatpush1.msra.mxu0 0.0
        %2319 = vmatprep.subr.mxu0 0.0
        %2320 = vmatpush1.msra.mxu0 0.0
        %2321 = vmatprep.subr.mxu0 0.0
        %2322 = vmatpush1.msra.mxu0 0.0
        %2323 = vmatprep.subr.mxu0 0.0
        %2324 = vmatpush1.msra.mxu0 0.0
        %2325 = vmatprep.subr.mxu0 0.0
        %2326 = vmatpush1.msra.mxu0 0.0
        %2327 = vmatprep.subr.mxu0 0.0
        %2328 = vmatpush1.msra.mxu0 0.0
        %2329 = vmatprep.subr.mxu0 0.0
        %2330 = vmatpush1.msra.mxu0 0.0
        %2331 = vmatprep.subr.mxu0 0.0
        %2332 = vmatpush1.msra.mxu0 0.0
        %2333 = vmatprep.subr.mxu0 0.0
        %2334 = vmatpush1.msra.mxu0 0.0
        %2335 = vmatprep.subr.mxu0 0.0
        %2336 = vmatpush1.msra.mxu0 0.0
        %2337 = vmatprep.subr.mxu0 0.0
        %2338 = vmatpush1.msra.mxu0 0.0
        %2339 = vmatprep.subr.mxu0 0.0
        %2340 = vmatpush1.msra.mxu0 0.0
        %2341 = vmatprep.subr.mxu0 0.0
        %2342 = vmatpush1.msra.mxu0 0.0
        %2343 = vmatprep.subr.mxu0 0.0
        %2344 = vmatpush1.msra.mxu0 0.0
        %2345 = vmatprep.subr.mxu0 0.0
        %2346 = vmatpush1.msra.mxu0 0.0
        %2347 = vmatprep.subr.mxu0 0.0
        %2348 = vmatpush1.msra.mxu0 0.0
        %2349 = vmatprep.subr.mxu0 0.0
        %2350 = vmatpush1.msra.mxu0 0.0
        %2351 = vmatprep.subr.mxu0 0.0
        %2352 = vmatpush1.msra.mxu0 0.0
        %2353 = vmatprep.subr.mxu0 0.0
        %2354 = vmatpush1.msra.mxu0 0.0
        %2355 = vmatprep.subr.mxu0 0.0
        %2356 = vmatpush1.msra.mxu0 0.0
        %2357 = vmatprep.subr.mxu0 0.0
        %2358 = vmatpush1.msra.mxu0 0.0
        %2359 = vmatprep.subr.mxu0 0.0
        %2360 = vmatpush1.msra.mxu0 0.0
        %2361 = vmatprep.subr.mxu0 0.0
        %2362 = vmatpush1.msra.mxu0 0.0
        %2363 = vmatprep.subr.mxu0 0.0
        %2364 = vmatpush1.msra.mxu0 0.0
        %2365 = vmatprep.subr.mxu0 0.0
        %2366 = vmatpush1.msra.mxu0 0.0
        %2367 = vmatprep.mubr.f32.mxu0 0.0
        %v2368 = vand.u32 %v2074, 4294901760
        %v2369 = vsub.f32 %v2074, %v2368
        %v2370 = vand.u32 %v2369, 4294901760
        %2371 = vmatmul.mubr.f32.gmra.mrb[0].mxu0 %v2370
        %v2372 = vpop.f32.mrb[0].mxu0
        %v2373 = vadd.f32 %v2299, %v2372
        %v2374 = vpop.f32.mrb[0].mxu0
        %2375 = vdwg.mxu0
        %2376 = vmatprep.subr.mxu0 0.0
        %v2377 = vand.u32 %v2063, 4294901760
        %v2378 = vsub.f32 %v2063, %v2377
        %v2379 = vand.u32 %v2378, 4294901760
        %2380 = vmatpush1.msra.mxu0 %v2379
        %2381 = vmatprep.subr.mxu0 0.0
        %2382 = vmatpush1.msra.mxu0 0.0
        %2383 = vmatprep.subr.mxu0 0.0
        %2384 = vmatpush1.msra.mxu0 0.0
        %2385 = vmatprep.subr.mxu0 0.0
        %2386 = vmatpush1.msra.mxu0 0.0
        %2387 = vmatprep.subr.mxu0 0.0
        %2388 = vmatpush1.msra.mxu0 0.0
        %2389 = vmatprep.subr.mxu0 0.0
        %2390 = vmatpush1.msra.mxu0 0.0
        %2391 = vmatprep.subr.mxu0 0.0
        %2392 = vmatpush1.msra.mxu0 0.0
        %2393 = vmatprep.subr.mxu0 0.0
        %2394 = vmatpush1.msra.mxu0 0.0
        %2395 = vmatprep.subr.mxu0 0.0
        %2396 = vmatpush1.msra.mxu0 0.0
        %2397 = vmatprep.subr.mxu0 0.0
        %2398 = vmatpush1.msra.mxu0 0.0
        %2399 = vmatprep.subr.mxu0 0.0
        %2400 = vmatpush1.msra.mxu0 0.0
        %2401 = vmatprep.subr.mxu0 0.0
        %2402 = vmatpush1.msra.mxu0 0.0
        %2403 = vmatprep.subr.mxu0 0.0
        %2404 = vmatpush1.msra.mxu0 0.0
        %2405 = vmatprep.subr.mxu0 0.0
        %2406 = vmatpush1.msra.mxu0 0.0
        %2407 = vmatprep.subr.mxu0 0.0
        %2408 = vmatpush1.msra.mxu0 0.0
        %2409 = vmatprep.subr.mxu0 0.0
        %2410 = vmatpush1.msra.mxu0 0.0
        %2411 = vmatprep.subr.mxu0 0.0
        %2412 = vmatpush1.msra.mxu0 0.0
        %2413 = vmatprep.subr.mxu0 0.0
        %2414 = vmatpush1.msra.mxu0 0.0
        %2415 = vmatprep.subr.mxu0 0.0
        %2416 = vmatpush1.msra.mxu0 0.0
        %2417 = vmatprep.subr.mxu0 0.0
        %2418 = vmatpush1.msra.mxu0 0.0
        %2419 = vmatprep.subr.mxu0 0.0
        %2420 = vmatpush1.msra.mxu0 0.0
        %2421 = vmatprep.subr.mxu0 0.0
        %2422 = vmatpush1.msra.mxu0 0.0
        %2423 = vmatprep.subr.mxu0 0.0
        %2424 = vmatpush1.msra.mxu0 0.0
        %2425 = vmatprep.subr.mxu0 0.0
        %2426 = vmatpush1.msra.mxu0 0.0
        %2427 = vmatprep.subr.mxu0 0.0
        %2428 = vmatpush1.msra.mxu0 0.0
        %2429 = vmatprep.subr.mxu0 0.0
        %2430 = vmatpush1.msra.mxu0 0.0
        %2431 = vmatprep.subr.mxu0 0.0
        %2432 = vmatpush1.msra.mxu0 0.0
        %2433 = vmatprep.subr.mxu0 0.0
        %2434 = vmatpush1.msra.mxu0 0.0
        %2435 = vmatprep.subr.mxu0 0.0
        %2436 = vmatpush1.msra.mxu0 0.0
        %2437 = vmatprep.subr.mxu0 0.0
        %2438 = vmatpush1.msra.mxu0 0.0
        %2439 = vmatprep.subr.mxu0 0.0
        %2440 = vmatpush1.msra.mxu0 0.0
        %2441 = vmatprep.subr.mxu0 0.0
        %2442 = vmatpush1.msra.mxu0 0.0
        %2443 = vmatprep.mubr.f32.mxu0 0.0
        %v2444 = vand.u32 %v2074, 4294901760
        %2445 = vmatmul.mubr.f32.gmra.mrb[0].mxu0 %v2444
        %v2446 = vpop.f32.mrb[0].mxu0
        %v2447 = vadd.f32 %v2373, %v2446
        %v2448 = vpop.f32.mrb[0].mxu0
        %2449 = vdwg.mxu0
        %2450 = vmatprep.subr.mxu0 0.0
        %v2451 = vand.u32 %v2063, 4294901760
        %2452 = vmatpush1.msra.mxu0 %v2451
        %2453 = vmatprep.subr.mxu0 0.0
        %2454 = vmatpush1.msra.mxu0 0.0
        %2455 = vmatprep.subr.mxu0 0.0
        %2456 = vmatpush1.msra.mxu0 0.0
        %2457 = vmatprep.subr.mxu0 0.0
        %2458 = vmatpush1.msra.mxu0 0.0
        %2459 = vmatprep.subr.mxu0 0.0
        %2460 = vmatpush1.msra.mxu0 0.0
        %2461 = vmatprep.subr.mxu0 0.0
        %2462 = vmatpush1.msra.mxu0 0.0
        %2463 = vmatprep.subr.mxu0 0.0
        %2464 = vmatpush1.msra.mxu0 0.0
        %2465 = vmatprep.subr.mxu0 0.0
        %2466 = vmatpush1.msra.mxu0 0.0
        %2467 = vmatprep.subr.mxu0 0.0
        %2468 = vmatpush1.msra.mxu0 0.0
        %2469 = vmatprep.subr.mxu0 0.0
        %2470 = vmatpush1.msra.mxu0 0.0
        %2471 = vmatprep.subr.mxu0 0.0
        %2472 = vmatpush1.msra.mxu0 0.0
        %2473 = vmatprep.subr.mxu0 0.0
        %2474 = vmatpush1.msra.mxu0 0.0
        %2475 = vmatprep.subr.mxu0 0.0
        %2476 = vmatpush1.msra.mxu0 0.0
        %2477 = vmatprep.subr.mxu0 0.0
        %2478 = vmatpush1.msra.mxu0 0.0
        %2479 = vmatprep.subr.mxu0 0.0
        %2480 = vmatpush1.msra.mxu0 0.0
        %2481 = vmatprep.subr.mxu0 0.0
        %2482 = vmatpush1.msra.mxu0 0.0
        %2483 = vmatprep.subr.mxu0 0.0
        %2484 = vmatpush1.msra.mxu0 0.0
        %2485 = vmatprep.subr.mxu0 0.0
        %2486 = vmatpush1.msra.mxu0 0.0
        %2487 = vmatprep.subr.mxu0 0.0
        %2488 = vmatpush1.msra.mxu0 0.0
        %2489 = vmatprep.subr.mxu0 0.0
        %2490 = vmatpush1.msra.mxu0 0.0
        %2491 = vmatprep.subr.mxu0 0.0
        %2492 = vmatpush1.msra.mxu0 0.0
        %2493 = vmatprep.subr.mxu0 0.0
        %2494 = vmatpush1.msra.mxu0 0.0
        %2495 = vmatprep.subr.mxu0 0.0
        %2496 = vmatpush1.msra.mxu0 0.0
        %2497 = vmatprep.subr.mxu0 0.0
        %2498 = vmatpush1.msra.mxu0 0.0
        %2499 = vmatprep.subr.mxu0 0.0
        %2500 = vmatpush1.msra.mxu0 0.0
        %2501 = vmatprep.subr.mxu0 0.0
        %2502 = vmatpush1.msra.mxu0 0.0
        %2503 = vmatprep.subr.mxu0 0.0
        %2504 = vmatpush1.msra.mxu0 0.0
        %2505 = vmatprep.subr.mxu0 0.0
        %2506 = vmatpush1.msra.mxu0 0.0
        %2507 = vmatprep.subr.mxu0 0.0
        %2508 = vmatpush1.msra.mxu0 0.0
        %2509 = vmatprep.subr.mxu0 0.0
        %2510 = vmatpush1.msra.mxu0 0.0
        %2511 = vmatprep.subr.mxu0 0.0
        %2512 = vmatpush1.msra.mxu0 0.0
        %2513 = vmatprep.subr.mxu0 0.0
        %2514 = vmatpush1.msra.mxu0 0.0
        %2515 = vmatprep.mubr.f32.mxu0 0.0
        %v2516 = vand.u32 %v2074, 4294901760
        %2517 = vmatmul.mubr.f32.gmra.mrb[0].mxu0 %v2516
        %v2518 = vpop.f32.mrb[0].mxu0
        %v2519 = vadd.f32 %v2447, %v2518
        %v2520 = vpop.f32.mrb[0].mxu0
        %2521 = vdwg.mxu0
        %v2522 = vadd.f32 %v2519, %v1481
        %s2523 = scalar_lea.vmem %s3, 16
        %v2524 = vld [vmem:[%s2523] sm:$0xff]
        %s2525 = scalar_lea.vmem %s4, 16
        %v2526 = vld [vmem:[%s2525] sm:$0xff]
        %2528 = vset.pattern.permute.xlu0 0
        %2529 = vperm.xlu0 %2528, %v2526
        %v2530 = vpop.permute.xlu0 %2529
        %v2533 = vsel %vm457, %v2524, 0
        %2535 = vmatprep.subr.mxu0 0.0
        %v2536 = vand.u32 %v2522, 4294901760
        %2537 = vmatpush1.msra.mxu0 %v2536
        %2538 = vmatprep.subr.mxu0 0.0
        %2539 = vmatpush1.msra.mxu0 0.0
        %2540 = vmatprep.subr.mxu0 0.0
        %2541 = vmatpush1.msra.mxu0 0.0
        %2542 = vmatprep.subr.mxu0 0.0
        %2543 = vmatpush1.msra.mxu0 0.0
        %2544 = vmatprep.subr.mxu0 0.0
        %2545 = vmatpush1.msra.mxu0 0.0
        %2546 = vmatprep.subr.mxu0 0.0
        %2547 = vmatpush1.msra.mxu0 0.0
        %2548 = vmatprep.subr.mxu0 0.0
        %2549 = vmatpush1.msra.mxu0 0.0
        %2550 = vmatprep.subr.mxu0 0.0
        %2551 = vmatpush1.msra.mxu0 0.0
        %2552 = vmatprep.subr.mxu0 0.0
        %2553 = vmatpush1.msra.mxu0 0.0
        %2554 = vmatprep.subr.mxu0 0.0
        %2555 = vmatpush1.msra.mxu0 0.0
        %2556 = vmatprep.subr.mxu0 0.0
        %2557 = vmatpush1.msra.mxu0 0.0
        %2558 = vmatprep.subr.mxu0 0.0
        %2559 = vmatpush1.msra.mxu0 0.0
        %2560 = vmatprep.subr.mxu0 0.0
        %2561 = vmatpush1.msra.mxu0 0.0
        %2562 = vmatprep.subr.mxu0 0.0
        %2563 = vmatpush1.msra.mxu0 0.0
        %2564 = vmatprep.subr.mxu0 0.0
        %2565 = vmatpush1.msra.mxu0 0.0
        %2566 = vmatprep.subr.mxu0 0.0
        %2567 = vmatpush1.msra.mxu0 0.0
        %2568 = vmatprep.subr.mxu0 0.0
        %2569 = vmatpush1.msra.mxu0 0.0
        %2570 = vmatprep.subr.mxu0 0.0
        %2571 = vmatpush1.msra.mxu0 0.0
        %2572 = vmatprep.subr.mxu0 0.0
        %2573 = vmatpush1.msra.mxu0 0.0
        %2574 = vmatprep.subr.mxu0 0.0
        %2575 = vmatpush1.msra.mxu0 0.0
        %2576 = vmatprep.subr.mxu0 0.0
        %2577 = vmatpush1.msra.mxu0 0.0
        %2578 = vmatprep.subr.mxu0 0.0
        %2579 = vmatpush1.msra.mxu0 0.0
        %2580 = vmatprep.subr.mxu0 0.0
        %2581 = vmatpush1.msra.mxu0 0.0
        %2582 = vmatprep.subr.mxu0 0.0
        %2583 = vmatpush1.msra.mxu0 0.0
        %2584 = vmatprep.subr.mxu0 0.0
        %2585 = vmatpush1.msra.mxu0 0.0
        %2586 = vmatprep.subr.mxu0 0.0
        %2587 = vmatpush1.msra.mxu0 0.0
        %2588 = vmatprep.subr.mxu0 0.0
        %2589 = vmatpush1.msra.mxu0 0.0
        %2590 = vmatprep.subr.mxu0 0.0
        %2591 = vmatpush1.msra.mxu0 0.0
        %2592 = vmatprep.subr.mxu0 0.0
        %2593 = vmatpush1.msra.mxu0 0.0
        %2594 = vmatprep.subr.mxu0 0.0
        %2595 = vmatpush1.msra.mxu0 0.0
        %2596 = vmatprep.subr.mxu0 0.0
        %2597 = vmatpush1.msra.mxu0 0.0
        %2598 = vmatprep.subr.mxu0 0.0
        %2599 = vmatpush1.msra.mxu0 0.0
        %2600 = vmatprep.mubr.f32.mxu0 0.0
        %v2601 = vand.u32 %v2533, 4294901760
        %v2602 = vsub.f32 %v2533, %v2601
        %v2603 = vand.u32 %v2602, 4294901760
        %v2604 = vsub.f32 %v2602, %v2603
        %v2605 = vand.u32 %v2604, 4294901760
        %2606 = vmatmul.mubr.f32.gmra.mrb[0].mxu0 %v2605
        %v2607 = vpop.f32.mrb[0].mxu0
        %v2608 = vadd.f32 %v2530, %v2607
        %v2609 = vpop.f32.mrb[0].mxu0
        %2610 = vdwg.mxu0
        %2611 = vmatprep.subr.mxu0 0.0
        %v2612 = vand.u32 %v2522, 4294901760
        %v2613 = vsub.f32 %v2522, %v2612
        %v2614 = vand.u32 %v2613, 4294901760
        %v2615 = vsub.f32 %v2613, %v2614
        %v2616 = vand.u32 %v2615, 4294901760
        %2617 = vmatpush1.msra.mxu0 %v2616
        %2618 = vmatprep.subr.mxu0 0.0
        %2619 = vmatpush1.msra.mxu0 0.0
        %2620 = vmatprep.subr.mxu0 0.0
        %2621 = vmatpush1.msra.mxu0 0.0
        %2622 = vmatprep.subr.mxu0 0.0
        %2623 = vmatpush1.msra.mxu0 0.0
        %2624 = vmatprep.subr.mxu0 0.0
        %2625 = vmatpush1.msra.mxu0 0.0
        %2626 = vmatprep.subr.mxu0 0.0
        %2627 = vmatpush1.msra.mxu0 0.0
        %2628 = vmatprep.subr.mxu0 0.0
        %2629 = vmatpush1.msra.mxu0 0.0
        %2630 = vmatprep.subr.mxu0 0.0
        %2631 = vmatpush1.msra.mxu0 0.0
        %2632 = vmatprep.subr.mxu0 0.0
        %2633 = vmatpush1.msra.mxu0 0.0
        %2634 = vmatprep.subr.mxu0 0.0
        %2635 = vmatpush1.msra.mxu0 0.0
        %2636 = vmatprep.subr.mxu0 0.0
        %2637 = vmatpush1.msra.mxu0 0.0
        %2638 = vmatprep.subr.mxu0 0.0
        %2639 = vmatpush1.msra.mxu0 0.0
        %2640 = vmatprep.subr.mxu0 0.0
        %2641 = vmatpush1.msra.mxu0 0.0
        %2642 = vmatprep.subr.mxu0 0.0
        %2643 = vmatpush1.msra.mxu0 0.0
        %2644 = vmatprep.subr.mxu0 0.0
        %2645 = vmatpush1.msra.mxu0 0.0
        %2646 = vmatprep.subr.mxu0 0.0
        %2647 = vmatpush1.msra.mxu0 0.0
        %2648 = vmatprep.subr.mxu0 0.0
        %2649 = vmatpush1.msra.mxu0 0.0
        %2650 = vmatprep.subr.mxu0 0.0
        %2651 = vmatpush1.msra.mxu0 0.0
        %2652 = vmatprep.subr.mxu0 0.0
        %2653 = vmatpush1.msra.mxu0 0.0
        %2654 = vmatprep.subr.mxu0 0.0
        %2655 = vmatpush1.msra.mxu0 0.0
        %2656 = vmatprep.subr.mxu0 0.0
        %2657 = vmatpush1.msra.mxu0 0.0
        %2658 = vmatprep.subr.mxu0 0.0
        %2659 = vmatpush1.msra.mxu0 0.0
        %2660 = vmatprep.subr.mxu0 0.0
        %2661 = vmatpush1.msra.mxu0 0.0
        %2662 = vmatprep.subr.mxu0 0.0
        %2663 = vmatpush1.msra.mxu0 0.0
        %2664 = vmatprep.subr.mxu0 0.0
        %2665 = vmatpush1.msra.mxu0 0.0
        %2666 = vmatprep.subr.mxu0 0.0
        %2667 = vmatpush1.msra.mxu0 0.0
        %2668 = vmatprep.subr.mxu0 0.0
        %2669 = vmatpush1.msra.mxu0 0.0
        %2670 = vmatprep.subr.mxu0 0.0
        %2671 = vmatpush1.msra.mxu0 0.0
        %2672 = vmatprep.subr.mxu0 0.0
        %2673 = vmatpush1.msra.mxu0 0.0
        %2674 = vmatprep.subr.mxu0 0.0
        %2675 = vmatpush1.msra.mxu0 0.0
        %2676 = vmatprep.subr.mxu0 0.0
        %2677 = vmatpush1.msra.mxu0 0.0
        %2678 = vmatprep.subr.mxu0 0.0
        %2679 = vmatpush1.msra.mxu0 0.0
        %2680 = vmatprep.mubr.f32.mxu0 0.0
        %v2681 = vand.u32 %v2533, 4294901760
        %2682 = vmatmul.mubr.f32.gmra.mrb[0].mxu0 %v2681
        %v2683 = vpop.f32.mrb[0].mxu0
        %v2684 = vadd.f32 %v2608, %v2683
        %v2685 = vpop.f32.mrb[0].mxu0
        %2686 = vdwg.mxu0
        %2687 = vmatprep.subr.mxu0 0.0
        %v2688 = vand.u32 %v2522, 4294901760
        %v2689 = vsub.f32 %v2522, %v2688
        %2690 = vmatpush1.msra.mxu0 %v2689
        %2691 = vmatprep.subr.mxu0 0.0
        %2692 = vmatpush1.msra.mxu0 0.0
        %2693 = vmatprep.subr.mxu0 0.0
        %2694 = vmatpush1.msra.mxu0 0.0
        %2695 = vmatprep.subr.mxu0 0.0
        %2696 = vmatpush1.msra.mxu0 0.0
        %2697 = vmatprep.subr.mxu0 0.0
        %2698 = vmatpush1.msra.mxu0 0.0
        %2699 = vmatprep.subr.mxu0 0.0
        %2700 = vmatpush1.msra.mxu0 0.0
        %2701 = vmatprep.subr.mxu0 0.0
        %2702 = vmatpush1.msra.mxu0 0.0
        %2703 = vmatprep.subr.mxu0 0.0
        %2704 = vmatpush1.msra.mxu0 0.0
        %2705 = vmatprep.subr.mxu0 0.0
        %2706 = vmatpush1.msra.mxu0 0.0
        %2707 = vmatprep.subr.mxu0 0.0
        %2708 = vmatpush1.msra.mxu0 0.0
        %2709 = vmatprep.subr.mxu0 0.0
        %2710 = vmatpush1.msra.mxu0 0.0
        %2711 = vmatprep.subr.mxu0 0.0
        %2712 = vmatpush1.msra.mxu0 0.0
        %2713 = vmatprep.subr.mxu0 0.0
        %2714 = vmatpush1.msra.mxu0 0.0
        %2715 = vmatprep.subr.mxu0 0.0
        %2716 = vmatpush1.msra.mxu0 0.0
        %2717 = vmatprep.subr.mxu0 0.0
        %2718 = vmatpush1.msra.mxu0 0.0
        %2719 = vmatprep.subr.mxu0 0.0
        %2720 = vmatpush1.msra.mxu0 0.0
        %2721 = vmatprep.subr.mxu0 0.0
        %2722 = vmatpush1.msra.mxu0 0.0
        %2723 = vmatprep.subr.mxu0 0.0
        %2724 = vmatpush1.msra.mxu0 0.0
        %2725 = vmatprep.subr.mxu0 0.0
        %2726 = vmatpush1.msra.mxu0 0.0
        %2727 = vmatprep.subr.mxu0 0.0
        %2728 = vmatpush1.msra.mxu0 0.0
        %2729 = vmatprep.subr.mxu0 0.0
        %2730 = vmatpush1.msra.mxu0 0.0
        %2731 = vmatprep.subr.mxu0 0.0
        %2732 = vmatpush1.msra.mxu0 0.0
        %2733 = vmatprep.subr.mxu0 0.0
        %2734 = vmatpush1.msra.mxu0 0.0
        %2735 = vmatprep.subr.mxu0 0.0
        %2736 = vmatpush1.msra.mxu0 0.0
        %2737 = vmatprep.subr.mxu0 0.0
        %2738 = vmatpush1.msra.mxu0 0.0
        %2739 = vmatprep.subr.mxu0 0.0
        %2740 = vmatpush1.msra.mxu0 0.0
        %2741 = vmatprep.subr.mxu0 0.0
        %2742 = vmatpush1.msra.mxu0 0.0
        %2743 = vmatprep.subr.mxu0 0.0
        %2744 = vmatpush1.msra.mxu0 0.0
        %2745 = vmatprep.subr.mxu0 0.0
        %2746 = vmatpush1.msra.mxu0 0.0
        %2747 = vmatprep.subr.mxu0 0.0
        %2748 = vmatpush1.msra.mxu0 0.0
        %2749 = vmatprep.subr.mxu0 0.0
        %2750 = vmatpush1.msra.mxu0 0.0
        %2751 = vmatprep.subr.mxu0 0.0
        %2752 = vmatpush1.msra.mxu0 0.0
        %2753 = vmatprep.mubr.f32.mxu0 0.0
        %v2754 = vand.u32 %v2533, 4294901760
        %v2755 = vsub.f32 %v2533, %v2754
        %2756 = vmatmul.mubr.f32.gmra.mrb[0].mxu0 %v2755
        %v2757 = vpop.f32.mrb[0].mxu0
        %v2758 = vadd.f32 %v2684, %v2757
        %v2759 = vpop.f32.mrb[0].mxu0
        %2760 = vdwg.mxu0
        %2761 = vmatprep.subr.mxu0 0.0
        %v2762 = vand.u32 %v2522, 4294901760
        %2763 = vmatpush1.msra.mxu0 %v2762
        %2764 = vmatprep.subr.mxu0 0.0
        %2765 = vmatpush1.msra.mxu0 0.0
        %2766 = vmatprep.subr.mxu0 0.0
        %2767 = vmatpush1.msra.mxu0 0.0
        %2768 = vmatprep.subr.mxu0 0.0
        %2769 = vmatpush1.msra.mxu0 0.0
        %2770 = vmatprep.subr.mxu0 0.0
        %2771 = vmatpush1.msra.mxu0 0.0
        %2772 = vmatprep.subr.mxu0 0.0
        %2773 = vmatpush1.msra.mxu0 0.0
        %2774 = vmatprep.subr.mxu0 0.0
        %2775 = vmatpush1.msra.mxu0 0.0
        %2776 = vmatprep.subr.mxu0 0.0
        %2777 = vmatpush1.msra.mxu0 0.0
        %2778 = vmatprep.subr.mxu0 0.0
        %2779 = vmatpush1.msra.mxu0 0.0
        %2780 = vmatprep.subr.mxu0 0.0
        %2781 = vmatpush1.msra.mxu0 0.0
        %2782 = vmatprep.subr.mxu0 0.0
        %2783 = vmatpush1.msra.mxu0 0.0
        %2784 = vmatprep.subr.mxu0 0.0
        %2785 = vmatpush1.msra.mxu0 0.0
        %2786 = vmatprep.subr.mxu0 0.0
        %2787 = vmatpush1.msra.mxu0 0.0
        %2788 = vmatprep.subr.mxu0 0.0
        %2789 = vmatpush1.msra.mxu0 0.0
        %2790 = vmatprep.subr.mxu0 0.0
        %2791 = vmatpush1.msra.mxu0 0.0
        %2792 = vmatprep.subr.mxu0 0.0
        %2793 = vmatpush1.msra.mxu0 0.0
        %2794 = vmatprep.subr.mxu0 0.0
        %2795 = vmatpush1.msra.mxu0 0.0
        %2796 = vmatprep.subr.mxu0 0.0
        %2797 = vmatpush1.msra.mxu0 0.0
        %2798 = vmatprep.subr.mxu0 0.0
        %2799 = vmatpush1.msra.mxu0 0.0
        %2800 = vmatprep.subr.mxu0 0.0
        %2801 = vmatpush1.msra.mxu0 0.0
        %2802 = vmatprep.subr.mxu0 0.0
        %2803 = vmatpush1.msra.mxu0 0.0
        %2804 = vmatprep.subr.mxu0 0.0
        %2805 = vmatpush1.msra.mxu0 0.0
        %2806 = vmatprep.subr.mxu0 0.0
        %2807 = vmatpush1.msra.mxu0 0.0
        %2808 = vmatprep.subr.mxu0 0.0
        %2809 = vmatpush1.msra.mxu0 0.0
        %2810 = vmatprep.subr.mxu0 0.0
        %2811 = vmatpush1.msra.mxu0 0.0
        %2812 = vmatprep.subr.mxu0 0.0
        %2813 = vmatpush1.msra.mxu0 0.0
        %2814 = vmatprep.subr.mxu0 0.0
        %2815 = vmatpush1.msra.mxu0 0.0
        %2816 = vmatprep.subr.mxu0 0.0
        %2817 = vmatpush1.msra.mxu0 0.0
        %2818 = vmatprep.subr.mxu0 0.0
        %2819 = vmatpush1.msra.mxu0 0.0
        %2820 = vmatprep.subr.mxu0 0.0
        %2821 = vmatpush1.msra.mxu0 0.0
        %2822 = vmatprep.subr.mxu0 0.0
        %2823 = vmatpush1.msra.mxu0 0.0
        %2824 = vmatprep.subr.mxu0 0.0
        %2825 = vmatpush1.msra.mxu0 0.0
        %2826 = vmatprep.mubr.f32.mxu0 0.0
        %v2827 = vand.u32 %v2533, 4294901760
        %v2828 = vsub.f32 %v2533, %v2827
        %v2829 = vand.u32 %v2828, 4294901760
        %2830 = vmatmul.mubr.f32.gmra.mrb[0].mxu0 %v2829
        %v2831 = vpop.f32.mrb[0].mxu0
        %v2832 = vadd.f32 %v2758, %v2831
        %v2833 = vpop.f32.mrb[0].mxu0
        %2834 = vdwg.mxu0
        %2835 = vmatprep.subr.mxu0 0.0
        %v2836 = vand.u32 %v2522, 4294901760
        %v2837 = vsub.f32 %v2522, %v2836
        %v2838 = vand.u32 %v2837, 4294901760
        %2839 = vmatpush1.msra.mxu0 %v2838
        %2840 = vmatprep.subr.mxu0 0.0
        %2841 = vmatpush1.msra.mxu0 0.0
        %2842 = vmatprep.subr.mxu0 0.0
        %2843 = vmatpush1.msra.mxu0 0.0
        %2844 = vmatprep.subr.mxu0 0.0
        %2845 = vmatpush1.msra.mxu0 0.0
        %2846 = vmatprep.subr.mxu0 0.0
        %2847 = vmatpush1.msra.mxu0 0.0
        %2848 = vmatprep.subr.mxu0 0.0
        %2849 = vmatpush1.msra.mxu0 0.0
        %2850 = vmatprep.subr.mxu0 0.0
        %2851 = vmatpush1.msra.mxu0 0.0
        %2852 = vmatprep.subr.mxu0 0.0
        %2853 = vmatpush1.msra.mxu0 0.0
        %2854 = vmatprep.subr.mxu0 0.0
        %2855 = vmatpush1.msra.mxu0 0.0
        %2856 = vmatprep.subr.mxu0 0.0
        %2857 = vmatpush1.msra.mxu0 0.0
        %2858 = vmatprep.subr.mxu0 0.0
        %2859 = vmatpush1.msra.mxu0 0.0
        %2860 = vmatprep.subr.mxu0 0.0
        %2861 = vmatpush1.msra.mxu0 0.0
        %2862 = vmatprep.subr.mxu0 0.0
        %2863 = vmatpush1.msra.mxu0 0.0
        %2864 = vmatprep.subr.mxu0 0.0
        %2865 = vmatpush1.msra.mxu0 0.0
        %2866 = vmatprep.subr.mxu0 0.0
        %2867 = vmatpush1.msra.mxu0 0.0
        %2868 = vmatprep.subr.mxu0 0.0
        %2869 = vmatpush1.msra.mxu0 0.0
        %2870 = vmatprep.subr.mxu0 0.0
        %2871 = vmatpush1.msra.mxu0 0.0
        %2872 = vmatprep.subr.mxu0 0.0
        %2873 = vmatpush1.msra.mxu0 0.0
        %2874 = vmatprep.subr.mxu0 0.0
        %2875 = vmatpush1.msra.mxu0 0.0
        %2876 = vmatprep.subr.mxu0 0.0
        %2877 = vmatpush1.msra.mxu0 0.0
        %2878 = vmatprep.subr.mxu0 0.0
        %2879 = vmatpush1.msra.mxu0 0.0
        %2880 = vmatprep.subr.mxu0 0.0
        %2881 = vmatpush1.msra.mxu0 0.0
        %2882 = vmatprep.subr.mxu0 0.0
        %2883 = vmatpush1.msra.mxu0 0.0
        %2884 = vmatprep.subr.mxu0 0.0
        %2885 = vmatpush1.msra.mxu0 0.0
        %2886 = vmatprep.subr.mxu0 0.0
        %2887 = vmatpush1.msra.mxu0 0.0
        %2888 = vmatprep.subr.mxu0 0.0
        %2889 = vmatpush1.msra.mxu0 0.0
        %2890 = vmatprep.subr.mxu0 0.0
        %2891 = vmatpush1.msra.mxu0 0.0
        %2892 = vmatprep.subr.mxu0 0.0
        %2893 = vmatpush1.msra.mxu0 0.0
        %2894 = vmatprep.subr.mxu0 0.0
        %2895 = vmatpush1.msra.mxu0 0.0
        %2896 = vmatprep.subr.mxu0 0.0
        %2897 = vmatpush1.msra.mxu0 0.0
        %2898 = vmatprep.subr.mxu0 0.0
        %2899 = vmatpush1.msra.mxu0 0.0
        %2900 = vmatprep.subr.mxu0 0.0
        %2901 = vmatpush1.msra.mxu0 0.0
        %2902 = vmatprep.mubr.f32.mxu0 0.0
        %v2903 = vand.u32 %v2533, 4294901760
        %2904 = vmatmul.mubr.f32.gmra.mrb[0].mxu0 %v2903
        %v2905 = vpop.f32.mrb[0].mxu0
        %v2906 = vadd.f32 %v2832, %v2905
        %v2907 = vpop.f32.mrb[0].mxu0
        %2908 = vdwg.mxu0
        %2909 = vmatprep.subr.mxu0 0.0
        %v2910 = vand.u32 %v2522, 4294901760
        %2911 = vmatpush1.msra.mxu0 %v2910
        %2912 = vmatprep.subr.mxu0 0.0
        %2913 = vmatpush1.msra.mxu0 0.0
        %2914 = vmatprep.subr.mxu0 0.0
        %2915 = vmatpush1.msra.mxu0 0.0
        %2916 = vmatprep.subr.mxu0 0.0
        %2917 = vmatpush1.msra.mxu0 0.0
        %2918 = vmatprep.subr.mxu0 0.0
        %2919 = vmatpush1.msra.mxu0 0.0
        %2920 = vmatprep.subr.mxu0 0.0
        %2921 = vmatpush1.msra.mxu0 0.0
        %2922 = vmatprep.subr.mxu0 0.0
        %2923 = vmatpush1.msra.mxu0 0.0
        %2924 = vmatprep.subr.mxu0 0.0
        %2925 = vmatpush1.msra.mxu0 0.0
        %2926 = vmatprep.subr.mxu0 0.0
        %2927 = vmatpush1.msra.mxu0 0.0
        %2928 = vmatprep.subr.mxu0 0.0
        %2929 = vmatpush1.msra.mxu0 0.0
        %2930 = vmatprep.subr.mxu0 0.0
        %2931 = vmatpush1.msra.mxu0 0.0
        %2932 = vmatprep.subr.mxu0 0.0
        %2933 = vmatpush1.msra.mxu0 0.0
        %2934 = vmatprep.subr.mxu0 0.0
        %2935 = vmatpush1.msra.mxu0 0.0
        %2936 = vmatprep.subr.mxu0 0.0
        %2937 = vmatpush1.msra.mxu0 0.0
        %2938 = vmatprep.subr.mxu0 0.0
        %2939 = vmatpush1.msra.mxu0 0.0
        %2940 = vmatprep.subr.mxu0 0.0
        %2941 = vmatpush1.msra.mxu0 0.0
        %2942 = vmatprep.subr.mxu0 0.0
        %2943 = vmatpush1.msra.mxu0 0.0
        %2944 = vmatprep.subr.mxu0 0.0
        %2945 = vmatpush1.msra.mxu0 0.0
        %2946 = vmatprep.subr.mxu0 0.0
        %2947 = vmatpush1.msra.mxu0 0.0
        %2948 = vmatprep.subr.mxu0 0.0
        %2949 = vmatpush1.msra.mxu0 0.0
        %2950 = vmatprep.subr.mxu0 0.0
        %2951 = vmatpush1.msra.mxu0 0.0
        %2952 = vmatprep.subr.mxu0 0.0
        %2953 = vmatpush1.msra.mxu0 0.0
        %2954 = vmatprep.subr.mxu0 0.0
        %2955 = vmatpush1.msra.mxu0 0.0
        %2956 = vmatprep.subr.mxu0 0.0
        %2957 = vmatpush1.msra.mxu0 0.0
        %2958 = vmatprep.subr.mxu0 0.0
        %2959 = vmatpush1.msra.mxu0 0.0
        %2960 = vmatprep.subr.mxu0 0.0
        %2961 = vmatpush1.msra.mxu0 0.0
        %2962 = vmatprep.subr.mxu0 0.0
        %2963 = vmatpush1.msra.mxu0 0.0
        %2964 = vmatprep.subr.mxu0 0.0
        %2965 = vmatpush1.msra.mxu0 0.0
        %2966 = vmatprep.subr.mxu0 0.0
        %2967 = vmatpush1.msra.mxu0 0.0
        %2968 = vmatprep.subr.mxu0 0.0
        %2969 = vmatpush1.msra.mxu0 0.0
        %2970 = vmatprep.subr.mxu0 0.0
        %2971 = vmatpush1.msra.mxu0 0.0
        %2972 = vmatprep.subr.mxu0 0.0
        %2973 = vmatpush1.msra.mxu0 0.0
        %2974 = vmatprep.mubr.f32.mxu0 0.0
        %v2975 = vand.u32 %v2533, 4294901760
        %2976 = vmatmul.mubr.f32.gmra.mrb[0].mxu0 %v2975
        %v2977 = vpop.f32.mrb[0].mxu0
        %v2978 = vadd.f32 %v2906, %v2977
        %v2979 = vpop.f32.mrb[0].mxu0
        %2980 = vdwg.mxu0
        %vm2981 = vcmp.ge.f32.partialorder %v2978, 0.0
        %s2982 = scalar_lea.vmem %s5, 16
        %v2983 = vld [vmem:[%s2982] sm:$0xff]
        %2985 = vset.pattern.permute.xlu0 0
        %2986 = vperm.xlu0 %2985, %v2983
        %v2987 = vpop.permute.xlu0 %2986
        %v2989 = vmul.f32 %v2987, %v2978
        %v2990 = vsel %vm2981, %v2978, %v2989
        %s2991 = scalar_lea.vmem %s430, 16 [#allocation4]
        %2992 = vst [vmem:[%s2991] sm:$0xff] %v2990
        %s2993 = scalar_lea.vmem %s439, 16
        %v2994 = vld [vmem:[%s2993] sm:$0xff]
        %v2995 = vsel %vm447, %v2994, %v2990
        %2996 = vrot.lane.b32.xlu0 %v2995, 4
        %v2997 = vpop.permute.xlu0 %2996
        %v2998 = vsel %vm448, %v2994, %v2990
        %2999 = vrot.lane.b32.xlu0 %v2998, 8
        %v3000 = vpop.permute.xlu0 %2999
        %s3001 = scalar_lea.vmem %s6, 144
        %v3002 = vld [vmem:[%s3001] sm:$0xff]
        %s3003 = scalar_lea.vmem %s6, 152
        %v3004 = vld [vmem:[%s3003] sm:$0xff]
        %s3005 = scalar_lea.vmem %s6, 160
        %v3006 = vld [vmem:[%s3005] sm:$0xff]
        %s3007 = scalar_lea.vmem %s6, 168
        %v3008 = vld [vmem:[%s3007] sm:$0xff]
        %s3009 = scalar_lea.vmem %s6, 176
        %v3010 = vld [vmem:[%s3009] sm:$0xff]
        %s3011 = scalar_lea.vmem %s6, 184
        %v3012 = vld [vmem:[%s3011] sm:$0xff]
        %s3013 = scalar_lea.vmem %s6, 192
        %v3014 = vld [vmem:[%s3013] sm:$0xff]
        %s3015 = scalar_lea.vmem %s6, 200
        %v3016 = vld [vmem:[%s3015] sm:$0xff]
        %s3017 = scalar_lea.vmem %s6, 208
        %v3018 = vld [vmem:[%s3017] sm:$0xff]
        %3020 = vset.pattern.permute.xlu0 0
        %3021 = vperm.xlu0 %3020, %v3002
        %v3022 = vpop.permute.xlu0 %3021
        %v3024 = vmul.f32 %v3000, %v3022
        %3026 = vset.pattern.permute.xlu0 0
        %3027 = vperm.xlu0 %3026, %v3004
        %v3028 = vpop.permute.xlu0 %3027
        %v3030 = vmul.f32 %v2997, %v3028
        %v3031 = vadd.f32 %v3024, %v3030
        %3033 = vset.pattern.permute.xlu0 0
        %3034 = vperm.xlu0 %3033, %v3006
        %v3035 = vpop.permute.xlu0 %3034
        %v3037 = vmul.f32 %v2990, %v3035
        %v3038 = vadd.f32 %v3031, %v3037
        %3040 = vset.pattern.permute.xlu0 0
        %3041 = vperm.xlu0 %3040, %v3008
        %v3042 = vpop.permute.xlu0 %3041
        %v3044 = vmul.f32 %v3000, %v3042
        %3046 = vset.pattern.permute.xlu0 0
        %3047 = vperm.xlu0 %3046, %v3010
        %v3048 = vpop.permute.xlu0 %3047
        %v3050 = vmul.f32 %v2997, %v3048
        %v3051 = vadd.f32 %v3044, %v3050
        %3053 = vset.pattern.permute.xlu0 0
        %3054 = vperm.xlu0 %3053, %v3012
        %v3055 = vpop.permute.xlu0 %3054
        %v3057 = vmul.f32 %v2990, %v3055
        %v3058 = vadd.f32 %v3051, %v3057
        %3060 = vset.pattern.permute.xlu0 0
        %3061 = vperm.xlu0 %3060, %v3014
        %v3062 = vpop.permute.xlu0 %3061
        %v3064 = vmul.f32 %v3000, %v3062
        %3066 = vset.pattern.permute.xlu0 0
        %3067 = vperm.xlu0 %3066, %v3016
        %v3068 = vpop.permute.xlu0 %3067
        %v3070 = vmul.f32 %v2997, %v3068
        %v3071 = vadd.f32 %v3064, %v3070
        %3073 = vset.pattern.permute.xlu0 0
        %3074 = vperm.xlu0 %3073, %v3018
        %v3075 = vpop.permute.xlu0 %3074
        %v3077 = vmul.f32 %v2990, %v3075
        %v3078 = vadd.f32 %v3071, %v3077
        %3079 = vrot.lane.b32.xlu0 %v3038, 16
        %v3080 = vpop.permute.xlu0 %3079
        %v3081 = vsel %vm442, 0.0, %v3080
        %3082 = vrot.lane.b32.xlu0 %v3078, 112
        %v3083 = vpop.permute.xlu0 %3082
        %v3084 = vsel %vm443, 0.0, %v3083
        %v3085 = vadd.f32 %v3081, %v3058
        %v3086 = vadd.f32 %v3085, %v3084
        %s3087 = scalar_lea.vmem %s7, 16
        %v3088 = vld [vmem:[%s3087] sm:$0xff]
        %3090 = vset.pattern.permute.xlu0 0
        %3091 = vperm.xlu0 %3090, %v3088
        %v3092 = vpop.permute.xlu0 %3091
        %v3094 = vadd.f32 %v3086, %v3092
        %vm3095 = vcmp.ge.f32.partialorder %v3094, 0.0
        %s3096 = scalar_lea.vmem %s8, 16
        %v3097 = vld [vmem:[%s3096] sm:$0xff]
        %3099 = vset.pattern.permute.xlu0 0
        %3100 = vperm.xlu0 %3099, %v3097
        %v3101 = vpop.permute.xlu0 %3100
        %v3103 = vmul.f32 %v3101, %v3094
        %v3104 = vsel %vm3095, %v3094, %v3103
        %s3105 = scalar_lea.vmem %s9, 16
        %v3106 = vld [vmem:[%s3105] sm:$0xff]
        %s3107 = scalar_lea.vmem %s10, 16
        %v3108 = vld [vmem:[%s3107] sm:$0xff]
        %3110 = vset.pattern.permute.xlu0 0
        %3111 = vperm.xlu0 %3110, %v3108
        %v3112 = vpop.permute.xlu0 %3111
        %v3115 = vsel %vm457, %v3106, 0
        %3117 = vmatprep.subr.mxu0 0.0
        %v3118 = vand.u32 %v3104, 4294901760
        %3119 = vmatpush1.msra.mxu0 %v3118
        %3120 = vmatprep.subr.mxu0 0.0
        %3121 = vmatpush1.msra.mxu0 0.0
        %3122 = vmatprep.subr.mxu0 0.0
        %3123 = vmatpush1.msra.mxu0 0.0
        %3124 = vmatprep.subr.mxu0 0.0
        %3125 = vmatpush1.msra.mxu0 0.0
        %3126 = vmatprep.subr.mxu0 0.0
        %3127 = vmatpush1.msra.mxu0 0.0
        %3128 = vmatprep.subr.mxu0 0.0
        %3129 = vmatpush1.msra.mxu0 0.0
        %3130 = vmatprep.subr.mxu0 0.0
        %3131 = vmatpush1.msra.mxu0 0.0
        %3132 = vmatprep.subr.mxu0 0.0
        %3133 = vmatpush1.msra.mxu0 0.0
        %3134 = vmatprep.subr.mxu0 0.0
        %3135 = vmatpush1.msra.mxu0 0.0
        %3136 = vmatprep.subr.mxu0 0.0
        %3137 = vmatpush1.msra.mxu0 0.0
        %3138 = vmatprep.subr.mxu0 0.0
        %3139 = vmatpush1.msra.mxu0 0.0
        %3140 = vmatprep.subr.mxu0 0.0
        %3141 = vmatpush1.msra.mxu0 0.0
        %3142 = vmatprep.subr.mxu0 0.0
        %3143 = vmatpush1.msra.mxu0 0.0
        %3144 = vmatprep.subr.mxu0 0.0
        %3145 = vmatpush1.msra.mxu0 0.0
        %3146 = vmatprep.subr.mxu0 0.0
        %3147 = vmatpush1.msra.mxu0 0.0
        %3148 = vmatprep.subr.mxu0 0.0
        %3149 = vmatpush1.msra.mxu0 0.0
        %3150 = vmatprep.subr.mxu0 0.0
        %3151 = vmatpush1.msra.mxu0 0.0
        %3152 = vmatprep.subr.mxu0 0.0
        %3153 = vmatpush1.msra.mxu0 0.0
        %3154 = vmatprep.subr.mxu0 0.0
        %3155 = vmatpush1.msra.mxu0 0.0
        %3156 = vmatprep.subr.mxu0 0.0
        %3157 = vmatpush1.msra.mxu0 0.0
        %3158 = vmatprep.subr.mxu0 0.0
        %3159 = vmatpush1.msra.mxu0 0.0
        %3160 = vmatprep.subr.mxu0 0.0
        %3161 = vmatpush1.msra.mxu0 0.0
        %3162 = vmatprep.subr.mxu0 0.0
        %3163 = vmatpush1.msra.mxu0 0.0
        %3164 = vmatprep.subr.mxu0 0.0
        %3165 = vmatpush1.msra.mxu0 0.0
        %3166 = vmatprep.subr.mxu0 0.0
        %3167 = vmatpush1.msra.mxu0 0.0
        %3168 = vmatprep.subr.mxu0 0.0
        %3169 = vmatpush1.msra.mxu0 0.0
        %3170 = vmatprep.subr.mxu0 0.0
        %3171 = vmatpush1.msra.mxu0 0.0
        %3172 = vmatprep.subr.mxu0 0.0
        %3173 = vmatpush1.msra.mxu0 0.0
        %3174 = vmatprep.subr.mxu0 0.0
        %3175 = vmatpush1.msra.mxu0 0.0
        %3176 = vmatprep.subr.mxu0 0.0
        %3177 = vmatpush1.msra.mxu0 0.0
        %3178 = vmatprep.subr.mxu0 0.0
        %3179 = vmatpush1.msra.mxu0 0.0
        %3180 = vmatprep.subr.mxu0 0.0
        %3181 = vmatpush1.msra.mxu0 0.0
        %3182 = vmatprep.mubr.f32.mxu0 0.0
        %v3183 = vand.u32 %v3115, 4294901760
        %v3184 = vsub.f32 %v3115, %v3183
        %v3185 = vand.u32 %v3184, 4294901760
        %v3186 = vsub.f32 %v3184, %v3185
        %v3187 = vand.u32 %v3186, 4294901760
        %3188 = vmatmul.mubr.f32.gmra.mrb[0].mxu0 %v3187
        %v3189 = vpop.f32.mrb[0].mxu0
        %v3190 = vadd.f32 %v3112, %v3189
        %v3191 = vpop.f32.mrb[0].mxu0
        %3192 = vdwg.mxu0
        %3193 = vmatprep.subr.mxu0 0.0
        %v3194 = vand.u32 %v3104, 4294901760
        %v3195 = vsub.f32 %v3104, %v3194
        %v3196 = vand.u32 %v3195, 4294901760
        %v3197 = vsub.f32 %v3195, %v3196
        %v3198 = vand.u32 %v3197, 4294901760
        %3199 = vmatpush1.msra.mxu0 %v3198
        %3200 = vmatprep.subr.mxu0 0.0
        %3201 = vmatpush1.msra.mxu0 0.0
        %3202 = vmatprep.subr.mxu0 0.0
        %3203 = vmatpush1.msra.mxu0 0.0
        %3204 = vmatprep.subr.mxu0 0.0
        %3205 = vmatpush1.msra.mxu0 0.0
        %3206 = vmatprep.subr.mxu0 0.0
        %3207 = vmatpush1.msra.mxu0 0.0
        %3208 = vmatprep.subr.mxu0 0.0
        %3209 = vmatpush1.msra.mxu0 0.0
        %3210 = vmatprep.subr.mxu0 0.0
        %3211 = vmatpush1.msra.mxu0 0.0
        %3212 = vmatprep.subr.mxu0 0.0
        %3213 = vmatpush1.msra.mxu0 0.0
        %3214 = vmatprep.subr.mxu0 0.0
        %3215 = vmatpush1.msra.mxu0 0.0
        %3216 = vmatprep.subr.mxu0 0.0
        %3217 = vmatpush1.msra.mxu0 0.0
        %3218 = vmatprep.subr.mxu0 0.0
        %3219 = vmatpush1.msra.mxu0 0.0
        %3220 = vmatprep.subr.mxu0 0.0
        %3221 = vmatpush1.msra.mxu0 0.0
        %3222 = vmatprep.subr.mxu0 0.0
        %3223 = vmatpush1.msra.mxu0 0.0
        %3224 = vmatprep.subr.mxu0 0.0
        %3225 = vmatpush1.msra.mxu0 0.0
        %3226 = vmatprep.subr.mxu0 0.0
        %3227 = vmatpush1.msra.mxu0 0.0
        %3228 = vmatprep.subr.mxu0 0.0
        %3229 = vmatpush1.msra.mxu0 0.0
        %3230 = vmatprep.subr.mxu0 0.0
        %3231 = vmatpush1.msra.mxu0 0.0
        %3232 = vmatprep.subr.mxu0 0.0
        %3233 = vmatpush1.msra.mxu0 0.0
        %3234 = vmatprep.subr.mxu0 0.0
        %3235 = vmatpush1.msra.mxu0 0.0
        %3236 = vmatprep.subr.mxu0 0.0
        %3237 = vmatpush1.msra.mxu0 0.0
        %3238 = vmatprep.subr.mxu0 0.0
        %3239 = vmatpush1.msra.mxu0 0.0
        %3240 = vmatprep.subr.mxu0 0.0
        %3241 = vmatpush1.msra.mxu0 0.0
        %3242 = vmatprep.subr.mxu0 0.0
        %3243 = vmatpush1.msra.mxu0 0.0
        %3244 = vmatprep.subr.mxu0 0.0
        %3245 = vmatpush1.msra.mxu0 0.0
        %3246 = vmatprep.subr.mxu0 0.0
        %3247 = vmatpush1.msra.mxu0 0.0
        %3248 = vmatprep.subr.mxu0 0.0
        %3249 = vmatpush1.msra.mxu0 0.0
        %3250 = vmatprep.subr.mxu0 0.0
        %3251 = vmatpush1.msra.mxu0 0.0
        %3252 = vmatprep.subr.mxu0 0.0
        %3253 = vmatpush1.msra.mxu0 0.0
        %3254 = vmatprep.subr.mxu0 0.0
        %3255 = vmatpush1.msra.mxu0 0.0
        %3256 = vmatprep.subr.mxu0 0.0
        %3257 = vmatpush1.msra.mxu0 0.0
        %3258 = vmatprep.subr.mxu0 0.0
        %3259 = vmatpush1.msra.mxu0 0.0
        %3260 = vmatprep.subr.mxu0 0.0
        %3261 = vmatpush1.msra.mxu0 0.0
        %3262 = vmatprep.mubr.f32.mxu0 0.0
        %v3263 = vand.u32 %v3115, 4294901760
        %3264 = vmatmul.mubr.f32.gmra.mrb[0].mxu0 %v3263
        %v3265 = vpop.f32.mrb[0].mxu0
        %v3266 = vadd.f32 %v3190, %v3265
        %v3267 = vpop.f32.mrb[0].mxu0
        %3268 = vdwg.mxu0
        %3269 = vmatprep.subr.mxu0 0.0
        %v3270 = vand.u32 %v3104, 4294901760
        %v3271 = vsub.f32 %v3104, %v3270
        %3272 = vmatpush1.msra.mxu0 %v3271
        %3273 = vmatprep.subr.mxu0 0.0
        %3274 = vmatpush1.msra.mxu0 0.0
        %3275 = vmatprep.subr.mxu0 0.0
        %3276 = vmatpush1.msra.mxu0 0.0
        %3277 = vmatprep.subr.mxu0 0.0
        %3278 = vmatpush1.msra.mxu0 0.0
        %3279 = vmatprep.subr.mxu0 0.0
        %3280 = vmatpush1.msra.mxu0 0.0
        %3281 = vmatprep.subr.mxu0 0.0
        %3282 = vmatpush1.msra.mxu0 0.0
        %3283 = vmatprep.subr.mxu0 0.0
        %3284 = vmatpush1.msra.mxu0 0.0
        %3285 = vmatprep.subr.mxu0 0.0
        %3286 = vmatpush1.msra.mxu0 0.0
        %3287 = vmatprep.subr.mxu0 0.0
        %3288 = vmatpush1.msra.mxu0 0.0
        %3289 = vmatprep.subr.mxu0 0.0
        %3290 = vmatpush1.msra.mxu0 0.0
        %3291 = vmatprep.subr.mxu0 0.0
        %3292 = vmatpush1.msra.mxu0 0.0
        %3293 = vmatprep.subr.mxu0 0.0
        %3294 = vmatpush1.msra.mxu0 0.0
        %3295 = vmatprep.subr.mxu0 0.0
        %3296 = vmatpush1.msra.mxu0 0.0
        %3297 = vmatprep.subr.mxu0 0.0
        %3298 = vmatpush1.msra.mxu0 0.0
        %3299 = vmatprep.subr.mxu0 0.0
        %3300 = vmatpush1.msra.mxu0 0.0
        %3301 = vmatprep.subr.mxu0 0.0
        %3302 = vmatpush1.msra.mxu0 0.0
        %3303 = vmatprep.subr.mxu0 0.0
        %3304 = vmatpush1.msra.mxu0 0.0
        %3305 = vmatprep.subr.mxu0 0.0
        %3306 = vmatpush1.msra.mxu0 0.0
        %3307 = vmatprep.subr.mxu0 0.0
        %3308 = vmatpush1.msra.mxu0 0.0
        %3309 = vmatprep.subr.mxu0 0.0
        %3310 = vmatpush1.msra.mxu0 0.0
        %3311 = vmatprep.subr.mxu0 0.0
        %3312 = vmatpush1.msra.mxu0 0.0
        %3313 = vmatprep.subr.mxu0 0.0
        %3314 = vmatpush1.msra.mxu0 0.0
        %3315 = vmatprep.subr.mxu0 0.0
        %3316 = vmatpush1.msra.mxu0 0.0
        %3317 = vmatprep.subr.mxu0 0.0
        %3318 = vmatpush1.msra.mxu0 0.0
        %3319 = vmatprep.subr.mxu0 0.0
        %3320 = vmatpush1.msra.mxu0 0.0
        %3321 = vmatprep.subr.mxu0 0.0
        %3322 = vmatpush1.msra.mxu0 0.0
        %3323 = vmatprep.subr.mxu0 0.0
        %3324 = vmatpush1.msra.mxu0 0.0
        %3325 = vmatprep.subr.mxu0 0.0
        %3326 = vmatpush1.msra.mxu0 0.0
        %3327 = vmatprep.subr.mxu0 0.0
        %3328 = vmatpush1.msra.mxu0 0.0
        %3329 = vmatprep.subr.mxu0 0.0
        %3330 = vmatpush1.msra.mxu0 0.0
        %3331 = vmatprep.subr.mxu0 0.0
        %3332 = vmatpush1.msra.mxu0 0.0
        %3333 = vmatprep.subr.mxu0 0.0
        %3334 = vmatpush1.msra.mxu0 0.0
        %3335 = vmatprep.mubr.f32.mxu0 0.0
        %v3336 = vand.u32 %v3115, 4294901760
        %v3337 = vsub.f32 %v3115, %v3336
        %3338 = vmatmul.mubr.f32.gmra.mrb[0].mxu0 %v3337
        %v3339 = vpop.f32.mrb[0].mxu0
        %v3340 = vadd.f32 %v3266, %v3339
        %v3341 = vpop.f32.mrb[0].mxu0
        %3342 = vdwg.mxu0
        %3343 = vmatprep.subr.mxu0 0.0
        %v3344 = vand.u32 %v3104, 4294901760
        %3345 = vmatpush1.msra.mxu0 %v3344
        %3346 = vmatprep.subr.mxu0 0.0
        %3347 = vmatpush1.msra.mxu0 0.0
        %3348 = vmatprep.subr.mxu0 0.0
        %3349 = vmatpush1.msra.mxu0 0.0
        %3350 = vmatprep.subr.mxu0 0.0
        %3351 = vmatpush1.msra.mxu0 0.0
        %3352 = vmatprep.subr.mxu0 0.0
        %3353 = vmatpush1.msra.mxu0 0.0
        %3354 = vmatprep.subr.mxu0 0.0
        %3355 = vmatpush1.msra.mxu0 0.0
        %3356 = vmatprep.subr.mxu0 0.0
        %3357 = vmatpush1.msra.mxu0 0.0
        %3358 = vmatprep.subr.mxu0 0.0
        %3359 = vmatpush1.msra.mxu0 0.0
        %3360 = vmatprep.subr.mxu0 0.0
        %3361 = vmatpush1.msra.mxu0 0.0
        %3362 = vmatprep.subr.mxu0 0.0
        %3363 = vmatpush1.msra.mxu0 0.0
        %3364 = vmatprep.subr.mxu0 0.0
        %3365 = vmatpush1.msra.mxu0 0.0
        %3366 = vmatprep.subr.mxu0 0.0
        %3367 = vmatpush1.msra.mxu0 0.0
        %3368 = vmatprep.subr.mxu0 0.0
        %3369 = vmatpush1.msra.mxu0 0.0
        %3370 = vmatprep.subr.mxu0 0.0
        %3371 = vmatpush1.msra.mxu0 0.0
        %3372 = vmatprep.subr.mxu0 0.0
        %3373 = vmatpush1.msra.mxu0 0.0
        %3374 = vmatprep.subr.mxu0 0.0
        %3375 = vmatpush1.msra.mxu0 0.0
        %3376 = vmatprep.subr.mxu0 0.0
        %3377 = vmatpush1.msra.mxu0 0.0
        %3378 = vmatprep.subr.mxu0 0.0
        %3379 = vmatpush1.msra.mxu0 0.0
        %3380 = vmatprep.subr.mxu0 0.0
        %3381 = vmatpush1.msra.mxu0 0.0
        %3382 = vmatprep.subr.mxu0 0.0
        %3383 = vmatpush1.msra.mxu0 0.0
        %3384 = vmatprep.subr.mxu0 0.0
        %3385 = vmatpush1.msra.mxu0 0.0
        %3386 = vmatprep.subr.mxu0 0.0
        %3387 = vmatpush1.msra.mxu0 0.0
        %3388 = vmatprep.subr.mxu0 0.0
        %3389 = vmatpush1.msra.mxu0 0.0
        %3390 = vmatprep.subr.mxu0 0.0
        %3391 = vmatpush1.msra.mxu0 0.0
        %3392 = vmatprep.subr.mxu0 0.0
        %3393 = vmatpush1.msra.mxu0 0.0
        %3394 = vmatprep.subr.mxu0 0.0
        %3395 = vmatpush1.msra.mxu0 0.0
        %3396 = vmatprep.subr.mxu0 0.0
        %3397 = vmatpush1.msra.mxu0 0.0
        %3398 = vmatprep.subr.mxu0 0.0
        %3399 = vmatpush1.msra.mxu0 0.0
        %3400 = vmatprep.subr.mxu0 0.0
        %3401 = vmatpush1.msra.mxu0 0.0
        %3402 = vmatprep.subr.mxu0 0.0
        %3403 = vmatpush1.msra.mxu0 0.0
        %3404 = vmatprep.subr.mxu0 0.0
        %3405 = vmatpush1.msra.mxu0 0.0
        %3406 = vmatprep.subr.mxu0 0.0
        %3407 = vmatpush1.msra.mxu0 0.0
        %3408 = vmatprep.mubr.f32.mxu0 0.0
        %v3409 = vand.u32 %v3115, 4294901760
        %v3410 = vsub.f32 %v3115, %v3409
        %v3411 = vand.u32 %v3410, 4294901760
        %3412 = vmatmul.mubr.f32.gmra.mrb[0].mxu0 %v3411
        %v3413 = vpop.f32.mrb[0].mxu0
        %v3414 = vadd.f32 %v3340, %v3413
        %v3415 = vpop.f32.mrb[0].mxu0
        %3416 = vdwg.mxu0
        %3417 = vmatprep.subr.mxu0 0.0
        %v3418 = vand.u32 %v3104, 4294901760
        %v3419 = vsub.f32 %v3104, %v3418
        %v3420 = vand.u32 %v3419, 4294901760
        %3421 = vmatpush1.msra.mxu0 %v3420
        %3422 = vmatprep.subr.mxu0 0.0
        %3423 = vmatpush1.msra.mxu0 0.0
        %3424 = vmatprep.subr.mxu0 0.0
        %3425 = vmatpush1.msra.mxu0 0.0
        %3426 = vmatprep.subr.mxu0 0.0
        %3427 = vmatpush1.msra.mxu0 0.0
        %3428 = vmatprep.subr.mxu0 0.0
        %3429 = vmatpush1.msra.mxu0 0.0
        %3430 = vmatprep.subr.mxu0 0.0
        %3431 = vmatpush1.msra.mxu0 0.0
        %3432 = vmatprep.subr.mxu0 0.0
        %3433 = vmatpush1.msra.mxu0 0.0
        %3434 = vmatprep.subr.mxu0 0.0
        %3435 = vmatpush1.msra.mxu0 0.0
        %3436 = vmatprep.subr.mxu0 0.0
        %3437 = vmatpush1.msra.mxu0 0.0
        %3438 = vmatprep.subr.mxu0 0.0
        %3439 = vmatpush1.msra.mxu0 0.0
        %3440 = vmatprep.subr.mxu0 0.0
        %3441 = vmatpush1.msra.mxu0 0.0
        %3442 = vmatprep.subr.mxu0 0.0
        %3443 = vmatpush1.msra.mxu0 0.0
        %3444 = vmatprep.subr.mxu0 0.0
        %3445 = vmatpush1.msra.mxu0 0.0
        %3446 = vmatprep.subr.mxu0 0.0
        %3447 = vmatpush1.msra.mxu0 0.0
        %3448 = vmatprep.subr.mxu0 0.0
        %3449 = vmatpush1.msra.mxu0 0.0
        %3450 = vmatprep.subr.mxu0 0.0
        %3451 = vmatpush1.msra.mxu0 0.0
        %3452 = vmatprep.subr.mxu0 0.0
        %3453 = vmatpush1.msra.mxu0 0.0
        %3454 = vmatprep.subr.mxu0 0.0
        %3455 = vmatpush1.msra.mxu0 0.0
        %3456 = vmatprep.subr.mxu0 0.0
        %3457 = vmatpush1.msra.mxu0 0.0
        %3458 = vmatprep.subr.mxu0 0.0
        %3459 = vmatpush1.msra.mxu0 0.0
        %3460 = vmatprep.subr.mxu0 0.0
        %3461 = vmatpush1.msra.mxu0 0.0
        %3462 = vmatprep.subr.mxu0 0.0
        %3463 = vmatpush1.msra.mxu0 0.0
        %3464 = vmatprep.subr.mxu0 0.0
        %3465 = vmatpush1.msra.mxu0 0.0
        %3466 = vmatprep.subr.mxu0 0.0
        %3467 = vmatpush1.msra.mxu0 0.0
        %3468 = vmatprep.subr.mxu0 0.0
        %3469 = vmatpush1.msra.mxu0 0.0
        %3470 = vmatprep.subr.mxu0 0.0
        %3471 = vmatpush1.msra.mxu0 0.0
        %3472 = vmatprep.subr.mxu0 0.0
        %3473 = vmatpush1.msra.mxu0 0.0
        %3474 = vmatprep.subr.mxu0 0.0
        %3475 = vmatpush1.msra.mxu0 0.0
        %3476 = vmatprep.subr.mxu0 0.0
        %3477 = vmatpush1.msra.mxu0 0.0
        %3478 = vmatprep.subr.mxu0 0.0
        %3479 = vmatpush1.msra.mxu0 0.0
        %3480 = vmatprep.subr.mxu0 0.0
        %3481 = vmatpush1.msra.mxu0 0.0
        %3482 = vmatprep.subr.mxu0 0.0
        %3483 = vmatpush1.msra.mxu0 0.0
        %3484 = vmatprep.mubr.f32.mxu0 0.0
        %v3485 = vand.u32 %v3115, 4294901760
        %3486 = vmatmul.mubr.f32.gmra.mrb[0].mxu0 %v3485
        %v3487 = vpop.f32.mrb[0].mxu0
        %v3488 = vadd.f32 %v3414, %v3487
        %v3489 = vpop.f32.mrb[0].mxu0
        %3490 = vdwg.mxu0
        %3491 = vmatprep.subr.mxu0 0.0
        %v3492 = vand.u32 %v3104, 4294901760
        %3493 = vmatpush1.msra.mxu0 %v3492
        %3494 = vmatprep.subr.mxu0 0.0
        %3495 = vmatpush1.msra.mxu0 0.0
        %3496 = vmatprep.subr.mxu0 0.0
        %3497 = vmatpush1.msra.mxu0 0.0
        %3498 = vmatprep.subr.mxu0 0.0
        %3499 = vmatpush1.msra.mxu0 0.0
        %3500 = vmatprep.subr.mxu0 0.0
        %3501 = vmatpush1.msra.mxu0 0.0
        %3502 = vmatprep.subr.mxu0 0.0
        %3503 = vmatpush1.msra.mxu0 0.0
        %3504 = vmatprep.subr.mxu0 0.0
        %3505 = vmatpush1.msra.mxu0 0.0
        %3506 = vmatprep.subr.mxu0 0.0
        %3507 = vmatpush1.msra.mxu0 0.0
        %3508 = vmatprep.subr.mxu0 0.0
        %3509 = vmatpush1.msra.mxu0 0.0
        %3510 = vmatprep.subr.mxu0 0.0
        %3511 = vmatpush1.msra.mxu0 0.0
        %3512 = vmatprep.subr.mxu0 0.0
        %3513 = vmatpush1.msra.mxu0 0.0
        %3514 = vmatprep.subr.mxu0 0.0
        %3515 = vmatpush1.msra.mxu0 0.0
        %3516 = vmatprep.subr.mxu0 0.0
        %3517 = vmatpush1.msra.mxu0 0.0
        %3518 = vmatprep.subr.mxu0 0.0
        %3519 = vmatpush1.msra.mxu0 0.0
        %3520 = vmatprep.subr.mxu0 0.0
        %3521 = vmatpush1.msra.mxu0 0.0
        %3522 = vmatprep.subr.mxu0 0.0
        %3523 = vmatpush1.msra.mxu0 0.0
        %3524 = vmatprep.subr.mxu0 0.0
        %3525 = vmatpush1.msra.mxu0 0.0
        %3526 = vmatprep.subr.mxu0 0.0
        %3527 = vmatpush1.msra.mxu0 0.0
        %3528 = vmatprep.subr.mxu0 0.0
        %3529 = vmatpush1.msra.mxu0 0.0
        %3530 = vmatprep.subr.mxu0 0.0
        %3531 = vmatpush1.msra.mxu0 0.0
        %3532 = vmatprep.subr.mxu0 0.0
        %3533 = vmatpush1.msra.mxu0 0.0
        %3534 = vmatprep.subr.mxu0 0.0
        %3535 = vmatpush1.msra.mxu0 0.0
        %3536 = vmatprep.subr.mxu0 0.0
        %3537 = vmatpush1.msra.mxu0 0.0
        %3538 = vmatprep.subr.mxu0 0.0
        %3539 = vmatpush1.msra.mxu0 0.0
        %3540 = vmatprep.subr.mxu0 0.0
        %3541 = vmatpush1.msra.mxu0 0.0
        %3542 = vmatprep.subr.mxu0 0.0
        %3543 = vmatpush1.msra.mxu0 0.0
        %3544 = vmatprep.subr.mxu0 0.0
        %3545 = vmatpush1.msra.mxu0 0.0
        %3546 = vmatprep.subr.mxu0 0.0
        %3547 = vmatpush1.msra.mxu0 0.0
        %3548 = vmatprep.subr.mxu0 0.0
        %3549 = vmatpush1.msra.mxu0 0.0
        %3550 = vmatprep.subr.mxu0 0.0
        %3551 = vmatpush1.msra.mxu0 0.0
        %3552 = vmatprep.subr.mxu0 0.0
        %3553 = vmatpush1.msra.mxu0 0.0
        %3554 = vmatprep.subr.mxu0 0.0
        %3555 = vmatpush1.msra.mxu0 0.0
        %3556 = vmatprep.mubr.f32.mxu0 0.0
        %v3557 = vand.u32 %v3115, 4294901760
        %3558 = vmatmul.mubr.f32.gmra.mrb[0].mxu0 %v3557
        %v3559 = vpop.f32.mrb[0].mxu0
        %v3560 = vadd.f32 %v3488, %v3559
        %v3561 = vpop.f32.mrb[0].mxu0
        %3562 = vdwg.mxu0
        %v3563 = vadd.f32 %v3560, %v2522
        %3564 = vst [vmem:[%s423] sm:$0xff] %v3563
        %s3565 = sand.u32 %s279, 1
        %s3566 = scalar_lea.sflag [#allocation3], %s3565
        %s3567 = sand.u32 %s279, 1
        %s3568 = smul.addr %s3567, 8
        %s3569 = scalar_lea.vmem [#allocation2], %s3568
        %s3570 = sand.u32 %s305, 1
        %s3571 = scalar_lea.sflag [#allocation5], %s3570
        %s3572 = sand.u32 %s305, 1
        %s3573 = smul.addr %s3572, 24
        %s3574 = scalar_lea.vmem [#allocation4], %s3573
        // Predicated region
        $region65: #{tpu_custom_call.1} parent=63 // pred_check
          %p3575 = pneg %p289
        $region66: #{tpu_custom_call.1} parent=63 // pred_check_branch
          %3577 = sbr.rel (%p3575) target = $region68
        $region67: #{tpu_custom_call.1} parent=63 // pred_region
          %s3579 = ssub.s32 128, 128
          %3580 = vsyncadd %s3566, %s3579
          %s3581 = smul.addr %s30, 128
          %s3582 = scalar_lea.hbm %s11, %s3581
          %s3584 = sshll.u32 %s3569, 4
          %s3585 = int_to_ptr.vmem [resolvable:$true] %s3584
          %3587 = dma.vmem_to_hbm [thread:$0]  %s3585, 128, %s3582, %s3566
        $region68: #{tpu_custom_call.1} parent=63 // pred_fallthru
          _
        // Predicated region
        $region69: #{tpu_custom_call.1} parent=63 // pred_check
          %p3588 = pneg %p315
        $region70: #{tpu_custom_call.1} parent=63 // pred_check_branch
          %3590 = sbr.rel (%p3588) target = $region72
        $region71: #{tpu_custom_call.1} parent=63 // pred_region
          %s3592 = ssub.s32 384, 384
          %3593 = vsyncadd %s3571, %s3592
          %s3594 = smul.addr %s30, 3
          %s3595 = smul.addr %s3594, 128
          %s3596 = scalar_lea.hbm %s12, %s3595
          %s3597 = sshll.u32 %s3574, 4
          %s3598 = int_to_ptr.vmem [resolvable:$true] %s3597
          %3603 = dma.vmem_to_hbm [thread:$0]  %s3598, 384, %s3596, %s3571, 128, 128, 8
        $region72: #{tpu_custom_call.1} parent=63 // pred_fallthru
          _
      $region64: #{tpu_custom_call.1} parent=5 // pred_fallthru
        _
      %p3604 = scmp.le.s32.totalorder 2, %s25
      // Predicated region
      $region73: #{tpu_custom_call.1} parent=5 // pred_check
        %p3605 = pneg %p3604
      $region74: #{tpu_custom_call.1} parent=5 // pred_check_branch
        %3607 = sbr.rel (%p3605) target = $region76
      $region75: #{tpu_custom_call.1} parent=5 // pred_region
        %s3608 = ssub.s32 %s25, 2
        // Predicated region
        $region77: #{tpu_custom_call.1} parent=75 // pred_check
          %p3609 = pneg %p295
        $region78: #{tpu_custom_call.1} parent=75 // pred_check_branch
          %3611 = sbr.rel (%p3609) target = $region80
        $region79: #{tpu_custom_call.1} parent=75 // pred_region
          %s3612 = sand.u32 %s280, 1
          %s3613 = scalar_lea.sflag [#allocation3], %s3612
          %s3614 = sand.u32 %s280, 1
          %s3615 = smul.addr %s3614, 8
          %s3616 = scalar_lea.vmem [#allocation2], %s3615
          %3617 = dma.done %s3613, 128
        $region80: #{tpu_custom_call.1} parent=75 // pred_fallthru
          _
        // Predicated region
        $region81: #{tpu_custom_call.1} parent=75 // pred_check
          %p3618 = pneg %p321
        $region82: #{tpu_custom_call.1} parent=75 // pred_check_branch
          %3620 = sbr.rel (%p3618) target = $region84
        $region83: #{tpu_custom_call.1} parent=75 // pred_region
          %s3621 = sand.u32 %s306, 1
          %s3622 = scalar_lea.sflag [#allocation5], %s3621
          %s3623 = sand.u32 %s306, 1
          %s3624 = smul.addr %s3623, 24
          %s3625 = scalar_lea.vmem [#allocation4], %s3624
          %3626 = dma.done %s3622, 384
        $region84: #{tpu_custom_call.1} parent=75 // pred_fallthru
          _
      $region76: #{tpu_custom_call.1} parent=5 // pred_fallthru
        _
    $region6: #{tpu_custom_call.1} parent=1 // loop_footer
      %s29 = sadd.s32 1, %s25
    $region7: #{tpu_custom_call.1} parent=1 // loop_footer_branch
      %24 = sbr.rel target = $region3
    $region8: #{tpu_custom_call.1} parent=1 // loop_exit
      _
    %3627 = vsyncpa [#allocation3], 1
    %s3628 = scalar_lea.sflag [#allocation3], 1
    %3629 = vsyncpa %s3628, 1
    %3630 = vsyncpa [#allocation5], 1
    %s3631 = scalar_lea.sflag [#allocation5], 1
    %3632 = vsyncpa %s3631, 1

</llo_original>
